<compile_context>
chip_gen: v6e
topology: v6e:2x2x1
jax: 0.10.0
libtpu: 0.0.40
codegen_flags: <defaults>
</compile_context>

<pallas_src>
import functools

import jax
import jax.numpy as jnp
from jax import lax
from jax.experimental import pallas as pl
from jax.experimental.pallas import tpu as pltpu

LANE = 128
SUBLANE = 8


def _round_up(v, m):
    return ((v + m - 1) // m) * m


def bottleneck_kernel(x_ref, w1_ref, w2_ref, w3_ref, b1_ref, b2_ref, b3_ref,
                      out_ref, *, w_real):
    """One batch image per grid step (grid = (N,)), fully auto-pipelined.

    x_ref  : (1, H, Wp, Cin)  bf16  NHWC activations (W padded to 8, C to 128)
    w1_ref : (Cin, P)         bf16  1x1 conv, BN1 scale folded in
    w2_ref : (9P, P)          bf16  3x3 conv taps flattened (dy, dx, cin), BN2 folded
    w3_ref : (P, Cout)        bf16  1x1 conv, BN3 scale folded in
    b*_ref : (1, C)           f32   folded BN biases
    out_ref: (1, H, Wp, Cout) bf16  output image
    w_real : static int, unpadded image width (for the right-edge mask)
    """
    _, H, Wp, Cout = out_ref.shape
    Cin = x_ref.shape[3]
    HW = H * Wp
    M = (H + 2) * Wp          # conv2 input rows incl. one zero-pad row each side

    x = x_ref[0].reshape(HW, Cin)                        # (HW, Cin) bf16

    # ---- conv1 (1x1) + bias + relu (BN1 scale folded into w1) ----
    h1 = jnp.dot(x, w1_ref[...], preferred_element_type=jnp.float32)
    h1 = jnp.maximum(h1 + b1_ref[...], 0.0)              # (HW, P) f32

    # conv2's zero padding applies to h1 (post conv1+bias+relu), so append
    # literal zero rows above / below the image.
    P = h1.shape[1]
    zrow = jnp.zeros((Wp, P), jnp.bfloat16)
    h1e = jnp.concatenate([zrow, h1.astype(jnp.bfloat16), zrow], axis=0)  # (M, P)

    # ---- conv2 (3x3, stride 1, pad 1) as one fat MXU matmul over 9 taps ----
    # g[dx][j] = h1e[j + dx - 1]; the +-1 column shift is a roll along the
    # flattened row axis.  Positions that cross a row boundary (or the array
    # edge, or land in the W-padding) are exactly conv2's zero-pad columns and
    # get masked to zero.
    cols = lax.broadcasted_iota(jnp.int32, (M, 1), 0) % Wp
    g0 = jnp.where(cols >= 1, jnp.roll(h1e, 1, axis=0), jnp.zeros_like(h1e))
    g2 = jnp.where(cols <= w_real - 2, jnp.roll(h1e, -1, axis=0),
                   jnp.zeros_like(h1e))
    g = (g0, h1e, g2)
    # tap(dy, dx)[r*Wp + c] = h1e[(r+dy)*Wp + c + dx - 1]; Wp % 8 == 0 keeps
    # the dy*Wp slices sublane-aligned (no retiling copies).
    taps = [g[dx][dy * Wp:dy * Wp + HW] for dy in range(3) for dx in range(3)]
    patches = jnp.concatenate(taps, axis=1)              # (HW, 9P) bf16
    h2 = jnp.dot(patches, w2_ref[...], preferred_element_type=jnp.float32)
    h2 = jnp.maximum(h2 + b2_ref[...], 0.0)              # (HW, P) f32

    # ---- conv3 (1x1) + bias + identity residual + relu ----
    h3 = jnp.dot(h2.astype(jnp.bfloat16), w3_ref[...],
                 preferred_element_type=jnp.float32)
    out = jnp.maximum(h3 + b3_ref[...] + x.astype(jnp.float32), 0.0)
    out_ref[0] = out.reshape(H, Wp, Cout).astype(out_ref.dtype)


def bottleneck_forward_nhwc(x_nhwc, kparams, w_real):
    """Hot-path entry: x is NHWC bf16, W padded to 8, channels padded to 128."""
    w1, w2, w3, b1, b2, b3 = kparams
    N, H, Wp, Cin_p = x_nhwc.shape
    P_p = w1.shape[1]
    Cout_p = w3.shape[1]
    assert w1.shape[0] == Cin_p
    assert Cin_p == Cout_p, "identity residual requires inplanes == planes*expansion"
    assert Wp % SUBLANE == 0
    assert Cin_p % LANE == 0 and P_p % LANE == 0 and Cout_p % LANE == 0

    flops = 2 * N * H * Wp * (Cin_p * P_p + 9 * P_p * P_p + P_p * Cout_p)
    bytes_accessed = (2 * (x_nhwc.size + N * H * Wp * Cout_p)      # bf16 activations
                      + 2 * (w1.size + w2.size + w3.size)          # bf16 weights
                      + 4 * (b1.size + b2.size + b3.size))         # f32 biases

    kernel = functools.partial(bottleneck_kernel, w_real=w_real)
    return pl.pallas_call(
        kernel,
        out_shape=jax.ShapeDtypeStruct((N, H, Wp, Cout_p), jnp.bfloat16),
        grid_spec=pltpu.PrefetchScalarGridSpec(
            num_scalar_prefetch=0,
            grid=(N,),
            in_specs=[
                pl.BlockSpec((1, H, Wp, Cin_p), lambda n: (n, 0, 0, 0)),
                pl.BlockSpec((Cin_p, P_p), lambda n: (0, 0)),
                pl.BlockSpec((9 * P_p, P_p), lambda n: (0, 0)),
                pl.BlockSpec((P_p, Cout_p), lambda n: (0, 0)),
                pl.BlockSpec((1, P_p), lambda n: (0, 0)),
                pl.BlockSpec((1, P_p), lambda n: (0, 0)),
                pl.BlockSpec((1, Cout_p), lambda n: (0, 0)),
            ],
            out_specs=pl.BlockSpec((1, H, Wp, Cout_p), lambda n: (n, 0, 0, 0)),
        ),
        compiler_params=pltpu.CompilerParams(
            dimension_semantics=("parallel",),
            # Re-derive when scaling H/W/C (v7x has 64 MiB physical VMEM).
            vmem_limit_bytes=32 * 1024 * 1024),
        cost_estimate=pl.CostEstimate(flops=flops, transcendentals=0,
                                      bytes_accessed=bytes_accessed),
    )(x_nhwc, w1, w2, w3, b1, b2, b3)


def bottleneck_forward_nchw(x_nchw, kparams, cout):
    """PyTorch-interface wrapper.  In a real network keep activations NHWC,
    bf16 and channel/width padded end-to-end and call bottleneck_forward_nhwc
    directly; the transpose/pad/cast here is a one-time model-boundary cost."""
    w1 = kparams[0]
    Cin_p = w1.shape[0]
    N, Cin, H, W = x_nchw.shape
    Wp = _round_up(W, SUBLANE)
    x = jnp.transpose(x_nchw, (0, 2, 3, 1))                         # NHWC
    x = jnp.pad(x, ((0, 0), (0, 0), (0, Wp - W), (0, Cin_p - Cin)))
    x = x.astype(jnp.bfloat16)
    out = bottleneck_forward_nhwc(x, kparams, w_real=W)
    out = out[:, :, :W, :cout].astype(jnp.float32)
    return jnp.transpose(out, (0, 3, 1, 2))


def fold_and_pad_params(torch_like):
    """Fold eval-mode BN scale into the conv weights, pad channels to 128
    lanes, cast matmul weights to bf16 and flatten the 3x3 kernel taps."""
    (w1_oihw, w2_oihw, w3_oihw, s1, b1, s2, b2, s3, b3) = torch_like
    P, Cin = w1_oihw.shape[0], w1_oihw.shape[1]
    Cout = w3_oihw.shape[0]
    Cin_p, P_p, Cout_p = (_round_up(c, LANE) for c in (Cin, P, Cout))

    w1 = jnp.transpose(w1_oihw[:, :, 0, 0], (1, 0)) * s1[None, :]            # (Cin, P)
    w2 = jnp.transpose(w2_oihw, (2, 3, 1, 0)) * s2[None, None, None, :]      # (3,3,P,P) HWIO
    w3 = jnp.transpose(w3_oihw[:, :, 0, 0], (1, 0)) * s3[None, :]            # (P, Cout)

    w1 = jnp.pad(w1, ((0, Cin_p - Cin), (0, P_p - P))).astype(jnp.bfloat16)
    w2 = jnp.pad(w2, ((0, 0), (0, 0), (0, P_p - P), (0, P_p - P)))
    w2 = w2.reshape(9 * P_p, P_p).astype(jnp.bfloat16)                        # (9P, P)
    w3 = jnp.pad(w3, ((0, P_p - P), (0, Cout_p - Cout))).astype(jnp.bfloat16)

    b1p = jnp.pad(b1, (0, P_p - P)).astype(jnp.float32)[None, :]
    b2p = jnp.pad(b2, (0, P_p - P)).astype(jnp.float32)[None, :]
    b3p = jnp.pad(b3, (0, Cout_p - Cout)).astype(jnp.float32)[None, :]
    return (w1, w2, w3, b1p, b2p, b3p)


def reference_forward(x_nchw, torch_like):
    """Pure-JAX reference in NCHW/OIHW matching the PyTorch module (eval BN)."""
    (w1_oihw, w2_oihw, w3_oihw, s1, b1, s2, b2, s3, b3) = torch_like

    def conv(x, w, pad):
        return lax.conv_general_dilated(
            x, w, window_strides=(1, 1), padding=((pad, pad), (pad, pad)),
            dimension_numbers=("NCHW", "OIHW", "NCHW"))

    def bn(x, s, b):
        return x * s[None, :, None, None] + b[None, :, None, None]

    out = jnp.maximum(bn(conv(x_nchw, w1_oihw, 0), s1, b1), 0.0)
    out = jnp.maximum(bn(conv(out, w2_oihw, 1), s2, b2), 0.0)
    out = bn(conv(out, w3_oihw, 0), s3, b3)
    return jnp.maximum(out + x_nchw, 0.0)


def make_params(key, inplanes, planes, expansion):
    cout = planes * expansion
    ks = jax.random.split(key, 8)
    w1_oihw = jax.random.normal(ks[0], (planes, inplanes, 1, 1), jnp.float32) * 0.1
    w2_oihw = jax.random.normal(ks[1], (planes, planes, 3, 3), jnp.float32) * 0.1
    w3_oihw = jax.random.normal(ks[2], (cout, planes, 1, 1), jnp.float32) * 0.1

    def bn_params(k, c):
        k1, k2, k3, k4 = jax.random.split(k, 4)
        gamma = jax.random.normal(k1, (c,), jnp.float32) * 0.1 + 1.0
        beta = jax.random.normal(k2, (c,), jnp.float32) * 0.1
        mean = jax.random.normal(k3, (c,), jnp.float32) * 0.1
        var = jax.random.uniform(k4, (c,), jnp.float32, 0.5, 1.5)
        scale = gamma / jnp.sqrt(var + 1e-5)
        bias = beta - mean * scale
        return scale, bias

    s1, b1 = bn_params(ks[3], planes)
    s2, b2 = bn_params(ks[4], planes)
    s3, b3 = bn_params(ks[5], cout)
    return (w1_oihw, w2_oihw, w3_oihw, s1, b1, s2, b2, s3, b3)


if __name__ == "__main__":
    # inplanes must equal planes * expansion for the identity residual path.
    N, H, W = 2, 16, 16
    planes, expansion = 4, 4
    inplanes = planes * expansion  # 16

    key = jax.random.PRNGKey(0)
    kx, kp = jax.random.split(key)
    x = jax.random.normal(kx, (N, inplanes, H, W), jnp.float32)  # NCHW like PyTorch

    torch_like = make_params(kp, inplanes, planes, expansion)
    kparams = fold_and_pad_params(torch_like)

    out = bottleneck_forward_nchw(x, kparams, cout=inplanes)
    out = jax.block_until_ready(out)

    ref = jax.block_until_ready(reference_forward(x, torch_like))
    assert out.shape == (N, inplanes, H, W)
    err = jnp.max(jnp.abs(out - ref))
    # bf16 activations + bf16 matmul operands (f32 accumulation) vs f32 ref.
    assert jnp.allclose(out, ref, atol=3e-2, rtol=3e-2), f"max abs err {err}"

    print("KERNEL_OK")
</pallas_src>

<mosaic_0001>
module attributes {stable_mosaic.version = 11 : i64} {
  func.func @bottleneck_kernel(%arg0: i32, %arg1: memref<1x16x16x128xbf16, #tpu.memory_space<vmem>>, %arg2: memref<128x128xbf16, #tpu.memory_space<vmem>>, %arg3: memref<1152x128xbf16, #tpu.memory_space<vmem>>, %arg4: memref<128x128xbf16, #tpu.memory_space<vmem>>, %arg5: memref<1x128xf32, #tpu.memory_space<vmem>>, %arg6: memref<1x128xf32, #tpu.memory_space<vmem>>, %arg7: memref<1x128xf32, #tpu.memory_space<vmem>>, %arg8: memref<1x16x16x128xbf16, #tpu.memory_space<vmem>>) attributes {dimension_semantics = [#tpu.dimension_semantics<parallel>], iteration_bounds = array<i64: 2>, scalar_prefetch = 0 : i64, scratch_operands = 0 : i64, tpu.core_type = #tpu.core_type<tc>, window_params = [{transform_indices = @transform_0, window_bounds = array<i64: 1, 16, 16, 128>}, {pipeline_mode = #tpu.pipeline_mode<synchronous>, transform_indices = @transform_1, window_bounds = array<i64: 128, 128>}, {pipeline_mode = #tpu.pipeline_mode<synchronous>, transform_indices = @transform_2, window_bounds = array<i64: 1152, 128>}, {pipeline_mode = #tpu.pipeline_mode<synchronous>, transform_indices = @transform_3, window_bounds = array<i64: 128, 128>}, {pipeline_mode = #tpu.pipeline_mode<synchronous>, transform_indices = @transform_4, window_bounds = array<i64: 1, 128>}, {pipeline_mode = #tpu.pipeline_mode<synchronous>, transform_indices = @transform_5, window_bounds = array<i64: 1, 128>}, {pipeline_mode = #tpu.pipeline_mode<synchronous>, transform_indices = @transform_6, window_bounds = array<i64: 1, 128>}, {transform_indices = @transform_7, window_bounds = array<i64: 1, 16, 16, 128>}]} {
    %c0 = arith.constant 0 : index
    %c0_0 = arith.constant 0 : index
    %c0_1 = arith.constant 0 : index
    %c0_2 = arith.constant 0 : index
    %0 = vector.load %arg1[%c0, %c0_0, %c0_1, %c0_2] : memref<1x16x16x128xbf16, #tpu.memory_space<vmem>>, vector<1x16x16x128xbf16>
    %1 = vector.shape_cast %0 : vector<1x16x16x128xbf16> to vector<16x16x128xbf16>
    %2 = vector.shape_cast %1 : vector<16x16x128xbf16> to vector<256x128xbf16>
    %c0_3 = arith.constant 0 : index
    %c0_4 = arith.constant 0 : index
    %3 = vector.load %arg2[%c0_3, %c0_4] : memref<128x128xbf16, #tpu.memory_space<vmem>>, vector<128x128xbf16>
    %cst = arith.constant dense<0.000000e+00> : vector<256x128xf32>
    %4 = tpu.matmul %2, %3, %cst {dimension_numbers = #tpu.dot_dimension_numbers<[1], [0], [0], [1], [0, 0, 1, 1], [], []>} : vector<256x128xbf16>, vector<128x128xbf16>, vector<256x128xf32> -> vector<256x128xf32>
    %c0_5 = arith.constant 0 : index
    %c0_6 = arith.constant 0 : index
    %5 = vector.load %arg5[%c0_5, %c0_6] : memref<1x128xf32, #tpu.memory_space<vmem>>, vector<1x128xf32>
    %6 = vector.broadcast %5 : vector<1x128xf32> to vector<256x128xf32>
    %7 = arith.addf %4, %6 : vector<256x128xf32>
    %cst_7 = arith.constant 0.000000e+00 : f32
    %8 = vector.broadcast %cst_7 : f32 to vector<256x128xf32>
    %9 = arith.maximumf %7, %8 : vector<256x128xf32>
    %cst_8 = arith.constant 0.000000e+00 : bf16
    %10 = vector.broadcast %cst_8 : bf16 to vector<16x128xbf16>
    %11 = arith.truncf %9 : vector<256x128xf32> to vector<256x128xbf16>
    %12 = tpu.concatenate %10, %11, %10 in 0 : vector<16x128xbf16>, vector<256x128xbf16>, vector<16x128xbf16> -> vector<288x128xbf16>
    %13 = tpu.iota {dimensions = array<i32: 0>} : vector<288x1xi32>
    %c16_i32 = arith.constant 16 : i32
    %c0_i32 = arith.constant 0 : i32
    %14 = arith.cmpi eq, %c16_i32, %c0_i32 : i32
    %c1_i32 = arith.constant 1 : i32
    %15 = arith.select %14, %c1_i32, %c16_i32 : i32
    %16 = vector.broadcast %15 : i32 to vector<288x1xi32>
    %17 = arith.remsi %13, %16 : vector<288x1xi32>
    %c0_i32_9 = arith.constant 0 : i32
    %18 = vector.broadcast %c0_i32_9 : i32 to vector<288x1xi32>
    %19 = arith.cmpi ne, %17, %18 : vector<288x1xi32>
    %c0_i32_10 = arith.constant 0 : i32
    %20 = vector.broadcast %c0_i32_10 : i32 to vector<288x1xi32>
    %21 = arith.cmpi slt, %17, %20 : vector<288x1xi32>
    %c0_i32_11 = arith.constant 0 : i32
    %22 = arith.cmpi slt, %15, %c0_i32_11 : i32
    %23 = vector.broadcast %22 : i1 to vector<288x1xi1>
    %24 = vector.broadcast %23 : vector<288x1xi1> to vector<288x1xi1>
    %25 = arith.xori %21, %24 : vector<288x1xi1>
    %26 = arith.andi %25, %19 : vector<288x1xi1>
    %27 = vector.broadcast %15 : i32 to vector<288x1xi32>
    %28 = arith.addi %17, %27 : vector<288x1xi32>
    %29 = arith.select %26, %28, %17 : vector<288x1xi1>, vector<288x1xi32>
    %c1_i32_12 = arith.constant 1 : i32
    %30 = vector.broadcast %c1_i32_12 : i32 to vector<288x1xi32>
    %31 = arith.cmpi sge, %29, %30 : vector<288x1xi32>
    %32 = vector.extract_strided_slice %12 {offsets = [287, 0], sizes = [1, 128], strides = [1, 1]} : vector<288x128xbf16> to vector<1x128xbf16>
    %33 = vector.extract_strided_slice %12 {offsets = [0, 0], sizes = [287, 128], strides = [1, 1]} : vector<288x128xbf16> to vector<287x128xbf16>
    %34 = tpu.concatenate %32, %33 in 0 : vector<1x128xbf16>, vector<287x128xbf16> -> vector<288x128xbf16>
    %cst_13 = arith.constant 0.000000e+00 : bf16
    %35 = vector.broadcast %cst_13 : bf16 to vector<288x128xbf16>
    %36 = vector.shape_cast %31 : vector<288x1xi1> to vector<288x1xi1>
    %37 = vector.broadcast %36 : vector<288x1xi1> to vector<288x128xi1>
    %38 = arith.select %37, %34, %35 : vector<288x128xi1>, vector<288x128xbf16>
    %c14_i32 = arith.constant 14 : i32
    %39 = vector.broadcast %c14_i32 : i32 to vector<288x1xi32>
    %40 = arith.cmpi sle, %29, %39 : vector<288x1xi32>
    %41 = vector.extract_strided_slice %12 {offsets = [1, 0], sizes = [287, 128], strides = [1, 1]} : vector<288x128xbf16> to vector<287x128xbf16>
    %42 = vector.extract_strided_slice %12 {offsets = [0, 0], sizes = [1, 128], strides = [1, 1]} : vector<288x128xbf16> to vector<1x128xbf16>
    %43 = tpu.concatenate %41, %42 in 0 : vector<287x128xbf16>, vector<1x128xbf16> -> vector<288x128xbf16>
    %cst_14 = arith.constant 0.000000e+00 : bf16
    %44 = vector.broadcast %cst_14 : bf16 to vector<288x128xbf16>
    %45 = vector.shape_cast %40 : vector<288x1xi1> to vector<288x1xi1>
    %46 = vector.broadcast %45 : vector<288x1xi1> to vector<288x128xi1>
    %47 = arith.select %46, %43, %44 : vector<288x128xi1>, vector<288x128xbf16>
    %48 = vector.extract_strided_slice %38 {offsets = [0, 0], sizes = [256, 128], strides = [1, 1]} : vector<288x128xbf16> to vector<256x128xbf16>
    %49 = vector.extract_strided_slice %12 {offsets = [0, 0], sizes = [256, 128], strides = [1, 1]} : vector<288x128xbf16> to vector<256x128xbf16>
    %50 = vector.extract_strided_slice %47 {offsets = [0, 0], sizes = [256, 128], strides = [1, 1]} : vector<288x128xbf16> to vector<256x128xbf16>
    %51 = vector.extract_strided_slice %38 {offsets = [16, 0], sizes = [256, 128], strides = [1, 1]} : vector<288x128xbf16> to vector<256x128xbf16>
    %52 = vector.extract_strided_slice %12 {offsets = [16, 0], sizes = [256, 128], strides = [1, 1]} : vector<288x128xbf16> to vector<256x128xbf16>
    %53 = vector.extract_strided_slice %47 {offsets = [16, 0], sizes = [256, 128], strides = [1, 1]} : vector<288x128xbf16> to vector<256x128xbf16>
    %54 = vector.extract_strided_slice %38 {offsets = [32, 0], sizes = [256, 128], strides = [1, 1]} : vector<288x128xbf16> to vector<256x128xbf16>
    %55 = vector.extract_strided_slice %12 {offsets = [32, 0], sizes = [256, 128], strides = [1, 1]} : vector<288x128xbf16> to vector<256x128xbf16>
    %56 = vector.extract_strided_slice %47 {offsets = [32, 0], sizes = [256, 128], strides = [1, 1]} : vector<288x128xbf16> to vector<256x128xbf16>
    %57 = tpu.concatenate %48, %49, %50, %51, %52, %53, %54, %55, %56 in 1 : vector<256x128xbf16>, vector<256x128xbf16>, vector<256x128xbf16>, vector<256x128xbf16>, vector<256x128xbf16>, vector<256x128xbf16>, vector<256x128xbf16>, vector<256x128xbf16>, vector<256x128xbf16> -> vector<256x1152xbf16>
    %c0_15 = arith.constant 0 : index
    %c0_16 = arith.constant 0 : index
    %58 = vector.load %arg3[%c0_15, %c0_16] : memref<1152x128xbf16, #tpu.memory_space<vmem>>, vector<1152x128xbf16>
    %cst_17 = arith.constant dense<0.000000e+00> : vector<256x128xf32>
    %59 = tpu.matmul %57, %58, %cst_17 {dimension_numbers = #tpu.dot_dimension_numbers<[1], [0], [0], [1], [0, 0, 1, 1], [], []>} : vector<256x1152xbf16>, vector<1152x128xbf16>, vector<256x128xf32> -> vector<256x128xf32>
    %c0_18 = arith.constant 0 : index
    %c0_19 = arith.constant 0 : index
    %60 = vector.load %arg6[%c0_18, %c0_19] : memref<1x128xf32, #tpu.memory_space<vmem>>, vector<1x128xf32>
    %61 = vector.broadcast %60 : vector<1x128xf32> to vector<256x128xf32>
    %62 = arith.addf %59, %61 : vector<256x128xf32>
    %cst_20 = arith.constant 0.000000e+00 : f32
    %63 = vector.broadcast %cst_20 : f32 to vector<256x128xf32>
    %64 = arith.maximumf %62, %63 : vector<256x128xf32>
    %65 = arith.truncf %64 : vector<256x128xf32> to vector<256x128xbf16>
    %c0_21 = arith.constant 0 : index
    %c0_22 = arith.constant 0 : index
    %66 = vector.load %arg4[%c0_21, %c0_22] : memref<128x128xbf16, #tpu.memory_space<vmem>>, vector<128x128xbf16>
    %cst_23 = arith.constant dense<0.000000e+00> : vector<256x128xf32>
    %67 = tpu.matmul %65, %66, %cst_23 {dimension_numbers = #tpu.dot_dimension_numbers<[1], [0], [0], [1], [0, 0, 1, 1], [], []>} : vector<256x128xbf16>, vector<128x128xbf16>, vector<256x128xf32> -> vector<256x128xf32>
    %c0_24 = arith.constant 0 : index
    %c0_25 = arith.constant 0 : index
    %68 = vector.load %arg7[%c0_24, %c0_25] : memref<1x128xf32, #tpu.memory_space<vmem>>, vector<1x128xf32>
    %69 = vector.broadcast %68 : vector<1x128xf32> to vector<256x128xf32>
    %70 = arith.addf %67, %69 : vector<256x128xf32>
    %71 = arith.extf %2 : vector<256x128xbf16> to vector<256x128xf32>
    %72 = arith.addf %70, %71 : vector<256x128xf32>
    %cst_26 = arith.constant 0.000000e+00 : f32
    %73 = vector.broadcast %cst_26 : f32 to vector<256x128xf32>
    %74 = arith.maximumf %72, %73 : vector<256x128xf32>
    %75 = vector.shape_cast %74 : vector<256x128xf32> to vector<16x16x128xf32>
    %76 = arith.truncf %75 : vector<16x16x128xf32> to vector<16x16x128xbf16>
    %c0_27 = arith.constant 0 : index
    %c0_28 = arith.constant 0 : index
    %c0_29 = arith.constant 0 : index
    %c0_30 = arith.constant 0 : index
    %77 = vector.load %arg8[%c0_27, %c0_28, %c0_29, %c0_30] : memref<1x16x16x128xbf16, #tpu.memory_space<vmem>>, vector<1x16x16x128xbf16>
    %78 = vector.shape_cast %77 : vector<1x16x16x128xbf16> to vector<16x16x128xbf16>
    %79 = vector.shape_cast %76 : vector<16x16x128xbf16> to vector<1x16x16x128xbf16>
    tpu.vector_store %arg8[%c0_27, %c0_28, %c0_29, %c0_30], %79 {strides = array<i32>} : memref<1x16x16x128xbf16, #tpu.memory_space<vmem>>, vector<1x16x16x128xbf16>,
    return
  }
  func.func @transform_0(%arg0: i32) -> (i32, i32, i32, i32) {
    %c0_i32 = arith.constant 0 : i32
    %c0_i32_0 = arith.constant 0 : i32
    %c0_i32_1 = arith.constant 0 : i32
    %c0_i32_2 = arith.constant 0 : i32
    return %arg0, %c0_i32, %c0_i32_0, %c0_i32_1 : i32, i32, i32, i32
  }
  func.func @transform_1(%arg0: i32) -> (i32, i32) {
    %c0_i32 = arith.constant 0 : i32
    %c0_i32_0 = arith.constant 0 : i32
    %c0_i32_1 = arith.constant 0 : i32
    return %c0_i32, %c0_i32_0 : i32, i32
  }
  func.func @transform_2(%arg0: i32) -> (i32, i32) {
    %c0_i32 = arith.constant 0 : i32
    %c0_i32_0 = arith.constant 0 : i32
    %c0_i32_1 = arith.constant 0 : i32
    return %c0_i32, %c0_i32_0 : i32, i32
  }
  func.func @transform_3(%arg0: i32) -> (i32, i32) {
    %c0_i32 = arith.constant 0 : i32
    %c0_i32_0 = arith.constant 0 : i32
    %c0_i32_1 = arith.constant 0 : i32
    return %c0_i32, %c0_i32_0 : i32, i32
  }
  func.func @transform_4(%arg0: i32) -> (i32, i32) {
    %c0_i32 = arith.constant 0 : i32
    %c0_i32_0 = arith.constant 0 : i32
    %c0_i32_1 = arith.constant 0 : i32
    return %c0_i32, %c0_i32_0 : i32, i32
  }
  func.func @transform_5(%arg0: i32) -> (i32, i32) {
    %c0_i32 = arith.constant 0 : i32
    %c0_i32_0 = arith.constant 0 : i32
    %c0_i32_1 = arith.constant 0 : i32
    return %c0_i32, %c0_i32_0 : i32, i32
  }
  func.func @transform_6(%arg0: i32) -> (i32, i32) {
    %c0_i32 = arith.constant 0 : i32
    %c0_i32_0 = arith.constant 0 : i32
    %c0_i32_1 = arith.constant 0 : i32
    return %c0_i32, %c0_i32_0 : i32, i32
  }
  func.func @transform_7(%arg0: i32) -> (i32, i32, i32, i32) {
    %c0_i32 = arith.constant 0 : i32
    %c0_i32_0 = arith.constant 0 : i32
    %c0_i32_1 = arith.constant 0 : i32
    %c0_i32_2 = arith.constant 0 : i32
    return %arg0, %c0_i32, %c0_i32_0, %c0_i32_1 : i32, i32, i32, i32
  }
}

</mosaic_0001>

<llo_original>
// kernel: tpu_custom_call.1
$region0: #{tpu_custom_call.1}
  #allocation0 [shape = 'u32[]', space=smem, size = 0x4, offset = 0x4, fixed_abs, tag = 'smem constant byte address 0x4 - core index']
  #allocation1 [shape = 'u32[144,128]{1,0:T(1,128)}', space=vmem, size = 0x12000, scoped, tag = 'internal scratch']
  %s0 = inlined_call_operand.hbm [shape: bf16[2,16,16,128], index: 0, kind: input, shape index: {}]
  %s1 = inlined_call_operand.hbm [shape: bf16[128,128], index: 1, kind: input, shape index: {}]
  %s2 = inlined_call_operand.hbm [shape: bf16[1152,128], index: 2, kind: input, shape index: {}]
  %s3 = inlined_call_operand.hbm [shape: bf16[128,128], index: 3, kind: input, shape index: {}]
  %s4 = inlined_call_operand.vmem [shape: f32[1,128], index: 4, kind: input, shape index: {}]
  %s5 = inlined_call_operand.vmem [shape: f32[1,128], index: 5, kind: input, shape index: {}]
  %s6 = inlined_call_operand.vmem [shape: f32[1,128], index: 6, kind: input, shape index: {}]
  %s7 = inlined_call_operand.hbm [shape: bf16[2,16,16,128], index: 7, kind: output, shape index: {}]
  %s8 = sld [smem:[#allocation0]]
  $region77: #{tpu_custom_call.1} parent=0
    _
  %s10 = ssub.s32 1, %s8
  %s11 = scalar_select 0, %s10, %s8
  $region1: #{tpu_custom_call.1} parent=0
    #allocation2 [shape = 'u8[131072]{0}', space=vmem, size = 0x20000, scoped, tag = 'input window, operand 0']
    #allocation3 [shape = 's32[2]{0}', space=sflag, size = 0x8, scoped, tag = 'scoped memory for tpu_custom_call.1']
    #allocation4 [shape = 's32[2]{0}', space=sflag, size = 0x8, scoped, tag = 'scoped memory for tpu_custom_call.1']
    #allocation5 [shape = 'u8[32768]{0}', space=vmem, size = 0x8000, scoped, tag = 'input window, operand 1, single buffered']
    #allocation6 [shape = 's32[1]{0}', space=sflag, size = 0x4, scoped, tag = 'scoped memory for tpu_custom_call.1']
    #allocation7 [shape = 'u8[294912]{0}', space=vmem, size = 0x48000, scoped, tag = 'input window, operand 2, single buffered']
    #allocation8 [shape = 'u8[32768]{0}', space=vmem, size = 0x8000, scoped, tag = 'input window, operand 3, single buffered']
    #allocation9 [shape = 's32[1]{0}', space=sflag, size = 0x4, scoped, tag = 'scoped memory for tpu_custom_call.1']
    #allocation10 [shape = 'u8[131072]{0}', space=vmem, size = 0x20000, scoped, tag = 'output window, operand 0']
    %12 = vsyncpa [#allocation3], 0
    %s13 = scalar_lea.sflag [#allocation3], 1
    %14 = vsyncpa %s13, 0
    %15 = vsyncpa [#allocation6], 0
    %16 = vsyncpa [#allocation9], 0
    %17 = vsyncpa [#allocation4], 0
    %s18 = scalar_lea.sflag [#allocation4], 1
    %19 = vsyncpa %s18, 0
    loop: start=0, step=1, limit=4
    $region2: #{tpu_custom_call.1} parent=1 // loop_pre_header
      _
    $region3: #{tpu_custom_call.1} parent=1 // loop_header
      %s21 = sphi 0, %s25
      %p22 = scmp.ge.s32.totalorder %s21, 4
      %s31 = sphi 0, %s33
      %s34 = sphi 0, %s31
      %s35 = sphi 0, %s34
      %s51 = sphi 0, %s35
      %s55 = sphi 0, %s55
      %s57 = sphi 0, %s55
      %s58 = sphi 0, %s57
      %s72 = sphi 0, %s58
      %s76 = sphi 0, %s76
      %s78 = sphi 0, %s76
      %s79 = sphi 0, %s78
      %s93 = sphi 0, %s79
      %s97 = sphi 0, %s97
      %s99 = sphi 0, %s97
      %s100 = sphi 0, %s99
      %s114 = sphi 0, %s100
      %s118 = sphi 0, %s118
      %s120 = sphi 0, %s118
      %s121 = sphi 0, %s120
      %s135 = sphi 0, %s121
      %s139 = sphi 0, %s139
      %s141 = sphi 0, %s139
      %s142 = sphi 0, %s141
      %s156 = sphi 0, %s142
      %s160 = sphi 0, %s160
      %s162 = sphi 0, %s160
      %s163 = sphi 0, %s162
      %s177 = sphi 0, %s163
      %s183 = sphi 0, %s185
      %s186 = sphi 0, %s183
      %s187 = sphi 0, %s186
      %s203 = sphi 0, %s187
    $region4: #{tpu_custom_call.1} parent=1 // loop_header_branch
      %24 = sbr.rel (%p22) target = $region8
    $region5: #{tpu_custom_call.1} parent=1 // loop_body
      %s26 = ssub.s32 %s21, 1
      %s27 = ssub.s32 %s21, 2
      %s28 = sadd.s32 %s21, 1
      %s29 = ssub.s32 %s21, %s28
      %p30 = scmp.eq.s32.totalorder %s29, 0
      %s32 = sadd.s32 %s31, 1
      %s33 = scalar_select %p30, %s31, %s32
      %p36 = pneg %p30
      %p37 = scmp.eq.s32.totalorder %s21, 1
      %p38 = por %p36, %p37
      %p39 = scmp.ne.s32.totalorder %s31, %s34
      %p40 = scmp.eq.s32.totalorder %s21, 0
      %p41 = por %p39, %p40
      %p42 = scmp.ne.s32.totalorder %s31, %s34
      %p43 = scmp.eq.s32.totalorder %s26, 1
      %p44 = por %p42, %p43
      %p45 = scmp.ne.s32.totalorder %s34, %s35
      %p46 = scmp.eq.s32.totalorder %s26, 0
      %p47 = por %p45, %p46
      %p48 = scmp.ne.s32.totalorder %s34, %s35
      %p49 = scmp.eq.s32.totalorder %s27, 1
      %p50 = por %p48, %p49
      %p52 = scmp.ne.s32.totalorder %s35, %s51
      %p53 = scmp.eq.s32.totalorder %s27, 0
      %p54 = por %p52, %p53
      %s56 = sadd.s32 %s55, 1
      %p59 = scmp.eq.s32.totalorder %s21, 1
      %p60 = scmp.ne.s32.totalorder %s55, %s57
      %p61 = scmp.eq.s32.totalorder %s21, 0
      %p62 = por %p60, %p61
      %p63 = scmp.ne.s32.totalorder %s55, %s57
      %p64 = scmp.eq.s32.totalorder %s26, 1
      %p65 = por %p63, %p64
      %p66 = scmp.ne.s32.totalorder %s57, %s58
      %p67 = scmp.eq.s32.totalorder %s26, 0
      %p68 = por %p66, %p67
      %p69 = scmp.ne.s32.totalorder %s57, %s58
      %p70 = scmp.eq.s32.totalorder %s27, 1
      %p71 = por %p69, %p70
      %p73 = scmp.ne.s32.totalorder %s58, %s72
      %p74 = scmp.eq.s32.totalorder %s27, 0
      %p75 = por %p73, %p74
      %s77 = sadd.s32 %s76, 1
      %p80 = scmp.eq.s32.totalorder %s21, 1
      %p81 = scmp.ne.s32.totalorder %s76, %s78
      %p82 = scmp.eq.s32.totalorder %s21, 0
      %p83 = por %p81, %p82
      %p84 = scmp.ne.s32.totalorder %s76, %s78
      %p85 = scmp.eq.s32.totalorder %s26, 1
      %p86 = por %p84, %p85
      %p87 = scmp.ne.s32.totalorder %s78, %s79
      %p88 = scmp.eq.s32.totalorder %s26, 0
      %p89 = por %p87, %p88
      %p90 = scmp.ne.s32.totalorder %s78, %s79
      %p91 = scmp.eq.s32.totalorder %s27, 1
      %p92 = por %p90, %p91
      %p94 = scmp.ne.s32.totalorder %s79, %s93
      %p95 = scmp.eq.s32.totalorder %s27, 0
      %p96 = por %p94, %p95
      %s98 = sadd.s32 %s97, 1
      %p101 = scmp.eq.s32.totalorder %s21, 1
      %p102 = scmp.ne.s32.totalorder %s97, %s99
      %p103 = scmp.eq.s32.totalorder %s21, 0
      %p104 = por %p102, %p103
      %p105 = scmp.ne.s32.totalorder %s97, %s99
      %p106 = scmp.eq.s32.totalorder %s26, 1
      %p107 = por %p105, %p106
      %p108 = scmp.ne.s32.totalorder %s99, %s100
      %p109 = scmp.eq.s32.totalorder %s26, 0
      %p110 = por %p108, %p109
      %p111 = scmp.ne.s32.totalorder %s99, %s100
      %p112 = scmp.eq.s32.totalorder %s27, 1
      %p113 = por %p111, %p112
      %p115 = scmp.ne.s32.totalorder %s100, %s114
      %p116 = scmp.eq.s32.totalorder %s27, 0
      %p117 = por %p115, %p116
      %s119 = sadd.s32 %s118, 1
      %p122 = scmp.eq.s32.totalorder %s21, 1
      %p123 = scmp.ne.s32.totalorder %s118, %s120
      %p124 = scmp.eq.s32.totalorder %s21, 0
      %p125 = por %p123, %p124
      %p126 = scmp.ne.s32.totalorder %s118, %s120
      %p127 = scmp.eq.s32.totalorder %s26, 1
      %p128 = por %p126, %p127
      %p129 = scmp.ne.s32.totalorder %s120, %s121
      %p130 = scmp.eq.s32.totalorder %s26, 0
      %p131 = por %p129, %p130
      %p132 = scmp.ne.s32.totalorder %s120, %s121
      %p133 = scmp.eq.s32.totalorder %s27, 1
      %p134 = por %p132, %p133
      %p136 = scmp.ne.s32.totalorder %s121, %s135
      %p137 = scmp.eq.s32.totalorder %s27, 0
      %p138 = por %p136, %p137
      %s140 = sadd.s32 %s139, 1
      %p143 = scmp.eq.s32.totalorder %s21, 1
      %p144 = scmp.ne.s32.totalorder %s139, %s141
      %p145 = scmp.eq.s32.totalorder %s21, 0
      %p146 = por %p144, %p145
      %p147 = scmp.ne.s32.totalorder %s139, %s141
      %p148 = scmp.eq.s32.totalorder %s26, 1
      %p149 = por %p147, %p148
      %p150 = scmp.ne.s32.totalorder %s141, %s142
      %p151 = scmp.eq.s32.totalorder %s26, 0
      %p152 = por %p150, %p151
      %p153 = scmp.ne.s32.totalorder %s141, %s142
      %p154 = scmp.eq.s32.totalorder %s27, 1
      %p155 = por %p153, %p154
      %p157 = scmp.ne.s32.totalorder %s142, %s156
      %p158 = scmp.eq.s32.totalorder %s27, 0
      %p159 = por %p157, %p158
      %s161 = sadd.s32 %s160, 1
      %p164 = scmp.eq.s32.totalorder %s21, 1
      %p165 = scmp.ne.s32.totalorder %s160, %s162
      %p166 = scmp.eq.s32.totalorder %s21, 0
      %p167 = por %p165, %p166
      %p168 = scmp.ne.s32.totalorder %s160, %s162
      %p169 = scmp.eq.s32.totalorder %s26, 1
      %p170 = por %p168, %p169
      %p171 = scmp.ne.s32.totalorder %s162, %s163
      %p172 = scmp.eq.s32.totalorder %s26, 0
      %p173 = por %p171, %p172
      %p174 = scmp.ne.s32.totalorder %s162, %s163
      %p175 = scmp.eq.s32.totalorder %s27, 1
      %p176 = por %p174, %p175
      %p178 = scmp.ne.s32.totalorder %s163, %s177
      %p179 = scmp.eq.s32.totalorder %s27, 0
      %p180 = por %p178, %p179
      %s181 = ssub.s32 %s21, %s28
      %p182 = scmp.eq.s32.totalorder %s181, 0
      %s184 = sadd.s32 %s183, 1
      %s185 = scalar_select %p182, %s183, %s184
      %p188 = pneg %p182
      %p189 = scmp.eq.s32.totalorder %s21, 1
      %p190 = por %p188, %p189
      %p191 = scmp.ne.s32.totalorder %s183, %s186
      %p192 = scmp.eq.s32.totalorder %s21, 0
      %p193 = por %p191, %p192
      %p194 = scmp.ne.s32.totalorder %s183, %s186
      %p195 = scmp.eq.s32.totalorder %s26, 1
      %p196 = por %p194, %p195
      %p197 = scmp.ne.s32.totalorder %s186, %s187
      %p198 = scmp.eq.s32.totalorder %s26, 0
      %p199 = por %p197, %p198
      %p200 = scmp.ne.s32.totalorder %s186, %s187
      %p201 = scmp.eq.s32.totalorder %s27, 1
      %p202 = por %p200, %p201
      %p204 = scmp.ne.s32.totalorder %s187, %s203
      %p205 = scmp.eq.s32.totalorder %s27, 0
      %p206 = por %p204, %p205
      %p207 = scmp.le.s32.totalorder 1, %s21
      %p208 = scmp.lt.s32.totalorder %s21, 3
      %p209 = pnand %p207, %p208
      %p210 = pneg %p209
      // Predicated region
      $region9: #{tpu_custom_call.1} parent=5 // pred_check
        _
      $region10: #{tpu_custom_call.1} parent=5 // pred_check_branch
        %212 = sbr.rel (%p209) target = $region12
      $region11: #{tpu_custom_call.1} parent=5 // pred_region
        %s213 = ssub.s32 %s21, 1
        // Predicated region
        $region13: #{tpu_custom_call.1} parent=11 // pred_check
          %p214 = pneg %p68
        $region14: #{tpu_custom_call.1} parent=11 // pred_check_branch
          %216 = sbr.rel (%p214) target = $region16
        $region15: #{tpu_custom_call.1} parent=11 // pred_region
          %s218 = ssub.s32 1024, 1024
          %219 = vsyncadd [#allocation6], %s218
          %s220 = sshll.u32 [#allocation5], 4
          %s221 = int_to_ptr.vmem [resolvable:$true] %s220
          %226 = dma.hbm_to_vmem [thread:$0]  %s1, 1024, %s221, [#allocation6], 64, 64, 4
        $region16: #{tpu_custom_call.1} parent=11 // pred_fallthru
          _
        // Predicated region
        $region17: #{tpu_custom_call.1} parent=11 // pred_check
          %p227 = pneg %p89
        $region18: #{tpu_custom_call.1} parent=11 // pred_check_branch
          %229 = sbr.rel (%p227) target = $region20
        $region19: #{tpu_custom_call.1} parent=11 // pred_region
          %s231 = ssub.s32 9216, 9216
          %232 = vsyncadd [#allocation6], %s231
          %s233 = sshll.u32 [#allocation7], 4
          %s234 = int_to_ptr.vmem [resolvable:$true] %s233
          %239 = dma.hbm_to_vmem [thread:$0]  %s2, 9216, %s234, [#allocation6], 64, 64, 4
        $region20: #{tpu_custom_call.1} parent=11 // pred_fallthru
          _
        // Predicated region
        $region21: #{tpu_custom_call.1} parent=11 // pred_check
          %p240 = pneg %p110
        $region22: #{tpu_custom_call.1} parent=11 // pred_check_branch
          %242 = sbr.rel (%p240) target = $region24
        $region23: #{tpu_custom_call.1} parent=11 // pred_region
          %s244 = ssub.s32 1024, 1024
          %245 = vsyncadd [#allocation9], %s244
          %s246 = sshll.u32 [#allocation8], 4
          %s247 = int_to_ptr.vmem [resolvable:$true] %s246
          %252 = dma.hbm_to_vmem [thread:$0]  %s3, 1024, %s247, [#allocation9], 64, 64, 4
        $region24: #{tpu_custom_call.1} parent=11 // pred_fallthru
          _
        // Predicated region
        $region25: #{tpu_custom_call.1} parent=11 // pred_check
          %p253 = pneg %p131
        $region26: #{tpu_custom_call.1} parent=11 // pred_check_branch
          %255 = sbr.rel (%p253) target = $region28
        $region27: #{tpu_custom_call.1} parent=11 // pred_region
          _
        $region28: #{tpu_custom_call.1} parent=11 // pred_fallthru
          _
        // Predicated region
        $region29: #{tpu_custom_call.1} parent=11 // pred_check
          %p256 = pneg %p152
        $region30: #{tpu_custom_call.1} parent=11 // pred_check_branch
          %258 = sbr.rel (%p256) target = $region32
        $region31: #{tpu_custom_call.1} parent=11 // pred_region
          _
        $region32: #{tpu_custom_call.1} parent=11 // pred_fallthru
          _
        // Predicated region
        $region33: #{tpu_custom_call.1} parent=11 // pred_check
          %p259 = pneg %p173
        $region34: #{tpu_custom_call.1} parent=11 // pred_check_branch
          %261 = sbr.rel (%p259) target = $region36
        $region35: #{tpu_custom_call.1} parent=11 // pred_region
          _
        $region36: #{tpu_custom_call.1} parent=11 // pred_fallthru
          _
      $region12: #{tpu_custom_call.1} parent=5 // pred_fallthru
        _
      %p262 = scmp.lt.s32.totalorder %s21, 2
      // Predicated region
      $region37: #{tpu_custom_call.1} parent=5 // pred_check
        %p263 = pneg %p262
      $region38: #{tpu_custom_call.1} parent=5 // pred_check_branch
        %265 = sbr.rel (%p263) target = $region40
      $region39: #{tpu_custom_call.1} parent=5 // pred_region
        // Predicated region
        $region41: #{tpu_custom_call.1} parent=39 // pred_check
          %p266 = pneg %p41
        $region42: #{tpu_custom_call.1} parent=39 // pred_check_branch
          %268 = sbr.rel (%p266) target = $region44
        $region43: #{tpu_custom_call.1} parent=39 // pred_region
          %s269 = sand.u32 %s31, 1
          %s270 = scalar_lea.sflag [#allocation3], %s269
          %s271 = sand.u32 %s31, 1
          %s272 = smul.addr %s271, 128
          %s273 = scalar_lea.vmem [#allocation2], %s272
          %s275 = ssub.s32 2048, 2048
          %276 = vsyncadd %s270, %s275
          %s277 = smul.addr %s21, 32
          %s278 = smul.addr %s277, 64
          %s279 = scalar_lea.hbm %s0, %s278
          %s280 = sshll.u32 %s273, 4
          %s281 = int_to_ptr.vmem [resolvable:$true] %s280
          %286 = dma.hbm_to_vmem [thread:$0]  %s279, 2048, %s281, %s270, 64, 64, 4
        $region44: #{tpu_custom_call.1} parent=39 // pred_fallthru
          _
      $region40: #{tpu_custom_call.1} parent=5 // pred_fallthru
        _
      %p287 = scmp.le.s32.totalorder 1, %s21
      %p288 = scmp.lt.s32.totalorder %s21, 3
      %p289 = pnand %p287, %p288
      %p290 = pneg %p289
      // Predicated region
      $region45: #{tpu_custom_call.1} parent=5 // pred_check
        _
      $region46: #{tpu_custom_call.1} parent=5 // pred_check_branch
        %292 = sbr.rel (%p289) target = $region48
      $region47: #{tpu_custom_call.1} parent=5 // pred_region
        %s293 = ssub.s32 %s21, 1
        %s294 = sand.u32 %s34, 1
        %s295 = scalar_lea.sflag [#allocation3], %s294
        %s296 = sand.u32 %s34, 1
        %s297 = smul.addr %s296, 128
        %s298 = scalar_lea.vmem [#allocation2], %s297
        // Predicated region
        $region49: #{tpu_custom_call.1} parent=47 // pred_check
          %p299 = pneg %p47
        $region50: #{tpu_custom_call.1} parent=47 // pred_check_branch
          %301 = sbr.rel (%p299) target = $region52
        $region51: #{tpu_custom_call.1} parent=47 // pred_region
          %302 = dma.done %s295, 2048
        $region52: #{tpu_custom_call.1} parent=47 // pred_fallthru
          _
        // Predicated region
        $region53: #{tpu_custom_call.1} parent=47 // pred_check
          %p303 = pneg %p68
        $region54: #{tpu_custom_call.1} parent=47 // pred_check_branch
          %305 = sbr.rel (%p303) target = $region56
        $region55: #{tpu_custom_call.1} parent=47 // pred_region
          %306 = dma.done [#allocation6], 1024
        $region56: #{tpu_custom_call.1} parent=47 // pred_fallthru
          _
        // Predicated region
        $region57: #{tpu_custom_call.1} parent=47 // pred_check
          %p307 = pneg %p89
        $region58: #{tpu_custom_call.1} parent=47 // pred_check_branch
          %309 = sbr.rel (%p307) target = $region60
        $region59: #{tpu_custom_call.1} parent=47 // pred_region
          %310 = dma.done [#allocation6], 9216
        $region60: #{tpu_custom_call.1} parent=47 // pred_fallthru
          _
        // Predicated region
        $region61: #{tpu_custom_call.1} parent=47 // pred_check
          %p311 = pneg %p110
        $region62: #{tpu_custom_call.1} parent=47 // pred_check_branch
          %313 = sbr.rel (%p311) target = $region64
        $region63: #{tpu_custom_call.1} parent=47 // pred_region
          %314 = dma.done [#allocation9], 1024
        $region64: #{tpu_custom_call.1} parent=47 // pred_fallthru
          _
        %s315 = sand.u32 %s34, 1
        %s316 = scalar_lea.sflag [#allocation3], %s315
        %s317 = sand.u32 %s34, 1
        %s318 = smul.addr %s317, 128
        %s319 = scalar_lea.vmem [#allocation2], %s318
        %p320 = pneg %p47
        %p321 = pneg %p44
        %p322 = pneg %p68
        %p323 = pneg %p65
        %p324 = pneg %p89
        %p325 = pneg %p86
        %p326 = pneg %p110
        %p327 = pneg %p107
        %p328 = pneg %p131
        %p329 = pneg %p128
        %p330 = pneg %p152
        %p331 = pneg %p149
        %p332 = pneg %p173
        %p333 = pneg %p170
        %p334 = pneg %p199
        %p335 = pneg %p196
        %s336 = sand.u32 %s186, 1
        %s337 = scalar_lea.sflag [#allocation4], %s336
        %s338 = sand.u32 %s186, 1
        %s339 = smul.addr %s338, 128
        %s340 = scalar_lea.vmem [#allocation10], %s339
        %v344 = vld [vmem:[%s298] sm:$0xf]
        %v345 = vld [vmem:[%s298 + $0x4] sm:$0xf]
        %v346 = vld [vmem:[%s298 + $0x8] sm:$0xf]
        %v347 = vld [vmem:[%s298 + $0xc] sm:$0xf]
        %v348 = vld [vmem:[%s298 + $0x10] sm:$0xf]
        %v349 = vld [vmem:[%s298 + $0x14] sm:$0xf]
        %v350 = vld [vmem:[%s298 + $0x18] sm:$0xf]
        %v351 = vld [vmem:[%s298 + $0x1c] sm:$0xf]
        %v352 = vld [vmem:[%s298 + $0x20] sm:$0xf]
        %v353 = vld [vmem:[%s298 + $0x24] sm:$0xf]
        %v354 = vld [vmem:[%s298 + $0x28] sm:$0xf]
        %v355 = vld [vmem:[%s298 + $0x2c] sm:$0xf]
        %v356 = vld [vmem:[%s298 + $0x30] sm:$0xf]
        %v357 = vld [vmem:[%s298 + $0x34] sm:$0xf]
        %v358 = vld [vmem:[%s298 + $0x38] sm:$0xf]
        %v359 = vld [vmem:[%s298 + $0x3c] sm:$0xf]
        %v360 = vld [vmem:[%s298 + $0x40] sm:$0xf]
        %v361 = vld [vmem:[%s298 + $0x44] sm:$0xf]
        %v362 = vld [vmem:[%s298 + $0x48] sm:$0xf]
        %v363 = vld [vmem:[%s298 + $0x4c] sm:$0xf]
        %v364 = vld [vmem:[%s298 + $0x50] sm:$0xf]
        %v365 = vld [vmem:[%s298 + $0x54] sm:$0xf]
        %v366 = vld [vmem:[%s298 + $0x58] sm:$0xf]
        %v367 = vld [vmem:[%s298 + $0x5c] sm:$0xf]
        %v368 = vld [vmem:[%s298 + $0x60] sm:$0xf]
        %v369 = vld [vmem:[%s298 + $0x64] sm:$0xf]
        %v370 = vld [vmem:[%s298 + $0x68] sm:$0xf]
        %v371 = vld [vmem:[%s298 + $0x6c] sm:$0xf]
        %v372 = vld [vmem:[%s298 + $0x70] sm:$0xf]
        %v373 = vld [vmem:[%s298 + $0x74] sm:$0xf]
        %v374 = vld [vmem:[%s298 + $0x78] sm:$0xf]
        %v375 = vld [vmem:[%s298 + $0x7c] sm:$0xf]
        %v376 = vld [vmem:[#allocation5] sm:$0xf]
        %v377 = vld [vmem:[#allocation5 + $0x4] sm:$0xf]
        %v378 = vld [vmem:[#allocation5 + $0x8] sm:$0xf]
        %v379 = vld [vmem:[#allocation5 + $0xc] sm:$0xf]
        %v380 = vld [vmem:[#allocation5 + $0x10] sm:$0xf]
        %v381 = vld [vmem:[#allocation5 + $0x14] sm:$0xf]
        %v382 = vld [vmem:[#allocation5 + $0x18] sm:$0xf]
        %v383 = vld [vmem:[#allocation5 + $0x1c] sm:$0xf]
        %v384 = vld [vmem:[#allocation5 + $0x20] sm:$0xf]
        %v385 = vld [vmem:[#allocation5 + $0x24] sm:$0xf]
        %v386 = vld [vmem:[#allocation5 + $0x28] sm:$0xf]
        %v387 = vld [vmem:[#allocation5 + $0x2c] sm:$0xf]
        %v388 = vld [vmem:[#allocation5 + $0x30] sm:$0xf]
        %v389 = vld [vmem:[#allocation5 + $0x34] sm:$0xf]
        %v390 = vld [vmem:[#allocation5 + $0x38] sm:$0xf]
        %v391 = vld [vmem:[#allocation5 + $0x3c] sm:$0xf]
        %v392 = vld [vmem:[%s4] sm:$0x1]
        %v394 = vlaneseq
        %v395 = vshrl.u32 %v394, 7
        %v396 = vsub.s32 0, %v395
        %v397 = vrot.slane %v392, %v396
        %v431 = vunpack.c.l.b16 %v344
        %v432 = vunpack.c.l.b16 %v345
        %v433 = vunpack.c.l.b16 %v346
        %v434 = vunpack.c.l.b16 %v347
        %v435 = vunpack.c.l.b16 %v348
        %v436 = vunpack.c.l.b16 %v349
        %v437 = vunpack.c.l.b16 %v350
        %v438 = vunpack.c.l.b16 %v351
        %v439 = vunpack.c.l.b16 %v352
        %v440 = vunpack.c.l.b16 %v353
        %v441 = vunpack.c.l.b16 %v354
        %v442 = vunpack.c.l.b16 %v355
        %v443 = vunpack.c.l.b16 %v356
        %v444 = vunpack.c.l.b16 %v357
        %v445 = vunpack.c.l.b16 %v358
        %v446 = vunpack.c.l.b16 %v359
        %v447 = vunpack.c.l.b16 %v360
        %v448 = vunpack.c.l.b16 %v361
        %v449 = vunpack.c.l.b16 %v362
        %v450 = vunpack.c.l.b16 %v363
        %v451 = vunpack.c.l.b16 %v364
        %v452 = vunpack.c.l.b16 %v365
        %v453 = vunpack.c.l.b16 %v366
        %v454 = vunpack.c.l.b16 %v367
        %v455 = vunpack.c.l.b16 %v368
        %v456 = vunpack.c.l.b16 %v369
        %v457 = vunpack.c.l.b16 %v370
        %v458 = vunpack.c.l.b16 %v371
        %v459 = vunpack.c.l.b16 %v372
        %v460 = vunpack.c.l.b16 %v373
        %v461 = vunpack.c.l.b16 %v374
        %v462 = vunpack.c.l.b16 %v375
        %v463 = vpack.c.b16 %v432, %v431
        %v464 = vpack.c.b16 %v434, %v433
        %v465 = vpack.c.b16 %v436, %v435
        %v466 = vpack.c.b16 %v438, %v437
        %v467 = vpack.c.b16 %v440, %v439
        %v468 = vpack.c.b16 %v442, %v441
        %v469 = vpack.c.b16 %v444, %v443
        %v470 = vpack.c.b16 %v446, %v445
        %v471 = vpack.c.b16 %v448, %v447
        %v472 = vpack.c.b16 %v450, %v449
        %v473 = vpack.c.b16 %v452, %v451
        %v474 = vpack.c.b16 %v454, %v453
        %v475 = vpack.c.b16 %v456, %v455
        %v476 = vpack.c.b16 %v458, %v457
        %v477 = vpack.c.b16 %v460, %v459
        %v478 = vpack.c.b16 %v462, %v461
        %v511 = vunpack.c.l.b16 %v376
        %v512 = vunpack.c.l.b16 %v377
        %v513 = vunpack.c.l.b16 %v378
        %v514 = vunpack.c.l.b16 %v379
        %v515 = vunpack.c.l.b16 %v380
        %v516 = vunpack.c.l.b16 %v381
        %v517 = vunpack.c.l.b16 %v382
        %v518 = vunpack.c.l.b16 %v383
        %v519 = vunpack.c.l.b16 %v384
        %v520 = vunpack.c.l.b16 %v385
        %v521 = vunpack.c.l.b16 %v386
        %v522 = vunpack.c.l.b16 %v387
        %v523 = vunpack.c.l.b16 %v388
        %v524 = vunpack.c.l.b16 %v389
        %v525 = vunpack.c.l.b16 %v390
        %v526 = vunpack.c.l.b16 %v391
        %v527 = vpack.c.b16 %v512, %v511
        %v528 = vpack.c.b16 %v514, %v513
        %v529 = vpack.c.b16 %v516, %v515
        %v530 = vpack.c.b16 %v518, %v517
        %v531 = vpack.c.b16 %v520, %v519
        %v532 = vpack.c.b16 %v522, %v521
        %v533 = vpack.c.b16 %v524, %v523
        %v534 = vpack.c.b16 %v526, %v525
        %543 = vmatprep.subr.bf16.mxu0 0
        %544 = vmatpush1.bf16.msra.mxu0 %v534
        %545 = vmatprep.subr.bf16.mxu0 0
        %546 = vmatpush1.bf16.msra.mxu0 %v533
        %547 = vmatprep.subr.bf16.mxu0 0
        %548 = vmatpush1.bf16.msra.mxu0 %v532
        %549 = vmatprep.subr.bf16.mxu0 0
        %550 = vmatpush1.bf16.msra.mxu0 %v531
        %551 = vmatprep.subr.bf16.mxu0 0
        %552 = vmatpush1.bf16.msra.mxu0 %v530
        %553 = vmatprep.subr.bf16.mxu0 0
        %554 = vmatpush1.bf16.msra.mxu0 %v529
        %555 = vmatprep.subr.bf16.mxu0 0
        %556 = vmatpush1.bf16.msra.mxu0 %v528
        %557 = vmatprep.subr.bf16.mxu0 0
        %558 = vmatpush1.bf16.msra.mxu0 %v527
        %559 = vmatprep.subr.bf16.mxu0 0
        %560 = vmatpush2.bf16.msra.mxu0 0
        %561 = vmatprep.subr.bf16.mxu0 0
        %562 = vmatpush2.bf16.msra.mxu0 0
        %563 = vmatprep.subr.bf16.mxu0 0
        %564 = vmatpush2.bf16.msra.mxu0 0
        %565 = vmatprep.subr.bf16.mxu0 0
        %566 = vmatpush2.bf16.msra.mxu0 0
        %567 = vmatprep.subr.bf16.mxu0 0
        %568 = vmatpush2.bf16.msra.mxu0 0
        %569 = vmatprep.subr.bf16.mxu0 0
        %570 = vmatpush2.bf16.msra.mxu0 0
        %571 = vmatprep.subr.bf16.mxu0 0
        %572 = vmatpush2.bf16.msra.mxu0 0
        %573 = vmatprep.subr.bf16.mxu0 0
        %574 = vmatpush2.bf16.msra.mxu0 0
        %575 = vmatprep.mubr.bf16.mxu0 0
        %576 = vmatmul.mubr.bf16.gmra.mxu0 %v463
        %v577 = vpop.f32.mrf.mxu0
        %v578 = vadd.f32 %v397, %v577
        %v579 = vpop.f32.mrf.mxu0
        %v580 = vpop.f32.mrf.mxu0
        %v581 = vadd.f32 %v397, %v580
        %v582 = vpop.f32.mrf.mxu0
        %583 = vmatprep.mubr.bf16.mxu0 0
        %584 = vmatmul.mubr.bf16.gmra.mxu0 %v464
        %v585 = vpop.f32.mrf.mxu0
        %v586 = vadd.f32 %v397, %v585
        %v587 = vpop.f32.mrf.mxu0
        %v588 = vpop.f32.mrf.mxu0
        %v589 = vadd.f32 %v397, %v588
        %v590 = vpop.f32.mrf.mxu0
        %591 = vmatprep.mubr.bf16.mxu0 0
        %592 = vmatmul.mubr.bf16.gmra.mxu0 %v465
        %v593 = vpop.f32.mrf.mxu0
        %v594 = vadd.f32 %v397, %v593
        %v595 = vpop.f32.mrf.mxu0
        %v596 = vpop.f32.mrf.mxu0
        %v597 = vadd.f32 %v397, %v596
        %v598 = vpop.f32.mrf.mxu0
        %599 = vmatprep.mubr.bf16.mxu0 0
        %600 = vmatmul.mubr.bf16.gmra.mxu0 %v466
        %v601 = vpop.f32.mrf.mxu0
        %v602 = vadd.f32 %v397, %v601
        %v603 = vpop.f32.mrf.mxu0
        %v604 = vpop.f32.mrf.mxu0
        %v605 = vadd.f32 %v397, %v604
        %v606 = vpop.f32.mrf.mxu0
        %607 = vmatprep.mubr.bf16.mxu0 0
        %608 = vmatmul.mubr.bf16.gmra.mxu0 %v467
        %v609 = vpop.f32.mrf.mxu0
        %v610 = vadd.f32 %v397, %v609
        %v611 = vpop.f32.mrf.mxu0
        %v612 = vpop.f32.mrf.mxu0
        %v613 = vadd.f32 %v397, %v612
        %v614 = vpop.f32.mrf.mxu0
        %615 = vmatprep.mubr.bf16.mxu0 0
        %616 = vmatmul.mubr.bf16.gmra.mxu0 %v468
        %v617 = vpop.f32.mrf.mxu0
        %v618 = vadd.f32 %v397, %v617
        %v619 = vpop.f32.mrf.mxu0
        %v620 = vpop.f32.mrf.mxu0
        %v621 = vadd.f32 %v397, %v620
        %v622 = vpop.f32.mrf.mxu0
        %623 = vmatprep.mubr.bf16.mxu0 0
        %624 = vmatmul.mubr.bf16.gmra.mxu0 %v469
        %v625 = vpop.f32.mrf.mxu0
        %v626 = vadd.f32 %v397, %v625
        %v627 = vpop.f32.mrf.mxu0
        %v628 = vpop.f32.mrf.mxu0
        %v629 = vadd.f32 %v397, %v628
        %v630 = vpop.f32.mrf.mxu0
        %631 = vmatprep.mubr.bf16.mxu0 0
        %632 = vmatmul.mubr.bf16.gmra.mxu0 %v470
        %v633 = vpop.f32.mrf.mxu0
        %v634 = vadd.f32 %v397, %v633
        %v635 = vpop.f32.mrf.mxu0
        %v636 = vpop.f32.mrf.mxu0
        %v637 = vadd.f32 %v397, %v636
        %v638 = vpop.f32.mrf.mxu0
        %639 = vmatprep.mubr.bf16.mxu0 0
        %640 = vmatmul.mubr.bf16.gmra.mxu0 %v471
        %v641 = vpop.f32.mrf.mxu0
        %v642 = vadd.f32 %v397, %v641
        %v643 = vpop.f32.mrf.mxu0
        %v644 = vpop.f32.mrf.mxu0
        %v645 = vadd.f32 %v397, %v644
        %v646 = vpop.f32.mrf.mxu0
        %647 = vmatprep.mubr.bf16.mxu0 0
        %648 = vmatmul.mubr.bf16.gmra.mxu0 %v472
        %v649 = vpop.f32.mrf.mxu0
        %v650 = vadd.f32 %v397, %v649
        %v651 = vpop.f32.mrf.mxu0
        %v652 = vpop.f32.mrf.mxu0
        %v653 = vadd.f32 %v397, %v652
        %v654 = vpop.f32.mrf.mxu0
        %655 = vmatprep.mubr.bf16.mxu0 0
        %656 = vmatmul.mubr.bf16.gmra.mxu0 %v473
        %v657 = vpop.f32.mrf.mxu0
        %v658 = vadd.f32 %v397, %v657
        %v659 = vpop.f32.mrf.mxu0
        %v660 = vpop.f32.mrf.mxu0
        %v661 = vadd.f32 %v397, %v660
        %v662 = vpop.f32.mrf.mxu0
        %663 = vmatprep.mubr.bf16.mxu0 0
        %664 = vmatmul.mubr.bf16.gmra.mxu0 %v474
        %v665 = vpop.f32.mrf.mxu0
        %v666 = vadd.f32 %v397, %v665
        %v667 = vpop.f32.mrf.mxu0
        %v668 = vpop.f32.mrf.mxu0
        %v669 = vadd.f32 %v397, %v668
        %v670 = vpop.f32.mrf.mxu0
        %671 = vmatprep.mubr.bf16.mxu0 0
        %672 = vmatmul.mubr.bf16.gmra.mxu0 %v475
        %v673 = vpop.f32.mrf.mxu0
        %v674 = vadd.f32 %v397, %v673
        %v675 = vpop.f32.mrf.mxu0
        %v676 = vpop.f32.mrf.mxu0
        %v677 = vadd.f32 %v397, %v676
        %v678 = vpop.f32.mrf.mxu0
        %679 = vmatprep.mubr.bf16.mxu0 0
        %680 = vmatmul.mubr.bf16.gmra.mxu0 %v476
        %v681 = vpop.f32.mrf.mxu0
        %v682 = vadd.f32 %v397, %v681
        %v683 = vpop.f32.mrf.mxu0
        %v684 = vpop.f32.mrf.mxu0
        %v685 = vadd.f32 %v397, %v684
        %v686 = vpop.f32.mrf.mxu0
        %687 = vmatprep.mubr.bf16.mxu0 0
        %688 = vmatmul.mubr.bf16.gmra.mxu0 %v477
        %v689 = vpop.f32.mrf.mxu0
        %v690 = vadd.f32 %v397, %v689
        %v691 = vpop.f32.mrf.mxu0
        %v692 = vpop.f32.mrf.mxu0
        %v693 = vadd.f32 %v397, %v692
        %v694 = vpop.f32.mrf.mxu0
        %695 = vmatprep.mubr.bf16.mxu0 0
        %696 = vmatmul.mubr.bf16.gmra.mxu0 %v478
        %v697 = vpop.f32.mrf.mxu0
        %v698 = vadd.f32 %v397, %v697
        %v699 = vpop.f32.mrf.mxu0
        %v700 = vpop.f32.mrf.mxu0
        %v701 = vadd.f32 %v397, %v700
        %v702 = vpop.f32.mrf.mxu0
        %703 = vdwg.mxu0
        %v704 = vmax.f32 %v578, 0.0
        %v705 = vmax.f32 %v581, 0.0
        %v706 = vmax.f32 %v586, 0.0
        %v707 = vmax.f32 %v589, 0.0
        %v708 = vmax.f32 %v594, 0.0
        %v709 = vmax.f32 %v597, 0.0
        %v710 = vmax.f32 %v602, 0.0
        %v711 = vmax.f32 %v605, 0.0
        %v712 = vmax.f32 %v610, 0.0
        %v713 = vmax.f32 %v613, 0.0
        %v714 = vmax.f32 %v618, 0.0
        %v715 = vmax.f32 %v621, 0.0
        %v716 = vmax.f32 %v626, 0.0
        %v717 = vmax.f32 %v629, 0.0
        %v718 = vmax.f32 %v634, 0.0
        %v719 = vmax.f32 %v637, 0.0
        %v720 = vmax.f32 %v642, 0.0
        %v721 = vmax.f32 %v645, 0.0
        %v722 = vmax.f32 %v650, 0.0
        %v723 = vmax.f32 %v653, 0.0
        %v724 = vmax.f32 %v658, 0.0
        %v725 = vmax.f32 %v661, 0.0
        %v726 = vmax.f32 %v666, 0.0
        %v727 = vmax.f32 %v669, 0.0
        %v728 = vmax.f32 %v674, 0.0
        %v729 = vmax.f32 %v677, 0.0
        %v730 = vmax.f32 %v682, 0.0
        %v731 = vmax.f32 %v685, 0.0
        %v732 = vmax.f32 %v690, 0.0
        %v733 = vmax.f32 %v693, 0.0
        %v734 = vmax.f32 %v698, 0.0
        %v735 = vmax.f32 %v701, 0.0
        %v736 = vpack.c.bf16 %v705, %v704
        %v737 = vpack.c.bf16 %v707, %v706
        %v738 = vpack.c.bf16 %v709, %v708
        %v739 = vpack.c.bf16 %v711, %v710
        %v740 = vpack.c.bf16 %v713, %v712
        %v741 = vpack.c.bf16 %v715, %v714
        %v742 = vpack.c.bf16 %v717, %v716
        %v743 = vpack.c.bf16 %v719, %v718
        %v744 = vpack.c.bf16 %v721, %v720
        %v745 = vpack.c.bf16 %v723, %v722
        %v746 = vpack.c.bf16 %v725, %v724
        %v747 = vpack.c.bf16 %v727, %v726
        %v748 = vpack.c.bf16 %v729, %v728
        %v749 = vpack.c.bf16 %v731, %v730
        %v750 = vpack.c.bf16 %v733, %v732
        %v751 = vpack.c.bf16 %v735, %v734
        %v752 = vlaneseq
        %v753 = vshrl.u32 %v752, 7
        %v754 = vadd.s32 %v753, 8
        %v755 = vadd.s32 %v753, 16
        %v756 = vadd.s32 %v753, 24
        %v757 = vadd.s32 %v753, 32
        %v758 = vadd.s32 %v753, 40
        %v759 = vadd.s32 %v753, 48
        %v760 = vadd.s32 %v753, 56
        %v761 = vadd.s32 %v753, 64
        %v762 = vadd.s32 %v753, 72
        %v763 = vadd.s32 %v753, 80
        %v764 = vadd.s32 %v753, 88
        %v765 = vadd.s32 %v753, 96
        %v766 = vadd.s32 %v753, 104
        %v767 = vadd.s32 %v753, 112
        %v768 = vadd.s32 %v753, 120
        %v769 = vadd.s32 %v753, 128
        %v770 = vadd.s32 %v753, 136
        %v771 = vadd.s32 %v753, 144
        %v772 = vadd.s32 %v753, 152
        %v773 = vadd.s32 %v753, 160
        %v774 = vadd.s32 %v753, 168
        %v775 = vadd.s32 %v753, 176
        %v776 = vadd.s32 %v753, 184
        %v777 = vadd.s32 %v753, 192
        %v778 = vadd.s32 %v753, 200
        %v779 = vadd.s32 %v753, 208
        %v780 = vadd.s32 %v753, 216
        %v781 = vadd.s32 %v753, 224
        %v782 = vadd.s32 %v753, 232
        %v783 = vadd.s32 %v753, 240
        %v784 = vadd.s32 %v753, 248
        %v785 = vadd.s32 %v753, 256
        %v786 = vadd.s32 %v753, 264
        %v787 = vadd.s32 %v753, 272
        %v788 = vadd.s32 %v753, 280
        %vm789 = vcmp.lt.s32.totalorder %v753, 0
        %v790 = vsub.s32 0, %v753
        %v791 = vsel %vm789, %v790, %v753
        %v792 = vshrl.u32 %v791, 4
        %v793 = vand.u32 %v791, 15
        %v794 = vsub.s32 0, %v793
        %v795 = vsel %vm789, %v794, %v793
        %vm796 = vcmp.lt.s32.totalorder %v754, 0
        %v797 = vsub.s32 0, %v754
        %v798 = vsel %vm796, %v797, %v754
        %v799 = vshrl.u32 %v798, 4
        %v800 = vand.u32 %v798, 15
        %v801 = vsub.s32 0, %v800
        %v802 = vsel %vm796, %v801, %v800
        %vm803 = vcmp.lt.s32.totalorder %v755, 0
        %v804 = vsub.s32 0, %v755
        %v805 = vsel %vm803, %v804, %v755
        %v806 = vshrl.u32 %v805, 4
        %v807 = vand.u32 %v805, 15
        %v808 = vsub.s32 0, %v807
        %v809 = vsel %vm803, %v808, %v807
        %vm810 = vcmp.lt.s32.totalorder %v756, 0
        %v811 = vsub.s32 0, %v756
        %v812 = vsel %vm810, %v811, %v756
        %v813 = vshrl.u32 %v812, 4
        %v814 = vand.u32 %v812, 15
        %v815 = vsub.s32 0, %v814
        %v816 = vsel %vm810, %v815, %v814
        %vm817 = vcmp.lt.s32.totalorder %v757, 0
        %v818 = vsub.s32 0, %v757
        %v819 = vsel %vm817, %v818, %v757
        %v820 = vshrl.u32 %v819, 4
        %v821 = vand.u32 %v819, 15
        %v822 = vsub.s32 0, %v821
        %v823 = vsel %vm817, %v822, %v821
        %vm824 = vcmp.lt.s32.totalorder %v758, 0
        %v825 = vsub.s32 0, %v758
        %v826 = vsel %vm824, %v825, %v758
        %v827 = vshrl.u32 %v826, 4
        %v828 = vand.u32 %v826, 15
        %v829 = vsub.s32 0, %v828
        %v830 = vsel %vm824, %v829, %v828
        %vm831 = vcmp.lt.s32.totalorder %v759, 0
        %v832 = vsub.s32 0, %v759
        %v833 = vsel %vm831, %v832, %v759
        %v834 = vshrl.u32 %v833, 4
        %v835 = vand.u32 %v833, 15
        %v836 = vsub.s32 0, %v835
        %v837 = vsel %vm831, %v836, %v835
        %vm838 = vcmp.lt.s32.totalorder %v760, 0
        %v839 = vsub.s32 0, %v760
        %v840 = vsel %vm838, %v839, %v760
        %v841 = vshrl.u32 %v840, 4
        %v842 = vand.u32 %v840, 15
        %v843 = vsub.s32 0, %v842
        %v844 = vsel %vm838, %v843, %v842
        %vm845 = vcmp.lt.s32.totalorder %v761, 0
        %v846 = vsub.s32 0, %v761
        %v847 = vsel %vm845, %v846, %v761
        %v848 = vshrl.u32 %v847, 4
        %v849 = vand.u32 %v847, 15
        %v850 = vsub.s32 0, %v849
        %v851 = vsel %vm845, %v850, %v849
        %vm852 = vcmp.lt.s32.totalorder %v762, 0
        %v853 = vsub.s32 0, %v762
        %v854 = vsel %vm852, %v853, %v762
        %v855 = vshrl.u32 %v854, 4
        %v856 = vand.u32 %v854, 15
        %v857 = vsub.s32 0, %v856
        %v858 = vsel %vm852, %v857, %v856
        %vm859 = vcmp.lt.s32.totalorder %v763, 0
        %v860 = vsub.s32 0, %v763
        %v861 = vsel %vm859, %v860, %v763
        %v862 = vshrl.u32 %v861, 4
        %v863 = vand.u32 %v861, 15
        %v864 = vsub.s32 0, %v863
        %v865 = vsel %vm859, %v864, %v863
        %vm866 = vcmp.lt.s32.totalorder %v764, 0
        %v867 = vsub.s32 0, %v764
        %v868 = vsel %vm866, %v867, %v764
        %v869 = vshrl.u32 %v868, 4
        %v870 = vand.u32 %v868, 15
        %v871 = vsub.s32 0, %v870
        %v872 = vsel %vm866, %v871, %v870
        %vm873 = vcmp.lt.s32.totalorder %v765, 0
        %v874 = vsub.s32 0, %v765
        %v875 = vsel %vm873, %v874, %v765
        %v876 = vshrl.u32 %v875, 4
        %v877 = vand.u32 %v875, 15
        %v878 = vsub.s32 0, %v877
        %v879 = vsel %vm873, %v878, %v877
        %vm880 = vcmp.lt.s32.totalorder %v766, 0
        %v881 = vsub.s32 0, %v766
        %v882 = vsel %vm880, %v881, %v766
        %v883 = vshrl.u32 %v882, 4
        %v884 = vand.u32 %v882, 15
        %v885 = vsub.s32 0, %v884
        %v886 = vsel %vm880, %v885, %v884
        %vm887 = vcmp.lt.s32.totalorder %v767, 0
        %v888 = vsub.s32 0, %v767
        %v889 = vsel %vm887, %v888, %v767
        %v890 = vshrl.u32 %v889, 4
        %v891 = vand.u32 %v889, 15
        %v892 = vsub.s32 0, %v891
        %v893 = vsel %vm887, %v892, %v891
        %vm894 = vcmp.lt.s32.totalorder %v768, 0
        %v895 = vsub.s32 0, %v768
        %v896 = vsel %vm894, %v895, %v768
        %v897 = vshrl.u32 %v896, 4
        %v898 = vand.u32 %v896, 15
        %v899 = vsub.s32 0, %v898
        %v900 = vsel %vm894, %v899, %v898
        %vm901 = vcmp.lt.s32.totalorder %v769, 0
        %v902 = vsub.s32 0, %v769
        %v903 = vsel %vm901, %v902, %v769
        %v904 = vshrl.u32 %v903, 4
        %v905 = vand.u32 %v903, 15
        %v906 = vsub.s32 0, %v905
        %v907 = vsel %vm901, %v906, %v905
        %vm908 = vcmp.lt.s32.totalorder %v770, 0
        %v909 = vsub.s32 0, %v770
        %v910 = vsel %vm908, %v909, %v770
        %v911 = vshrl.u32 %v910, 4
        %v912 = vand.u32 %v910, 15
        %v913 = vsub.s32 0, %v912
        %v914 = vsel %vm908, %v913, %v912
        %vm915 = vcmp.lt.s32.totalorder %v771, 0
        %v916 = vsub.s32 0, %v771
        %v917 = vsel %vm915, %v916, %v771
        %v918 = vshrl.u32 %v917, 4
        %v919 = vand.u32 %v917, 15
        %v920 = vsub.s32 0, %v919
        %v921 = vsel %vm915, %v920, %v919
        %vm922 = vcmp.lt.s32.totalorder %v772, 0
        %v923 = vsub.s32 0, %v772
        %v924 = vsel %vm922, %v923, %v772
        %v925 = vshrl.u32 %v924, 4
        %v926 = vand.u32 %v924, 15
        %v927 = vsub.s32 0, %v926
        %v928 = vsel %vm922, %v927, %v926
        %vm929 = vcmp.lt.s32.totalorder %v773, 0
        %v930 = vsub.s32 0, %v773
        %v931 = vsel %vm929, %v930, %v773
        %v932 = vshrl.u32 %v931, 4
        %v933 = vand.u32 %v931, 15
        %v934 = vsub.s32 0, %v933
        %v935 = vsel %vm929, %v934, %v933
        %vm936 = vcmp.lt.s32.totalorder %v774, 0
        %v937 = vsub.s32 0, %v774
        %v938 = vsel %vm936, %v937, %v774
        %v939 = vshrl.u32 %v938, 4
        %v940 = vand.u32 %v938, 15
        %v941 = vsub.s32 0, %v940
        %v942 = vsel %vm936, %v941, %v940
        %vm943 = vcmp.lt.s32.totalorder %v775, 0
        %v944 = vsub.s32 0, %v775
        %v945 = vsel %vm943, %v944, %v775
        %v946 = vshrl.u32 %v945, 4
        %v947 = vand.u32 %v945, 15
        %v948 = vsub.s32 0, %v947
        %v949 = vsel %vm943, %v948, %v947
        %vm950 = vcmp.lt.s32.totalorder %v776, 0
        %v951 = vsub.s32 0, %v776
        %v952 = vsel %vm950, %v951, %v776
        %v953 = vshrl.u32 %v952, 4
        %v954 = vand.u32 %v952, 15
        %v955 = vsub.s32 0, %v954
        %v956 = vsel %vm950, %v955, %v954
        %vm957 = vcmp.lt.s32.totalorder %v777, 0
        %v958 = vsub.s32 0, %v777
        %v959 = vsel %vm957, %v958, %v777
        %v960 = vshrl.u32 %v959, 4
        %v961 = vand.u32 %v959, 15
        %v962 = vsub.s32 0, %v961
        %v963 = vsel %vm957, %v962, %v961
        %vm964 = vcmp.lt.s32.totalorder %v778, 0
        %v965 = vsub.s32 0, %v778
        %v966 = vsel %vm964, %v965, %v778
        %v967 = vshrl.u32 %v966, 4
        %v968 = vand.u32 %v966, 15
        %v969 = vsub.s32 0, %v968
        %v970 = vsel %vm964, %v969, %v968
        %vm971 = vcmp.lt.s32.totalorder %v779, 0
        %v972 = vsub.s32 0, %v779
        %v973 = vsel %vm971, %v972, %v779
        %v974 = vshrl.u32 %v973, 4
        %v975 = vand.u32 %v973, 15
        %v976 = vsub.s32 0, %v975
        %v977 = vsel %vm971, %v976, %v975
        %vm978 = vcmp.lt.s32.totalorder %v780, 0
        %v979 = vsub.s32 0, %v780
        %v980 = vsel %vm978, %v979, %v780
        %v981 = vshrl.u32 %v980, 4
        %v982 = vand.u32 %v980, 15
        %v983 = vsub.s32 0, %v982
        %v984 = vsel %vm978, %v983, %v982
        %vm985 = vcmp.lt.s32.totalorder %v781, 0
        %v986 = vsub.s32 0, %v781
        %v987 = vsel %vm985, %v986, %v781
        %v988 = vshrl.u32 %v987, 4
        %v989 = vand.u32 %v987, 15
        %v990 = vsub.s32 0, %v989
        %v991 = vsel %vm985, %v990, %v989
        %vm992 = vcmp.lt.s32.totalorder %v782, 0
        %v993 = vsub.s32 0, %v782
        %v994 = vsel %vm992, %v993, %v782
        %v995 = vshrl.u32 %v994, 4
        %v996 = vand.u32 %v994, 15
        %v997 = vsub.s32 0, %v996
        %v998 = vsel %vm992, %v997, %v996
        %vm999 = vcmp.lt.s32.totalorder %v783, 0
        %v1000 = vsub.s32 0, %v783
        %v1001 = vsel %vm999, %v1000, %v783
        %v1002 = vshrl.u32 %v1001, 4
        %v1003 = vand.u32 %v1001, 15
        %v1004 = vsub.s32 0, %v1003
        %v1005 = vsel %vm999, %v1004, %v1003
        %vm1006 = vcmp.lt.s32.totalorder %v784, 0
        %v1007 = vsub.s32 0, %v784
        %v1008 = vsel %vm1006, %v1007, %v784
        %v1009 = vshrl.u32 %v1008, 4
        %v1010 = vand.u32 %v1008, 15
        %v1011 = vsub.s32 0, %v1010
        %v1012 = vsel %vm1006, %v1011, %v1010
        %vm1013 = vcmp.lt.s32.totalorder %v785, 0
        %v1014 = vsub.s32 0, %v785
        %v1015 = vsel %vm1013, %v1014, %v785
        %v1016 = vshrl.u32 %v1015, 4
        %v1017 = vand.u32 %v1015, 15
        %v1018 = vsub.s32 0, %v1017
        %v1019 = vsel %vm1013, %v1018, %v1017
        %vm1020 = vcmp.lt.s32.totalorder %v786, 0
        %v1021 = vsub.s32 0, %v786
        %v1022 = vsel %vm1020, %v1021, %v786
        %v1023 = vshrl.u32 %v1022, 4
        %v1024 = vand.u32 %v1022, 15
        %v1025 = vsub.s32 0, %v1024
        %v1026 = vsel %vm1020, %v1025, %v1024
        %vm1027 = vcmp.lt.s32.totalorder %v787, 0
        %v1028 = vsub.s32 0, %v787
        %v1029 = vsel %vm1027, %v1028, %v787
        %v1030 = vshrl.u32 %v1029, 4
        %v1031 = vand.u32 %v1029, 15
        %v1032 = vsub.s32 0, %v1031
        %v1033 = vsel %vm1027, %v1032, %v1031
        %vm1034 = vcmp.lt.s32.totalorder %v788, 0
        %v1035 = vsub.s32 0, %v788
        %v1036 = vsel %vm1034, %v1035, %v788
        %v1037 = vshrl.u32 %v1036, 4
        %v1038 = vand.u32 %v1036, 15
        %v1039 = vsub.s32 0, %v1038
        %v1040 = vsel %vm1034, %v1039, %v1038
        %vm1041 = vcmp.ne.s32.totalorder %v795, 0
        %vm1042 = vcmp.ne.s32.totalorder %v802, 0
        %vm1043 = vcmp.ne.s32.totalorder %v809, 0
        %vm1044 = vcmp.ne.s32.totalorder %v816, 0
        %vm1045 = vcmp.ne.s32.totalorder %v823, 0
        %vm1046 = vcmp.ne.s32.totalorder %v830, 0
        %vm1047 = vcmp.ne.s32.totalorder %v837, 0
        %vm1048 = vcmp.ne.s32.totalorder %v844, 0
        %vm1049 = vcmp.ne.s32.totalorder %v851, 0
        %vm1050 = vcmp.ne.s32.totalorder %v858, 0
        %vm1051 = vcmp.ne.s32.totalorder %v865, 0
        %vm1052 = vcmp.ne.s32.totalorder %v872, 0
        %vm1053 = vcmp.ne.s32.totalorder %v879, 0
        %vm1054 = vcmp.ne.s32.totalorder %v886, 0
        %vm1055 = vcmp.ne.s32.totalorder %v893, 0
        %vm1056 = vcmp.ne.s32.totalorder %v900, 0
        %vm1057 = vcmp.ne.s32.totalorder %v907, 0
        %vm1058 = vcmp.ne.s32.totalorder %v914, 0
        %vm1059 = vcmp.ne.s32.totalorder %v921, 0
        %vm1060 = vcmp.ne.s32.totalorder %v928, 0
        %vm1061 = vcmp.ne.s32.totalorder %v935, 0
        %vm1062 = vcmp.ne.s32.totalorder %v942, 0
        %vm1063 = vcmp.ne.s32.totalorder %v949, 0
        %vm1064 = vcmp.ne.s32.totalorder %v956, 0
        %vm1065 = vcmp.ne.s32.totalorder %v963, 0
        %vm1066 = vcmp.ne.s32.totalorder %v970, 0
        %vm1067 = vcmp.ne.s32.totalorder %v977, 0
        %vm1068 = vcmp.ne.s32.totalorder %v984, 0
        %vm1069 = vcmp.ne.s32.totalorder %v991, 0
        %vm1070 = vcmp.ne.s32.totalorder %v998, 0
        %vm1071 = vcmp.ne.s32.totalorder %v1005, 0
        %vm1072 = vcmp.ne.s32.totalorder %v1012, 0
        %vm1073 = vcmp.ne.s32.totalorder %v1019, 0
        %vm1074 = vcmp.ne.s32.totalorder %v1026, 0
        %vm1075 = vcmp.ne.s32.totalorder %v1033, 0
        %vm1076 = vcmp.ne.s32.totalorder %v1040, 0
        %vm1077 = vcmp.lt.s32.totalorder %v795, 0
        %vm1078 = vcmp.lt.s32.totalorder %v802, 0
        %vm1079 = vcmp.lt.s32.totalorder %v809, 0
        %vm1080 = vcmp.lt.s32.totalorder %v816, 0
        %vm1081 = vcmp.lt.s32.totalorder %v823, 0
        %vm1082 = vcmp.lt.s32.totalorder %v830, 0
        %vm1083 = vcmp.lt.s32.totalorder %v837, 0
        %vm1084 = vcmp.lt.s32.totalorder %v844, 0
        %vm1085 = vcmp.lt.s32.totalorder %v851, 0
        %vm1086 = vcmp.lt.s32.totalorder %v858, 0
        %vm1087 = vcmp.lt.s32.totalorder %v865, 0
        %vm1088 = vcmp.lt.s32.totalorder %v872, 0
        %vm1089 = vcmp.lt.s32.totalorder %v879, 0
        %vm1090 = vcmp.lt.s32.totalorder %v886, 0
        %vm1091 = vcmp.lt.s32.totalorder %v893, 0
        %vm1092 = vcmp.lt.s32.totalorder %v900, 0
        %vm1093 = vcmp.lt.s32.totalorder %v907, 0
        %vm1094 = vcmp.lt.s32.totalorder %v914, 0
        %vm1095 = vcmp.lt.s32.totalorder %v921, 0
        %vm1096 = vcmp.lt.s32.totalorder %v928, 0
        %vm1097 = vcmp.lt.s32.totalorder %v935, 0
        %vm1098 = vcmp.lt.s32.totalorder %v942, 0
        %vm1099 = vcmp.lt.s32.totalorder %v949, 0
        %vm1100 = vcmp.lt.s32.totalorder %v956, 0
        %vm1101 = vcmp.lt.s32.totalorder %v963, 0
        %vm1102 = vcmp.lt.s32.totalorder %v970, 0
        %vm1103 = vcmp.lt.s32.totalorder %v977, 0
        %vm1104 = vcmp.lt.s32.totalorder %v984, 0
        %vm1105 = vcmp.lt.s32.totalorder %v991, 0
        %vm1106 = vcmp.lt.s32.totalorder %v998, 0
        %vm1107 = vcmp.lt.s32.totalorder %v1005, 0
        %vm1108 = vcmp.lt.s32.totalorder %v1012, 0
        %vm1109 = vcmp.lt.s32.totalorder %v1019, 0
        %vm1110 = vcmp.lt.s32.totalorder %v1026, 0
        %vm1111 = vcmp.lt.s32.totalorder %v1033, 0
        %vm1112 = vcmp.lt.s32.totalorder %v1040, 0
        %vm1113 = vmand %vm1077, %vm1041
        %vm1114 = vmand %vm1078, %vm1042
        %vm1115 = vmand %vm1079, %vm1043
        %vm1116 = vmand %vm1080, %vm1044
        %vm1117 = vmand %vm1081, %vm1045
        %vm1118 = vmand %vm1082, %vm1046
        %vm1119 = vmand %vm1083, %vm1047
        %vm1120 = vmand %vm1084, %vm1048
        %vm1121 = vmand %vm1085, %vm1049
        %vm1122 = vmand %vm1086, %vm1050
        %vm1123 = vmand %vm1087, %vm1051
        %vm1124 = vmand %vm1088, %vm1052
        %vm1125 = vmand %vm1089, %vm1053
        %vm1126 = vmand %vm1090, %vm1054
        %vm1127 = vmand %vm1091, %vm1055
        %vm1128 = vmand %vm1092, %vm1056
        %vm1129 = vmand %vm1093, %vm1057
        %vm1130 = vmand %vm1094, %vm1058
        %vm1131 = vmand %vm1095, %vm1059
        %vm1132 = vmand %vm1096, %vm1060
        %vm1133 = vmand %vm1097, %vm1061
        %vm1134 = vmand %vm1098, %vm1062
        %vm1135 = vmand %vm1099, %vm1063
        %vm1136 = vmand %vm1100, %vm1064
        %vm1137 = vmand %vm1101, %vm1065
        %vm1138 = vmand %vm1102, %vm1066
        %vm1139 = vmand %vm1103, %vm1067
        %vm1140 = vmand %vm1104, %vm1068
        %vm1141 = vmand %vm1105, %vm1069
        %vm1142 = vmand %vm1106, %vm1070
        %vm1143 = vmand %vm1107, %vm1071
        %vm1144 = vmand %vm1108, %vm1072
        %vm1145 = vmand %vm1109, %vm1073
        %vm1146 = vmand %vm1110, %vm1074
        %vm1147 = vmand %vm1111, %vm1075
        %vm1148 = vmand %vm1112, %vm1076
        %v1149 = vadd.s32 %v795, 16
        %v1150 = vadd.s32 %v802, 16
        %v1151 = vadd.s32 %v809, 16
        %v1152 = vadd.s32 %v816, 16
        %v1153 = vadd.s32 %v823, 16
        %v1154 = vadd.s32 %v830, 16
        %v1155 = vadd.s32 %v837, 16
        %v1156 = vadd.s32 %v844, 16
        %v1157 = vadd.s32 %v851, 16
        %v1158 = vadd.s32 %v858, 16
        %v1159 = vadd.s32 %v865, 16
        %v1160 = vadd.s32 %v872, 16
        %v1161 = vadd.s32 %v879, 16
        %v1162 = vadd.s32 %v886, 16
        %v1163 = vadd.s32 %v893, 16
        %v1164 = vadd.s32 %v900, 16
        %v1165 = vadd.s32 %v907, 16
        %v1166 = vadd.s32 %v914, 16
        %v1167 = vadd.s32 %v921, 16
        %v1168 = vadd.s32 %v928, 16
        %v1169 = vadd.s32 %v935, 16
        %v1170 = vadd.s32 %v942, 16
        %v1171 = vadd.s32 %v949, 16
        %v1172 = vadd.s32 %v956, 16
        %v1173 = vadd.s32 %v963, 16
        %v1174 = vadd.s32 %v970, 16
        %v1175 = vadd.s32 %v977, 16
        %v1176 = vadd.s32 %v984, 16
        %v1177 = vadd.s32 %v991, 16
        %v1178 = vadd.s32 %v998, 16
        %v1179 = vadd.s32 %v1005, 16
        %v1180 = vadd.s32 %v1012, 16
        %v1181 = vadd.s32 %v1019, 16
        %v1182 = vadd.s32 %v1026, 16
        %v1183 = vadd.s32 %v1033, 16
        %v1184 = vadd.s32 %v1040, 16
        %v1185 = vsel %vm1113, %v1149, %v795
        %v1186 = vsel %vm1114, %v1150, %v802
        %v1187 = vsel %vm1115, %v1151, %v809
        %v1188 = vsel %vm1116, %v1152, %v816
        %v1189 = vsel %vm1117, %v1153, %v823
        %v1190 = vsel %vm1118, %v1154, %v830
        %v1191 = vsel %vm1119, %v1155, %v837
        %v1192 = vsel %vm1120, %v1156, %v844
        %v1193 = vsel %vm1121, %v1157, %v851
        %v1194 = vsel %vm1122, %v1158, %v858
        %v1195 = vsel %vm1123, %v1159, %v865
        %v1196 = vsel %vm1124, %v1160, %v872
        %v1197 = vsel %vm1125, %v1161, %v879
        %v1198 = vsel %vm1126, %v1162, %v886
        %v1199 = vsel %vm1127, %v1163, %v893
        %v1200 = vsel %vm1128, %v1164, %v900
        %v1201 = vsel %vm1129, %v1165, %v907
        %v1202 = vsel %vm1130, %v1166, %v914
        %v1203 = vsel %vm1131, %v1167, %v921
        %v1204 = vsel %vm1132, %v1168, %v928
        %v1205 = vsel %vm1133, %v1169, %v935
        %v1206 = vsel %vm1134, %v1170, %v942
        %v1207 = vsel %vm1135, %v1171, %v949
        %v1208 = vsel %vm1136, %v1172, %v956
        %v1209 = vsel %vm1137, %v1173, %v963
        %v1210 = vsel %vm1138, %v1174, %v970
        %v1211 = vsel %vm1139, %v1175, %v977
        %v1212 = vsel %vm1140, %v1176, %v984
        %v1213 = vsel %vm1141, %v1177, %v991
        %v1214 = vsel %vm1142, %v1178, %v998
        %v1215 = vsel %vm1143, %v1179, %v1005
        %v1216 = vsel %vm1144, %v1180, %v1012
        %v1217 = vsel %vm1145, %v1181, %v1019
        %v1218 = vsel %vm1146, %v1182, %v1026
        %v1219 = vsel %vm1147, %v1183, %v1033
        %v1220 = vsel %vm1148, %v1184, %v1040
        %vm1221 = vcmp.ge.s32.totalorder %v1185, 1
        %vm1222 = vcmp.ge.s32.totalorder %v1186, 1
        %vm1223 = vcmp.ge.s32.totalorder %v1187, 1
        %vm1224 = vcmp.ge.s32.totalorder %v1188, 1
        %vm1225 = vcmp.ge.s32.totalorder %v1189, 1
        %vm1226 = vcmp.ge.s32.totalorder %v1190, 1
        %vm1227 = vcmp.ge.s32.totalorder %v1191, 1
        %vm1228 = vcmp.ge.s32.totalorder %v1192, 1
        %vm1229 = vcmp.ge.s32.totalorder %v1193, 1
        %vm1230 = vcmp.ge.s32.totalorder %v1194, 1
        %vm1231 = vcmp.ge.s32.totalorder %v1195, 1
        %vm1232 = vcmp.ge.s32.totalorder %v1196, 1
        %vm1233 = vcmp.ge.s32.totalorder %v1197, 1
        %vm1234 = vcmp.ge.s32.totalorder %v1198, 1
        %vm1235 = vcmp.ge.s32.totalorder %v1199, 1
        %vm1236 = vcmp.ge.s32.totalorder %v1200, 1
        %vm1237 = vcmp.ge.s32.totalorder %v1201, 1
        %vm1238 = vcmp.ge.s32.totalorder %v1202, 1
        %vm1239 = vcmp.ge.s32.totalorder %v1203, 1
        %vm1240 = vcmp.ge.s32.totalorder %v1204, 1
        %vm1241 = vcmp.ge.s32.totalorder %v1205, 1
        %vm1242 = vcmp.ge.s32.totalorder %v1206, 1
        %vm1243 = vcmp.ge.s32.totalorder %v1207, 1
        %vm1244 = vcmp.ge.s32.totalorder %v1208, 1
        %vm1245 = vcmp.ge.s32.totalorder %v1209, 1
        %vm1246 = vcmp.ge.s32.totalorder %v1210, 1
        %vm1247 = vcmp.ge.s32.totalorder %v1211, 1
        %vm1248 = vcmp.ge.s32.totalorder %v1212, 1
        %vm1249 = vcmp.ge.s32.totalorder %v1213, 1
        %vm1250 = vcmp.ge.s32.totalorder %v1214, 1
        %vm1251 = vcmp.ge.s32.totalorder %v1215, 1
        %vm1252 = vcmp.ge.s32.totalorder %v1216, 1
        %vm1253 = vcmp.ge.s32.totalorder %v1217, 1
        %vm1254 = vcmp.ge.s32.totalorder %v1218, 1
        %vm1255 = vcmp.ge.s32.totalorder %v1219, 1
        %vm1256 = vcmp.ge.s32.totalorder %v1220, 1
        %v1258 = vshrl.u32 0, 16
        %v1260 = vrot.slane %v1258, 7
        %vm1262 = vsmask.f32 256
        %v1263 = vshll.u32 0, 16
        %v1265 = vor.u32 %v1260, %v1263
        %v1267 = vshrl.u32 %v736, 16
        %v1269 = vrot.slane %v1267, 7
        %v1270 = vshll.u32 %v736, 16
        %v1272 = vor.u32 %v1269, %v1270
        %v1273 = vsel %vm1262, %v1260, %v1272
        %v1275 = vshrl.u32 %v737, 16
        %v1277 = vrot.slane %v1275, 7
        %v1278 = vshll.u32 %v737, 16
        %v1280 = vor.u32 %v1277, %v1278
        %v1281 = vsel %vm1262, %v1269, %v1280
        %v1283 = vshrl.u32 %v738, 16
        %v1285 = vrot.slane %v1283, 7
        %v1286 = vshll.u32 %v738, 16
        %v1288 = vor.u32 %v1285, %v1286
        %v1289 = vsel %vm1262, %v1277, %v1288
        %v1291 = vshrl.u32 %v739, 16
        %v1293 = vrot.slane %v1291, 7
        %v1294 = vshll.u32 %v739, 16
        %v1296 = vor.u32 %v1293, %v1294
        %v1297 = vsel %vm1262, %v1285, %v1296
        %v1299 = vshrl.u32 %v740, 16
        %v1301 = vrot.slane %v1299, 7
        %v1302 = vshll.u32 %v740, 16
        %v1304 = vor.u32 %v1301, %v1302
        %v1305 = vsel %vm1262, %v1293, %v1304
        %v1307 = vshrl.u32 %v741, 16
        %v1309 = vrot.slane %v1307, 7
        %v1310 = vshll.u32 %v741, 16
        %v1312 = vor.u32 %v1309, %v1310
        %v1313 = vsel %vm1262, %v1301, %v1312
        %v1315 = vshrl.u32 %v742, 16
        %v1317 = vrot.slane %v1315, 7
        %v1318 = vshll.u32 %v742, 16
        %v1320 = vor.u32 %v1317, %v1318
        %v1321 = vsel %vm1262, %v1309, %v1320
        %v1323 = vshrl.u32 %v743, 16
        %v1325 = vrot.slane %v1323, 7
        %v1326 = vshll.u32 %v743, 16
        %v1328 = vor.u32 %v1325, %v1326
        %v1329 = vsel %vm1262, %v1317, %v1328
        %v1331 = vshrl.u32 %v744, 16
        %v1333 = vrot.slane %v1331, 7
        %v1334 = vshll.u32 %v744, 16
        %v1336 = vor.u32 %v1333, %v1334
        %v1337 = vsel %vm1262, %v1325, %v1336
        %v1339 = vshrl.u32 %v745, 16
        %v1341 = vrot.slane %v1339, 7
        %v1342 = vshll.u32 %v745, 16
        %v1344 = vor.u32 %v1341, %v1342
        %v1345 = vsel %vm1262, %v1333, %v1344
        %v1347 = vshrl.u32 %v746, 16
        %v1349 = vrot.slane %v1347, 7
        %v1350 = vshll.u32 %v746, 16
        %v1352 = vor.u32 %v1349, %v1350
        %v1353 = vsel %vm1262, %v1341, %v1352
        %v1355 = vshrl.u32 %v747, 16
        %v1357 = vrot.slane %v1355, 7
        %v1358 = vshll.u32 %v747, 16
        %v1360 = vor.u32 %v1357, %v1358
        %v1361 = vsel %vm1262, %v1349, %v1360
        %v1363 = vshrl.u32 %v748, 16
        %v1365 = vrot.slane %v1363, 7
        %v1366 = vshll.u32 %v748, 16
        %v1368 = vor.u32 %v1365, %v1366
        %v1369 = vsel %vm1262, %v1357, %v1368
        %v1371 = vshrl.u32 %v749, 16
        %v1373 = vrot.slane %v1371, 7
        %v1374 = vshll.u32 %v749, 16
        %v1376 = vor.u32 %v1373, %v1374
        %v1377 = vsel %vm1262, %v1365, %v1376
        %v1379 = vshrl.u32 %v750, 16
        %v1381 = vrot.slane %v1379, 7
        %v1382 = vshll.u32 %v750, 16
        %v1384 = vor.u32 %v1381, %v1382
        %v1385 = vsel %vm1262, %v1373, %v1384
        %v1387 = vshrl.u32 %v751, 16
        %v1389 = vrot.slane %v1387, 7
        %v1390 = vshll.u32 %v751, 16
        %v1392 = vor.u32 %v1389, %v1390
        %v1393 = vsel %vm1262, %v1381, %v1392
        %v1394 = vsel %vm1262, %v1389, %v1265
        %vm1413 = vcmask 1040384
        %vm1414 = vmand %vm1413, %vm1262
        %v1415 = vsel %vm1414, %v1260, %v1265
        %v1416 = vsel %vm1221, 1, 0
        %v1417 = vsel %vm1222, 1, 0
        %v1418 = vsel %vm1223, 1, 0
        %v1419 = vsel %vm1224, 1, 0
        %v1420 = vsel %vm1225, 1, 0
        %v1421 = vsel %vm1226, 1, 0
        %v1422 = vsel %vm1227, 1, 0
        %v1423 = vsel %vm1228, 1, 0
        %v1424 = vsel %vm1229, 1, 0
        %v1425 = vsel %vm1230, 1, 0
        %v1426 = vsel %vm1231, 1, 0
        %v1427 = vsel %vm1232, 1, 0
        %v1428 = vsel %vm1233, 1, 0
        %v1429 = vsel %vm1234, 1, 0
        %v1430 = vsel %vm1235, 1, 0
        %v1431 = vsel %vm1236, 1, 0
        %v1432 = vsel %vm1237, 1, 0
        %v1433 = vsel %vm1238, 1, 0
        %v1434 = vsel %vm1239, 1, 0
        %v1435 = vsel %vm1240, 1, 0
        %v1436 = vsel %vm1241, 1, 0
        %v1437 = vsel %vm1242, 1, 0
        %v1438 = vsel %vm1243, 1, 0
        %v1439 = vsel %vm1244, 1, 0
        %v1440 = vsel %vm1245, 1, 0
        %v1441 = vsel %vm1246, 1, 0
        %v1442 = vsel %vm1247, 1, 0
        %v1443 = vsel %vm1248, 1, 0
        %v1444 = vsel %vm1249, 1, 0
        %v1445 = vsel %vm1250, 1, 0
        %v1446 = vsel %vm1251, 1, 0
        %v1447 = vsel %vm1252, 1, 0
        %v1448 = vsel %vm1253, 1, 0
        %v1449 = vsel %vm1254, 1, 0
        %v1450 = vsel %vm1255, 1, 0
        %v1451 = vsel %vm1256, 1, 0
        %vm1452 = vcmp.eq.s32.totalorder %v1416, 1
        %vm1453 = vcmp.eq.s32.totalorder %v1417, 1
        %vm1454 = vcmp.eq.s32.totalorder %v1418, 1
        %vm1455 = vcmp.eq.s32.totalorder %v1419, 1
        %vm1456 = vcmp.eq.s32.totalorder %v1420, 1
        %vm1457 = vcmp.eq.s32.totalorder %v1421, 1
        %vm1458 = vcmp.eq.s32.totalorder %v1422, 1
        %vm1459 = vcmp.eq.s32.totalorder %v1423, 1
        %vm1460 = vcmp.eq.s32.totalorder %v1424, 1
        %vm1461 = vcmp.eq.s32.totalorder %v1425, 1
        %vm1462 = vcmp.eq.s32.totalorder %v1426, 1
        %vm1463 = vcmp.eq.s32.totalorder %v1427, 1
        %vm1464 = vcmp.eq.s32.totalorder %v1428, 1
        %vm1465 = vcmp.eq.s32.totalorder %v1429, 1
        %vm1466 = vcmp.eq.s32.totalorder %v1430, 1
        %vm1467 = vcmp.eq.s32.totalorder %v1431, 1
        %vm1468 = vcmp.eq.s32.totalorder %v1432, 1
        %vm1469 = vcmp.eq.s32.totalorder %v1433, 1
        %vm1470 = vcmp.eq.s32.totalorder %v1434, 1
        %vm1471 = vcmp.eq.s32.totalorder %v1435, 1
        %vm1472 = vcmp.eq.s32.totalorder %v1436, 1
        %vm1473 = vcmp.eq.s32.totalorder %v1437, 1
        %vm1474 = vcmp.eq.s32.totalorder %v1438, 1
        %vm1475 = vcmp.eq.s32.totalorder %v1439, 1
        %vm1476 = vcmp.eq.s32.totalorder %v1440, 1
        %vm1477 = vcmp.eq.s32.totalorder %v1441, 1
        %vm1478 = vcmp.eq.s32.totalorder %v1442, 1
        %vm1479 = vcmp.eq.s32.totalorder %v1443, 1
        %vm1480 = vcmp.eq.s32.totalorder %v1444, 1
        %vm1481 = vcmp.eq.s32.totalorder %v1445, 1
        %vm1482 = vcmp.eq.s32.totalorder %v1446, 1
        %vm1483 = vcmp.eq.s32.totalorder %v1447, 1
        %vm1484 = vcmp.eq.s32.totalorder %v1448, 1
        %vm1485 = vcmp.eq.s32.totalorder %v1449, 1
        %vm1486 = vcmp.eq.s32.totalorder %v1450, 1
        %vm1487 = vcmp.eq.s32.totalorder %v1451, 1
        %vm1488 = vmpackc.low %vm1452, %vm1452
        %vm1489 = vmpackc.low %vm1453, %vm1453
        %vm1490 = vmpackc.low %vm1454, %vm1454
        %vm1491 = vmpackc.low %vm1455, %vm1455
        %vm1492 = vmpackc.low %vm1456, %vm1456
        %vm1493 = vmpackc.low %vm1457, %vm1457
        %vm1494 = vmpackc.low %vm1458, %vm1458
        %vm1495 = vmpackc.low %vm1459, %vm1459
        %vm1496 = vmpackc.low %vm1460, %vm1460
        %vm1497 = vmpackc.low %vm1461, %vm1461
        %vm1498 = vmpackc.low %vm1462, %vm1462
        %vm1499 = vmpackc.low %vm1463, %vm1463
        %vm1500 = vmpackc.low %vm1464, %vm1464
        %vm1501 = vmpackc.low %vm1465, %vm1465
        %vm1502 = vmpackc.low %vm1466, %vm1466
        %vm1503 = vmpackc.low %vm1467, %vm1467
        %vm1504 = vmpackc.low %vm1468, %vm1468
        %vm1505 = vmpackc.low %vm1469, %vm1469
        %vm1506 = vmpackc.low %vm1470, %vm1470
        %vm1507 = vmpackc.low %vm1471, %vm1471
        %vm1508 = vmpackc.low %vm1472, %vm1472
        %vm1509 = vmpackc.low %vm1473, %vm1473
        %vm1510 = vmpackc.low %vm1474, %vm1474
        %vm1511 = vmpackc.low %vm1475, %vm1475
        %vm1512 = vmpackc.low %vm1476, %vm1476
        %vm1513 = vmpackc.low %vm1477, %vm1477
        %vm1514 = vmpackc.low %vm1478, %vm1478
        %vm1515 = vmpackc.low %vm1479, %vm1479
        %vm1516 = vmpackc.low %vm1480, %vm1480
        %vm1517 = vmpackc.low %vm1481, %vm1481
        %vm1518 = vmpackc.low %vm1482, %vm1482
        %vm1519 = vmpackc.low %vm1483, %vm1483
        %vm1520 = vmpackc.low %vm1484, %vm1484
        %vm1521 = vmpackc.low %vm1485, %vm1485
        %vm1522 = vmpackc.low %vm1486, %vm1486
        %vm1523 = vmpackc.low %vm1487, %vm1487
        %v1524 = vsel %vm1488, 65537, 0
        %v1525 = vsel %vm1489, 65537, 0
        %v1526 = vsel %vm1490, 65537, 0
        %v1527 = vsel %vm1491, 65537, 0
        %v1528 = vsel %vm1492, 65537, 0
        %v1529 = vsel %vm1493, 65537, 0
        %v1530 = vsel %vm1494, 65537, 0
        %v1531 = vsel %vm1495, 65537, 0
        %v1532 = vsel %vm1496, 65537, 0
        %v1533 = vsel %vm1497, 65537, 0
        %v1534 = vsel %vm1498, 65537, 0
        %v1535 = vsel %vm1499, 65537, 0
        %v1536 = vsel %vm1500, 65537, 0
        %v1537 = vsel %vm1501, 65537, 0
        %v1538 = vsel %vm1502, 65537, 0
        %v1539 = vsel %vm1503, 65537, 0
        %v1540 = vsel %vm1504, 65537, 0
        %v1541 = vsel %vm1505, 65537, 0
        %v1542 = vsel %vm1506, 65537, 0
        %v1543 = vsel %vm1507, 65537, 0
        %v1544 = vsel %vm1508, 65537, 0
        %v1545 = vsel %vm1509, 65537, 0
        %v1546 = vsel %vm1510, 65537, 0
        %v1547 = vsel %vm1511, 65537, 0
        %v1548 = vsel %vm1512, 65537, 0
        %v1549 = vsel %vm1513, 65537, 0
        %v1550 = vsel %vm1514, 65537, 0
        %v1551 = vsel %vm1515, 65537, 0
        %v1552 = vsel %vm1516, 65537, 0
        %v1553 = vsel %vm1517, 65537, 0
        %v1554 = vsel %vm1518, 65537, 0
        %v1555 = vsel %vm1519, 65537, 0
        %v1556 = vsel %vm1520, 65537, 0
        %v1557 = vsel %vm1521, 65537, 0
        %v1558 = vsel %vm1522, 65537, 0
        %v1559 = vsel %vm1523, 65537, 0
        %v1560 = vunpack.c.l.b16 %v1524
        %v1561 = vunpack.c.l.b16 %v1525
        %v1562 = vunpack.c.l.b16 %v1526
        %v1563 = vunpack.c.l.b16 %v1527
        %v1564 = vunpack.c.l.b16 %v1528
        %v1565 = vunpack.c.l.b16 %v1529
        %v1566 = vunpack.c.l.b16 %v1530
        %v1567 = vunpack.c.l.b16 %v1531
        %v1568 = vunpack.c.l.b16 %v1532
        %v1569 = vunpack.c.l.b16 %v1533
        %v1570 = vunpack.c.l.b16 %v1534
        %v1571 = vunpack.c.l.b16 %v1535
        %v1572 = vunpack.c.l.b16 %v1536
        %v1573 = vunpack.c.l.b16 %v1537
        %v1574 = vunpack.c.l.b16 %v1538
        %v1575 = vunpack.c.l.b16 %v1539
        %v1576 = vunpack.c.l.b16 %v1540
        %v1577 = vunpack.c.l.b16 %v1541
        %v1578 = vunpack.c.l.b16 %v1542
        %v1579 = vunpack.c.l.b16 %v1543
        %v1580 = vunpack.c.l.b16 %v1544
        %v1581 = vunpack.c.l.b16 %v1545
        %v1582 = vunpack.c.l.b16 %v1546
        %v1583 = vunpack.c.l.b16 %v1547
        %v1584 = vunpack.c.l.b16 %v1548
        %v1585 = vunpack.c.l.b16 %v1549
        %v1586 = vunpack.c.l.b16 %v1550
        %v1587 = vunpack.c.l.b16 %v1551
        %v1588 = vunpack.c.l.b16 %v1552
        %v1589 = vunpack.c.l.b16 %v1553
        %v1590 = vunpack.c.l.b16 %v1554
        %v1591 = vunpack.c.l.b16 %v1555
        %v1592 = vunpack.c.l.b16 %v1556
        %v1593 = vunpack.c.l.b16 %v1557
        %v1594 = vunpack.c.l.b16 %v1558
        %v1595 = vunpack.c.l.b16 %v1559
        %v1596 = vpack.c.b16 %v1561, %v1560
        %v1597 = vpack.c.b16 %v1563, %v1562
        %v1598 = vpack.c.b16 %v1565, %v1564
        %v1599 = vpack.c.b16 %v1567, %v1566
        %v1600 = vpack.c.b16 %v1569, %v1568
        %v1601 = vpack.c.b16 %v1571, %v1570
        %v1602 = vpack.c.b16 %v1573, %v1572
        %v1603 = vpack.c.b16 %v1575, %v1574
        %v1604 = vpack.c.b16 %v1577, %v1576
        %v1605 = vpack.c.b16 %v1579, %v1578
        %v1606 = vpack.c.b16 %v1581, %v1580
        %v1607 = vpack.c.b16 %v1583, %v1582
        %v1608 = vpack.c.b16 %v1585, %v1584
        %v1609 = vpack.c.b16 %v1587, %v1586
        %v1610 = vpack.c.b16 %v1589, %v1588
        %v1611 = vpack.c.b16 %v1591, %v1590
        %v1612 = vpack.c.b16 %v1593, %v1592
        %v1613 = vpack.c.b16 %v1595, %v1594
        %vm1614 = vcmp.ne.s16.totalorder %v1596, 0
        %vm1615 = vcmp.ne.s16.totalorder %v1597, 0
        %vm1616 = vcmp.ne.s16.totalorder %v1598, 0
        %vm1617 = vcmp.ne.s16.totalorder %v1599, 0
        %vm1618 = vcmp.ne.s16.totalorder %v1600, 0
        %vm1619 = vcmp.ne.s16.totalorder %v1601, 0
        %vm1620 = vcmp.ne.s16.totalorder %v1602, 0
        %vm1621 = vcmp.ne.s16.totalorder %v1603, 0
        %vm1622 = vcmp.ne.s16.totalorder %v1604, 0
        %vm1623 = vcmp.ne.s16.totalorder %v1605, 0
        %vm1624 = vcmp.ne.s16.totalorder %v1606, 0
        %vm1625 = vcmp.ne.s16.totalorder %v1607, 0
        %vm1626 = vcmp.ne.s16.totalorder %v1608, 0
        %vm1627 = vcmp.ne.s16.totalorder %v1609, 0
        %vm1628 = vcmp.ne.s16.totalorder %v1610, 0
        %vm1629 = vcmp.ne.s16.totalorder %v1611, 0
        %vm1630 = vcmp.ne.s16.totalorder %v1612, 0
        %vm1631 = vcmp.ne.s16.totalorder %v1613, 0
        %v1632 = vsel %vm1614, %v1415, 0
        %v1633 = vsel %vm1615, %v1273, 0
        %v1634 = vsel %vm1616, %v1281, 0
        %v1635 = vsel %vm1617, %v1289, 0
        %v1636 = vsel %vm1618, %v1297, 0
        %v1637 = vsel %vm1619, %v1305, 0
        %v1638 = vsel %vm1620, %v1313, 0
        %v1639 = vsel %vm1621, %v1321, 0
        %v1640 = vsel %vm1622, %v1329, 0
        %v1641 = vsel %vm1623, %v1337, 0
        %v1642 = vsel %vm1624, %v1345, 0
        %v1643 = vsel %vm1625, %v1353, 0
        %v1644 = vsel %vm1626, %v1361, 0
        %v1645 = vsel %vm1627, %v1369, 0
        %v1646 = vsel %vm1628, %v1377, 0
        %v1647 = vsel %vm1629, %v1385, 0
        %v1648 = vsel %vm1630, %v1393, 0
        %v1649 = vsel %vm1631, %v1394, 0
        %vm1650 = vcmp.le.s32.totalorder %v1185, 14
        %vm1651 = vcmp.le.s32.totalorder %v1186, 14
        %vm1652 = vcmp.le.s32.totalorder %v1187, 14
        %vm1653 = vcmp.le.s32.totalorder %v1188, 14
        %vm1654 = vcmp.le.s32.totalorder %v1189, 14
        %vm1655 = vcmp.le.s32.totalorder %v1190, 14
        %vm1656 = vcmp.le.s32.totalorder %v1191, 14
        %vm1657 = vcmp.le.s32.totalorder %v1192, 14
        %vm1658 = vcmp.le.s32.totalorder %v1193, 14
        %vm1659 = vcmp.le.s32.totalorder %v1194, 14
        %vm1660 = vcmp.le.s32.totalorder %v1195, 14
        %vm1661 = vcmp.le.s32.totalorder %v1196, 14
        %vm1662 = vcmp.le.s32.totalorder %v1197, 14
        %vm1663 = vcmp.le.s32.totalorder %v1198, 14
        %vm1664 = vcmp.le.s32.totalorder %v1199, 14
        %vm1665 = vcmp.le.s32.totalorder %v1200, 14
        %vm1666 = vcmp.le.s32.totalorder %v1201, 14
        %vm1667 = vcmp.le.s32.totalorder %v1202, 14
        %vm1668 = vcmp.le.s32.totalorder %v1203, 14
        %vm1669 = vcmp.le.s32.totalorder %v1204, 14
        %vm1670 = vcmp.le.s32.totalorder %v1205, 14
        %vm1671 = vcmp.le.s32.totalorder %v1206, 14
        %vm1672 = vcmp.le.s32.totalorder %v1207, 14
        %vm1673 = vcmp.le.s32.totalorder %v1208, 14
        %vm1674 = vcmp.le.s32.totalorder %v1209, 14
        %vm1675 = vcmp.le.s32.totalorder %v1210, 14
        %vm1676 = vcmp.le.s32.totalorder %v1211, 14
        %vm1677 = vcmp.le.s32.totalorder %v1212, 14
        %vm1678 = vcmp.le.s32.totalorder %v1213, 14
        %vm1679 = vcmp.le.s32.totalorder %v1214, 14
        %vm1680 = vcmp.le.s32.totalorder %v1215, 14
        %vm1681 = vcmp.le.s32.totalorder %v1216, 14
        %vm1682 = vcmp.le.s32.totalorder %v1217, 14
        %vm1683 = vcmp.le.s32.totalorder %v1218, 14
        %vm1684 = vcmp.le.s32.totalorder %v1219, 14
        %vm1685 = vcmp.le.s32.totalorder %v1220, 14
        %vm1686 = vsmask.f32 7424
        %v1687 = vrot.slane %v1263, 1
        %v1688 = vor.u32 %v1258, %v1687
        %v1689 = vrot.slane %v1270, 1
        %v1690 = vsel %vm1686, %v1688, %v1689
        %v1691 = vor.u32 %v1267, %v1689
        %v1692 = vrot.slane %v1278, 1
        %v1693 = vsel %vm1686, %v1691, %v1692
        %v1694 = vor.u32 %v1275, %v1692
        %v1695 = vrot.slane %v1286, 1
        %v1696 = vsel %vm1686, %v1694, %v1695
        %v1697 = vor.u32 %v1283, %v1695
        %v1698 = vrot.slane %v1294, 1
        %v1699 = vsel %vm1686, %v1697, %v1698
        %v1700 = vor.u32 %v1291, %v1698
        %v1701 = vrot.slane %v1302, 1
        %v1702 = vsel %vm1686, %v1700, %v1701
        %v1703 = vor.u32 %v1299, %v1701
        %v1704 = vrot.slane %v1310, 1
        %v1705 = vsel %vm1686, %v1703, %v1704
        %v1706 = vor.u32 %v1307, %v1704
        %v1707 = vrot.slane %v1318, 1
        %v1708 = vsel %vm1686, %v1706, %v1707
        %v1709 = vor.u32 %v1315, %v1707
        %v1710 = vrot.slane %v1326, 1
        %v1711 = vsel %vm1686, %v1709, %v1710
        %v1712 = vor.u32 %v1323, %v1710
        %v1713 = vrot.slane %v1334, 1
        %v1714 = vsel %vm1686, %v1712, %v1713
        %v1715 = vor.u32 %v1331, %v1713
        %v1716 = vrot.slane %v1342, 1
        %v1717 = vsel %vm1686, %v1715, %v1716
        %v1718 = vor.u32 %v1339, %v1716
        %v1719 = vrot.slane %v1350, 1
        %v1720 = vsel %vm1686, %v1718, %v1719
        %v1721 = vor.u32 %v1347, %v1719
        %v1722 = vrot.slane %v1358, 1
        %v1723 = vsel %vm1686, %v1721, %v1722
        %v1724 = vor.u32 %v1355, %v1722
        %v1725 = vrot.slane %v1366, 1
        %v1726 = vsel %vm1686, %v1724, %v1725
        %v1727 = vor.u32 %v1363, %v1725
        %v1728 = vrot.slane %v1374, 1
        %v1729 = vsel %vm1686, %v1727, %v1728
        %v1730 = vor.u32 %v1371, %v1728
        %v1731 = vrot.slane %v1382, 1
        %v1732 = vsel %vm1686, %v1730, %v1731
        %v1733 = vor.u32 %v1379, %v1731
        %v1734 = vrot.slane %v1390, 1
        %v1735 = vsel %vm1686, %v1733, %v1734
        %v1736 = vor.u32 %v1387, %v1734
        %v1737 = vsel %vm1686, %v1736, %v1687
        %vm1757 = vcmask 1047552
        %vm1758 = vmand %vm1757, %vm1686
        %v1759 = vsel %vm1758, %v1688, %v1687
        %v1760 = vsel %vm1650, 1, 0
        %v1761 = vsel %vm1651, 1, 0
        %v1762 = vsel %vm1652, 1, 0
        %v1763 = vsel %vm1653, 1, 0
        %v1764 = vsel %vm1654, 1, 0
        %v1765 = vsel %vm1655, 1, 0
        %v1766 = vsel %vm1656, 1, 0
        %v1767 = vsel %vm1657, 1, 0
        %v1768 = vsel %vm1658, 1, 0
        %v1769 = vsel %vm1659, 1, 0
        %v1770 = vsel %vm1660, 1, 0
        %v1771 = vsel %vm1661, 1, 0
        %v1772 = vsel %vm1662, 1, 0
        %v1773 = vsel %vm1663, 1, 0
        %v1774 = vsel %vm1664, 1, 0
        %v1775 = vsel %vm1665, 1, 0
        %v1776 = vsel %vm1666, 1, 0
        %v1777 = vsel %vm1667, 1, 0
        %v1778 = vsel %vm1668, 1, 0
        %v1779 = vsel %vm1669, 1, 0
        %v1780 = vsel %vm1670, 1, 0
        %v1781 = vsel %vm1671, 1, 0
        %v1782 = vsel %vm1672, 1, 0
        %v1783 = vsel %vm1673, 1, 0
        %v1784 = vsel %vm1674, 1, 0
        %v1785 = vsel %vm1675, 1, 0
        %v1786 = vsel %vm1676, 1, 0
        %v1787 = vsel %vm1677, 1, 0
        %v1788 = vsel %vm1678, 1, 0
        %v1789 = vsel %vm1679, 1, 0
        %v1790 = vsel %vm1680, 1, 0
        %v1791 = vsel %vm1681, 1, 0
        %v1792 = vsel %vm1682, 1, 0
        %v1793 = vsel %vm1683, 1, 0
        %v1794 = vsel %vm1684, 1, 0
        %v1795 = vsel %vm1685, 1, 0
        %vm1796 = vcmp.eq.s32.totalorder %v1760, 1
        %vm1797 = vcmp.eq.s32.totalorder %v1761, 1
        %vm1798 = vcmp.eq.s32.totalorder %v1762, 1
        %vm1799 = vcmp.eq.s32.totalorder %v1763, 1
        %vm1800 = vcmp.eq.s32.totalorder %v1764, 1
        %vm1801 = vcmp.eq.s32.totalorder %v1765, 1
        %vm1802 = vcmp.eq.s32.totalorder %v1766, 1
        %vm1803 = vcmp.eq.s32.totalorder %v1767, 1
        %vm1804 = vcmp.eq.s32.totalorder %v1768, 1
        %vm1805 = vcmp.eq.s32.totalorder %v1769, 1
        %vm1806 = vcmp.eq.s32.totalorder %v1770, 1
        %vm1807 = vcmp.eq.s32.totalorder %v1771, 1
        %vm1808 = vcmp.eq.s32.totalorder %v1772, 1
        %vm1809 = vcmp.eq.s32.totalorder %v1773, 1
        %vm1810 = vcmp.eq.s32.totalorder %v1774, 1
        %vm1811 = vcmp.eq.s32.totalorder %v1775, 1
        %vm1812 = vcmp.eq.s32.totalorder %v1776, 1
        %vm1813 = vcmp.eq.s32.totalorder %v1777, 1
        %vm1814 = vcmp.eq.s32.totalorder %v1778, 1
        %vm1815 = vcmp.eq.s32.totalorder %v1779, 1
        %vm1816 = vcmp.eq.s32.totalorder %v1780, 1
        %vm1817 = vcmp.eq.s32.totalorder %v1781, 1
        %vm1818 = vcmp.eq.s32.totalorder %v1782, 1
        %vm1819 = vcmp.eq.s32.totalorder %v1783, 1
        %vm1820 = vcmp.eq.s32.totalorder %v1784, 1
        %vm1821 = vcmp.eq.s32.totalorder %v1785, 1
        %vm1822 = vcmp.eq.s32.totalorder %v1786, 1
        %vm1823 = vcmp.eq.s32.totalorder %v1787, 1
        %vm1824 = vcmp.eq.s32.totalorder %v1788, 1
        %vm1825 = vcmp.eq.s32.totalorder %v1789, 1
        %vm1826 = vcmp.eq.s32.totalorder %v1790, 1
        %vm1827 = vcmp.eq.s32.totalorder %v1791, 1
        %vm1828 = vcmp.eq.s32.totalorder %v1792, 1
        %vm1829 = vcmp.eq.s32.totalorder %v1793, 1
        %vm1830 = vcmp.eq.s32.totalorder %v1794, 1
        %vm1831 = vcmp.eq.s32.totalorder %v1795, 1
        %vm1832 = vmpackc.low %vm1796, %vm1796
        %vm1833 = vmpackc.low %vm1797, %vm1797
        %vm1834 = vmpackc.low %vm1798, %vm1798
        %vm1835 = vmpackc.low %vm1799, %vm1799
        %vm1836 = vmpackc.low %vm1800, %vm1800
        %vm1837 = vmpackc.low %vm1801, %vm1801
        %vm1838 = vmpackc.low %vm1802, %vm1802
        %vm1839 = vmpackc.low %vm1803, %vm1803
        %vm1840 = vmpackc.low %vm1804, %vm1804
        %vm1841 = vmpackc.low %vm1805, %vm1805
        %vm1842 = vmpackc.low %vm1806, %vm1806
        %vm1843 = vmpackc.low %vm1807, %vm1807
        %vm1844 = vmpackc.low %vm1808, %vm1808
        %vm1845 = vmpackc.low %vm1809, %vm1809
        %vm1846 = vmpackc.low %vm1810, %vm1810
        %vm1847 = vmpackc.low %vm1811, %vm1811
        %vm1848 = vmpackc.low %vm1812, %vm1812
        %vm1849 = vmpackc.low %vm1813, %vm1813
        %vm1850 = vmpackc.low %vm1814, %vm1814
        %vm1851 = vmpackc.low %vm1815, %vm1815
        %vm1852 = vmpackc.low %vm1816, %vm1816
        %vm1853 = vmpackc.low %vm1817, %vm1817
        %vm1854 = vmpackc.low %vm1818, %vm1818
        %vm1855 = vmpackc.low %vm1819, %vm1819
        %vm1856 = vmpackc.low %vm1820, %vm1820
        %vm1857 = vmpackc.low %vm1821, %vm1821
        %vm1858 = vmpackc.low %vm1822, %vm1822
        %vm1859 = vmpackc.low %vm1823, %vm1823
        %vm1860 = vmpackc.low %vm1824, %vm1824
        %vm1861 = vmpackc.low %vm1825, %vm1825
        %vm1862 = vmpackc.low %vm1826, %vm1826
        %vm1863 = vmpackc.low %vm1827, %vm1827
        %vm1864 = vmpackc.low %vm1828, %vm1828
        %vm1865 = vmpackc.low %vm1829, %vm1829
        %vm1866 = vmpackc.low %vm1830, %vm1830
        %vm1867 = vmpackc.low %vm1831, %vm1831
        %v1868 = vsel %vm1832, 65537, 0
        %v1869 = vsel %vm1833, 65537, 0
        %v1870 = vsel %vm1834, 65537, 0
        %v1871 = vsel %vm1835, 65537, 0
        %v1872 = vsel %vm1836, 65537, 0
        %v1873 = vsel %vm1837, 65537, 0
        %v1874 = vsel %vm1838, 65537, 0
        %v1875 = vsel %vm1839, 65537, 0
        %v1876 = vsel %vm1840, 65537, 0
        %v1877 = vsel %vm1841, 65537, 0
        %v1878 = vsel %vm1842, 65537, 0
        %v1879 = vsel %vm1843, 65537, 0
        %v1880 = vsel %vm1844, 65537, 0
        %v1881 = vsel %vm1845, 65537, 0
        %v1882 = vsel %vm1846, 65537, 0
        %v1883 = vsel %vm1847, 65537, 0
        %v1884 = vsel %vm1848, 65537, 0
        %v1885 = vsel %vm1849, 65537, 0
        %v1886 = vsel %vm1850, 65537, 0
        %v1887 = vsel %vm1851, 65537, 0
        %v1888 = vsel %vm1852, 65537, 0
        %v1889 = vsel %vm1853, 65537, 0
        %v1890 = vsel %vm1854, 65537, 0
        %v1891 = vsel %vm1855, 65537, 0
        %v1892 = vsel %vm1856, 65537, 0
        %v1893 = vsel %vm1857, 65537, 0
        %v1894 = vsel %vm1858, 65537, 0
        %v1895 = vsel %vm1859, 65537, 0
        %v1896 = vsel %vm1860, 65537, 0
        %v1897 = vsel %vm1861, 65537, 0
        %v1898 = vsel %vm1862, 65537, 0
        %v1899 = vsel %vm1863, 65537, 0
        %v1900 = vsel %vm1864, 65537, 0
        %v1901 = vsel %vm1865, 65537, 0
        %v1902 = vsel %vm1866, 65537, 0
        %v1903 = vsel %vm1867, 65537, 0
        %v1904 = vunpack.c.l.b16 %v1868
        %v1905 = vunpack.c.l.b16 %v1869
        %v1906 = vunpack.c.l.b16 %v1870
        %v1907 = vunpack.c.l.b16 %v1871
        %v1908 = vunpack.c.l.b16 %v1872
        %v1909 = vunpack.c.l.b16 %v1873
        %v1910 = vunpack.c.l.b16 %v1874
        %v1911 = vunpack.c.l.b16 %v1875
        %v1912 = vunpack.c.l.b16 %v1876
        %v1913 = vunpack.c.l.b16 %v1877
        %v1914 = vunpack.c.l.b16 %v1878
        %v1915 = vunpack.c.l.b16 %v1879
        %v1916 = vunpack.c.l.b16 %v1880
        %v1917 = vunpack.c.l.b16 %v1881
        %v1918 = vunpack.c.l.b16 %v1882
        %v1919 = vunpack.c.l.b16 %v1883
        %v1920 = vunpack.c.l.b16 %v1884
        %v1921 = vunpack.c.l.b16 %v1885
        %v1922 = vunpack.c.l.b16 %v1886
        %v1923 = vunpack.c.l.b16 %v1887
        %v1924 = vunpack.c.l.b16 %v1888
        %v1925 = vunpack.c.l.b16 %v1889
        %v1926 = vunpack.c.l.b16 %v1890
        %v1927 = vunpack.c.l.b16 %v1891
        %v1928 = vunpack.c.l.b16 %v1892
        %v1929 = vunpack.c.l.b16 %v1893
        %v1930 = vunpack.c.l.b16 %v1894
        %v1931 = vunpack.c.l.b16 %v1895
        %v1932 = vunpack.c.l.b16 %v1896
        %v1933 = vunpack.c.l.b16 %v1897
        %v1934 = vunpack.c.l.b16 %v1898
        %v1935 = vunpack.c.l.b16 %v1899
        %v1936 = vunpack.c.l.b16 %v1900
        %v1937 = vunpack.c.l.b16 %v1901
        %v1938 = vunpack.c.l.b16 %v1902
        %v1939 = vunpack.c.l.b16 %v1903
        %v1940 = vpack.c.b16 %v1905, %v1904
        %v1941 = vpack.c.b16 %v1907, %v1906
        %v1942 = vpack.c.b16 %v1909, %v1908
        %v1943 = vpack.c.b16 %v1911, %v1910
        %v1944 = vpack.c.b16 %v1913, %v1912
        %v1945 = vpack.c.b16 %v1915, %v1914
        %v1946 = vpack.c.b16 %v1917, %v1916
        %v1947 = vpack.c.b16 %v1919, %v1918
        %v1948 = vpack.c.b16 %v1921, %v1920
        %v1949 = vpack.c.b16 %v1923, %v1922
        %v1950 = vpack.c.b16 %v1925, %v1924
        %v1951 = vpack.c.b16 %v1927, %v1926
        %v1952 = vpack.c.b16 %v1929, %v1928
        %v1953 = vpack.c.b16 %v1931, %v1930
        %v1954 = vpack.c.b16 %v1933, %v1932
        %v1955 = vpack.c.b16 %v1935, %v1934
        %v1956 = vpack.c.b16 %v1937, %v1936
        %v1957 = vpack.c.b16 %v1939, %v1938
        %vm1958 = vcmp.ne.s16.totalorder %v1940, 0
        %vm1959 = vcmp.ne.s16.totalorder %v1941, 0
        %vm1960 = vcmp.ne.s16.totalorder %v1942, 0
        %vm1961 = vcmp.ne.s16.totalorder %v1943, 0
        %vm1962 = vcmp.ne.s16.totalorder %v1944, 0
        %vm1963 = vcmp.ne.s16.totalorder %v1945, 0
        %vm1964 = vcmp.ne.s16.totalorder %v1946, 0
        %vm1965 = vcmp.ne.s16.totalorder %v1947, 0
        %vm1966 = vcmp.ne.s16.totalorder %v1948, 0
        %vm1967 = vcmp.ne.s16.totalorder %v1949, 0
        %vm1968 = vcmp.ne.s16.totalorder %v1950, 0
        %vm1969 = vcmp.ne.s16.totalorder %v1951, 0
        %vm1970 = vcmp.ne.s16.totalorder %v1952, 0
        %vm1971 = vcmp.ne.s16.totalorder %v1953, 0
        %vm1972 = vcmp.ne.s16.totalorder %v1954, 0
        %vm1973 = vcmp.ne.s16.totalorder %v1955, 0
        %vm1974 = vcmp.ne.s16.totalorder %v1956, 0
        %vm1975 = vcmp.ne.s16.totalorder %v1957, 0
        %v1976 = vsel %vm1958, %v1690, 0
        %v1977 = vsel %vm1959, %v1693, 0
        %v1978 = vsel %vm1960, %v1696, 0
        %v1979 = vsel %vm1961, %v1699, 0
        %v1980 = vsel %vm1962, %v1702, 0
        %v1981 = vsel %vm1963, %v1705, 0
        %v1982 = vsel %vm1964, %v1708, 0
        %v1983 = vsel %vm1965, %v1711, 0
        %v1984 = vsel %vm1966, %v1714, 0
        %v1985 = vsel %vm1967, %v1717, 0
        %v1986 = vsel %vm1968, %v1720, 0
        %v1987 = vsel %vm1969, %v1723, 0
        %v1988 = vsel %vm1970, %v1726, 0
        %v1989 = vsel %vm1971, %v1729, 0
        %v1990 = vsel %vm1972, %v1732, 0
        %v1991 = vsel %vm1973, %v1735, 0
        %v1992 = vsel %vm1974, %v1737, 0
        %v1993 = vsel %vm1975, %v1759, 0
        %v1994 = vld [vmem:[#allocation7] sm:$0xf]
        %v1995 = vld [vmem:[#allocation7 + $0x4] sm:$0xf]
        %v1996 = vld [vmem:[#allocation7 + $0x8] sm:$0xf]
        %v1997 = vld [vmem:[#allocation7 + $0xc] sm:$0xf]
        %v1998 = vld [vmem:[#allocation7 + $0x10] sm:$0xf]
        %v1999 = vld [vmem:[#allocation7 + $0x14] sm:$0xf]
        %v2000 = vld [vmem:[#allocation7 + $0x18] sm:$0xf]
        %v2001 = vld [vmem:[#allocation7 + $0x1c] sm:$0xf]
        %v2002 = vld [vmem:[#allocation7 + $0x20] sm:$0xf]
        %v2003 = vld [vmem:[#allocation7 + $0x24] sm:$0xf]
        %v2004 = vld [vmem:[#allocation7 + $0x28] sm:$0xf]
        %v2005 = vld [vmem:[#allocation7 + $0x2c] sm:$0xf]
        %v2006 = vld [vmem:[#allocation7 + $0x30] sm:$0xf]
        %v2007 = vld [vmem:[#allocation7 + $0x34] sm:$0xf]
        %v2008 = vld [vmem:[#allocation7 + $0x38] sm:$0xf]
        %v2009 = vld [vmem:[#allocation7 + $0x3c] sm:$0xf]
        %v2010 = vld [vmem:[#allocation7 + $0x40] sm:$0xf]
        %v2011 = vld [vmem:[#allocation7 + $0x44] sm:$0xf]
        %v2012 = vld [vmem:[#allocation7 + $0x48] sm:$0xf]
        %v2013 = vld [vmem:[#allocation7 + $0x4c] sm:$0xf]
        %v2014 = vld [vmem:[#allocation7 + $0x50] sm:$0xf]
        %v2015 = vld [vmem:[#allocation7 + $0x54] sm:$0xf]
        %v2016 = vld [vmem:[#allocation7 + $0x58] sm:$0xf]
        %v2017 = vld [vmem:[#allocation7 + $0x5c] sm:$0xf]
        %v2018 = vld [vmem:[#allocation7 + $0x60] sm:$0xf]
        %v2019 = vld [vmem:[#allocation7 + $0x64] sm:$0xf]
        %v2020 = vld [vmem:[#allocation7 + $0x68] sm:$0xf]
        %v2021 = vld [vmem:[#allocation7 + $0x6c] sm:$0xf]
        %v2022 = vld [vmem:[#allocation7 + $0x70] sm:$0xf]
        %v2023 = vld [vmem:[#allocation7 + $0x74] sm:$0xf]
        %v2024 = vld [vmem:[#allocation7 + $0x78] sm:$0xf]
        %v2025 = vld [vmem:[#allocation7 + $0x7c] sm:$0xf]
        %v2026 = vld [vmem:[#allocation7 + $0x80] sm:$0xf]
        %v2027 = vld [vmem:[#allocation7 + $0x84] sm:$0xf]
        %v2028 = vld [vmem:[#allocation7 + $0x88] sm:$0xf]
        %v2029 = vld [vmem:[#allocation7 + $0x8c] sm:$0xf]
        %v2030 = vld [vmem:[#allocation7 + $0x90] sm:$0xf]
        %v2031 = vld [vmem:[#allocation7 + $0x94] sm:$0xf]
        %v2032 = vld [vmem:[#allocation7 + $0x98] sm:$0xf]
        %v2033 = vld [vmem:[#allocation7 + $0x9c] sm:$0xf]
        %v2034 = vld [vmem:[#allocation7 + $0xa0] sm:$0xf]
        %v2035 = vld [vmem:[#allocation7 + $0xa4] sm:$0xf]
        %v2036 = vld [vmem:[#allocation7 + $0xa8] sm:$0xf]
        %v2037 = vld [vmem:[#allocation7 + $0xac] sm:$0xf]
        %v2038 = vld [vmem:[#allocation7 + $0xb0] sm:$0xf]
        %v2039 = vld [vmem:[#allocation7 + $0xb4] sm:$0xf]
        %v2040 = vld [vmem:[#allocation7 + $0xb8] sm:$0xf]
        %v2041 = vld [vmem:[#allocation7 + $0xbc] sm:$0xf]
        %v2042 = vld [vmem:[#allocation7 + $0xc0] sm:$0xf]
        %v2043 = vld [vmem:[#allocation7 + $0xc4] sm:$0xf]
        %v2044 = vld [vmem:[#allocation7 + $0xc8] sm:$0xf]
        %v2045 = vld [vmem:[#allocation7 + $0xcc] sm:$0xf]
        %v2046 = vld [vmem:[#allocation7 + $0xd0] sm:$0xf]
        %v2047 = vld [vmem:[#allocation7 + $0xd4] sm:$0xf]
        %v2048 = vld [vmem:[#allocation7 + $0xd8] sm:$0xf]
        %v2049 = vld [vmem:[#allocation7 + $0xdc] sm:$0xf]
        %v2050 = vld [vmem:[#allocation7 + $0xe0] sm:$0xf]
        %v2051 = vld [vmem:[#allocation7 + $0xe4] sm:$0xf]
        %v2052 = vld [vmem:[#allocation7 + $0xe8] sm:$0xf]
        %v2053 = vld [vmem:[#allocation7 + $0xec] sm:$0xf]
        %v2054 = vld [vmem:[#allocation7 + $0xf0] sm:$0xf]
        %v2055 = vld [vmem:[#allocation7 + $0xf4] sm:$0xf]
        %v2056 = vld [vmem:[#allocation7 + $0xf8] sm:$0xf]
        %v2057 = vld [vmem:[#allocation7 + $0xfc] sm:$0xf]
        %v2058 = vld [vmem:[#allocation7 + $0x100] sm:$0xf]
        %v2059 = vld [vmem:[#allocation7 + $0x104] sm:$0xf]
        %v2060 = vld [vmem:[#allocation7 + $0x108] sm:$0xf]
        %v2061 = vld [vmem:[#allocation7 + $0x10c] sm:$0xf]
        %v2062 = vld [vmem:[#allocation7 + $0x110] sm:$0xf]
        %v2063 = vld [vmem:[#allocation7 + $0x114] sm:$0xf]
        %v2064 = vld [vmem:[#allocation7 + $0x118] sm:$0xf]
        %v2065 = vld [vmem:[#allocation7 + $0x11c] sm:$0xf]
        %v2066 = vld [vmem:[#allocation7 + $0x120] sm:$0xf]
        %v2067 = vld [vmem:[#allocation7 + $0x124] sm:$0xf]
        %v2068 = vld [vmem:[#allocation7 + $0x128] sm:$0xf]
        %v2069 = vld [vmem:[#allocation7 + $0x12c] sm:$0xf]
        %v2070 = vld [vmem:[#allocation7 + $0x130] sm:$0xf]
        %v2071 = vld [vmem:[#allocation7 + $0x134] sm:$0xf]
        %v2072 = vld [vmem:[#allocation7 + $0x138] sm:$0xf]
        %v2073 = vld [vmem:[#allocation7 + $0x13c] sm:$0xf]
        %v2074 = vld [vmem:[#allocation7 + $0x140] sm:$0xf]
        %v2075 = vld [vmem:[#allocation7 + $0x144] sm:$0xf]
        %v2076 = vld [vmem:[#allocation7 + $0x148] sm:$0xf]
        %v2077 = vld [vmem:[#allocation7 + $0x14c] sm:$0xf]
        %v2078 = vld [vmem:[#allocation7 + $0x150] sm:$0xf]
        %v2079 = vld [vmem:[#allocation7 + $0x154] sm:$0xf]
        %v2080 = vld [vmem:[#allocation7 + $0x158] sm:$0xf]
        %v2081 = vld [vmem:[#allocation7 + $0x15c] sm:$0xf]
        %v2082 = vld [vmem:[#allocation7 + $0x160] sm:$0xf]
        %v2083 = vld [vmem:[#allocation7 + $0x164] sm:$0xf]
        %v2084 = vld [vmem:[#allocation7 + $0x168] sm:$0xf]
        %v2085 = vld [vmem:[#allocation7 + $0x16c] sm:$0xf]
        %v2086 = vld [vmem:[#allocation7 + $0x170] sm:$0xf]
        %v2087 = vld [vmem:[#allocation7 + $0x174] sm:$0xf]
        %v2088 = vld [vmem:[#allocation7 + $0x178] sm:$0xf]
        %v2089 = vld [vmem:[#allocation7 + $0x17c] sm:$0xf]
        %v2090 = vld [vmem:[#allocation7 + $0x180] sm:$0xf]
        %v2091 = vld [vmem:[#allocation7 + $0x184] sm:$0xf]
        %v2092 = vld [vmem:[#allocation7 + $0x188] sm:$0xf]
        %v2093 = vld [vmem:[#allocation7 + $0x18c] sm:$0xf]
        %v2094 = vld [vmem:[#allocation7 + $0x190] sm:$0xf]
        %v2095 = vld [vmem:[#allocation7 + $0x194] sm:$0xf]
        %v2096 = vld [vmem:[#allocation7 + $0x198] sm:$0xf]
        %v2097 = vld [vmem:[#allocation7 + $0x19c] sm:$0xf]
        %v2098 = vld [vmem:[#allocation7 + $0x1a0] sm:$0xf]
        %v2099 = vld [vmem:[#allocation7 + $0x1a4] sm:$0xf]
        %v2100 = vld [vmem:[#allocation7 + $0x1a8] sm:$0xf]
        %v2101 = vld [vmem:[#allocation7 + $0x1ac] sm:$0xf]
        %v2102 = vld [vmem:[#allocation7 + $0x1b0] sm:$0xf]
        %v2103 = vld [vmem:[#allocation7 + $0x1b4] sm:$0xf]
        %v2104 = vld [vmem:[#allocation7 + $0x1b8] sm:$0xf]
        %v2105 = vld [vmem:[#allocation7 + $0x1bc] sm:$0xf]
        %v2106 = vld [vmem:[#allocation7 + $0x1c0] sm:$0xf]
        %v2107 = vld [vmem:[#allocation7 + $0x1c4] sm:$0xf]
        %v2108 = vld [vmem:[#allocation7 + $0x1c8] sm:$0xf]
        %v2109 = vld [vmem:[#allocation7 + $0x1cc] sm:$0xf]
        %v2110 = vld [vmem:[#allocation7 + $0x1d0] sm:$0xf]
        %v2111 = vld [vmem:[#allocation7 + $0x1d4] sm:$0xf]
        %v2112 = vld [vmem:[#allocation7 + $0x1d8] sm:$0xf]
        %v2113 = vld [vmem:[#allocation7 + $0x1dc] sm:$0xf]
        %v2114 = vld [vmem:[#allocation7 + $0x1e0] sm:$0xf]
        %v2115 = vld [vmem:[#allocation7 + $0x1e4] sm:$0xf]
        %v2116 = vld [vmem:[#allocation7 + $0x1e8] sm:$0xf]
        %v2117 = vld [vmem:[#allocation7 + $0x1ec] sm:$0xf]
        %v2118 = vld [vmem:[#allocation7 + $0x1f0] sm:$0xf]
        %v2119 = vld [vmem:[#allocation7 + $0x1f4] sm:$0xf]
        %v2120 = vld [vmem:[#allocation7 + $0x1f8] sm:$0xf]
        %v2121 = vld [vmem:[#allocation7 + $0x1fc] sm:$0xf]
        %v2122 = vld [vmem:[#allocation7 + $0x200] sm:$0xf]
        %v2123 = vld [vmem:[#allocation7 + $0x204] sm:$0xf]
        %v2124 = vld [vmem:[#allocation7 + $0x208] sm:$0xf]
        %v2125 = vld [vmem:[#allocation7 + $0x20c] sm:$0xf]
        %v2126 = vld [vmem:[#allocation7 + $0x210] sm:$0xf]
        %v2127 = vld [vmem:[#allocation7 + $0x214] sm:$0xf]
        %v2128 = vld [vmem:[#allocation7 + $0x218] sm:$0xf]
        %v2129 = vld [vmem:[#allocation7 + $0x21c] sm:$0xf]
        %v2130 = vld [vmem:[#allocation7 + $0x220] sm:$0xf]
        %v2131 = vld [vmem:[#allocation7 + $0x224] sm:$0xf]
        %v2132 = vld [vmem:[#allocation7 + $0x228] sm:$0xf]
        %v2133 = vld [vmem:[#allocation7 + $0x22c] sm:$0xf]
        %v2134 = vld [vmem:[#allocation7 + $0x230] sm:$0xf]
        %v2135 = vld [vmem:[#allocation7 + $0x234] sm:$0xf]
        %v2136 = vld [vmem:[#allocation7 + $0x238] sm:$0xf]
        %v2137 = vld [vmem:[#allocation7 + $0x23c] sm:$0xf]
        %v2138 = vld [vmem:[%s5] sm:$0x1]
        %v2140 = vlaneseq
        %v2141 = vshrl.u32 %v2140, 7
        %v2142 = vsub.s32 0, %v2141
        %v2143 = vrot.slane %v2138, %v2142
        %v2289 = vunpack.c.l.b16 %v1994
        %v2290 = vunpack.c.l.b16 %v1995
        %v2291 = vunpack.c.l.b16 %v1996
        %v2292 = vunpack.c.l.b16 %v1997
        %v2293 = vunpack.c.l.b16 %v1998
        %v2294 = vunpack.c.l.b16 %v1999
        %v2295 = vunpack.c.l.b16 %v2000
        %v2296 = vunpack.c.l.b16 %v2001
        %v2297 = vunpack.c.l.b16 %v2002
        %v2298 = vunpack.c.l.b16 %v2003
        %v2299 = vunpack.c.l.b16 %v2004
        %v2300 = vunpack.c.l.b16 %v2005
        %v2301 = vunpack.c.l.b16 %v2006
        %v2302 = vunpack.c.l.b16 %v2007
        %v2303 = vunpack.c.l.b16 %v2008
        %v2304 = vunpack.c.l.b16 %v2009
        %v2305 = vunpack.c.l.b16 %v2010
        %v2306 = vunpack.c.l.b16 %v2011
        %v2307 = vunpack.c.l.b16 %v2012
        %v2308 = vunpack.c.l.b16 %v2013
        %v2309 = vunpack.c.l.b16 %v2014
        %v2310 = vunpack.c.l.b16 %v2015
        %v2311 = vunpack.c.l.b16 %v2016
        %v2312 = vunpack.c.l.b16 %v2017
        %v2313 = vunpack.c.l.b16 %v2018
        %v2314 = vunpack.c.l.b16 %v2019
        %v2315 = vunpack.c.l.b16 %v2020
        %v2316 = vunpack.c.l.b16 %v2021
        %v2317 = vunpack.c.l.b16 %v2022
        %v2318 = vunpack.c.l.b16 %v2023
        %v2319 = vunpack.c.l.b16 %v2024
        %v2320 = vunpack.c.l.b16 %v2025
        %v2321 = vunpack.c.l.b16 %v2026
        %v2322 = vunpack.c.l.b16 %v2027
        %v2323 = vunpack.c.l.b16 %v2028
        %v2324 = vunpack.c.l.b16 %v2029
        %v2325 = vunpack.c.l.b16 %v2030
        %v2326 = vunpack.c.l.b16 %v2031
        %v2327 = vunpack.c.l.b16 %v2032
        %v2328 = vunpack.c.l.b16 %v2033
        %v2329 = vunpack.c.l.b16 %v2034
        %v2330 = vunpack.c.l.b16 %v2035
        %v2331 = vunpack.c.l.b16 %v2036
        %v2332 = vunpack.c.l.b16 %v2037
        %v2333 = vunpack.c.l.b16 %v2038
        %v2334 = vunpack.c.l.b16 %v2039
        %v2335 = vunpack.c.l.b16 %v2040
        %v2336 = vunpack.c.l.b16 %v2041
        %v2337 = vunpack.c.l.b16 %v2042
        %v2338 = vunpack.c.l.b16 %v2043
        %v2339 = vunpack.c.l.b16 %v2044
        %v2340 = vunpack.c.l.b16 %v2045
        %v2341 = vunpack.c.l.b16 %v2046
        %v2342 = vunpack.c.l.b16 %v2047
        %v2343 = vunpack.c.l.b16 %v2048
        %v2344 = vunpack.c.l.b16 %v2049
        %v2345 = vunpack.c.l.b16 %v2050
        %v2346 = vunpack.c.l.b16 %v2051
        %v2347 = vunpack.c.l.b16 %v2052
        %v2348 = vunpack.c.l.b16 %v2053
        %v2349 = vunpack.c.l.b16 %v2054
        %v2350 = vunpack.c.l.b16 %v2055
        %v2351 = vunpack.c.l.b16 %v2056
        %v2352 = vunpack.c.l.b16 %v2057
        %v2353 = vunpack.c.l.b16 %v2058
        %v2354 = vunpack.c.l.b16 %v2059
        %v2355 = vunpack.c.l.b16 %v2060
        %v2356 = vunpack.c.l.b16 %v2061
        %v2357 = vunpack.c.l.b16 %v2062
        %v2358 = vunpack.c.l.b16 %v2063
        %v2359 = vunpack.c.l.b16 %v2064
        %v2360 = vunpack.c.l.b16 %v2065
        %v2361 = vunpack.c.l.b16 %v2066
        %v2362 = vunpack.c.l.b16 %v2067
        %v2363 = vunpack.c.l.b16 %v2068
        %v2364 = vunpack.c.l.b16 %v2069
        %v2365 = vunpack.c.l.b16 %v2070
        %v2366 = vunpack.c.l.b16 %v2071
        %v2367 = vunpack.c.l.b16 %v2072
        %v2368 = vunpack.c.l.b16 %v2073
        %v2369 = vunpack.c.l.b16 %v2074
        %v2370 = vunpack.c.l.b16 %v2075
        %v2371 = vunpack.c.l.b16 %v2076
        %v2372 = vunpack.c.l.b16 %v2077
        %v2373 = vunpack.c.l.b16 %v2078
        %v2374 = vunpack.c.l.b16 %v2079
        %v2375 = vunpack.c.l.b16 %v2080
        %v2376 = vunpack.c.l.b16 %v2081
        %v2377 = vunpack.c.l.b16 %v2082
        %v2378 = vunpack.c.l.b16 %v2083
        %v2379 = vunpack.c.l.b16 %v2084
        %v2380 = vunpack.c.l.b16 %v2085
        %v2381 = vunpack.c.l.b16 %v2086
        %v2382 = vunpack.c.l.b16 %v2087
        %v2383 = vunpack.c.l.b16 %v2088
        %v2384 = vunpack.c.l.b16 %v2089
        %v2385 = vunpack.c.l.b16 %v2090
        %v2386 = vunpack.c.l.b16 %v2091
        %v2387 = vunpack.c.l.b16 %v2092
        %v2388 = vunpack.c.l.b16 %v2093
        %v2389 = vunpack.c.l.b16 %v2094
        %v2390 = vunpack.c.l.b16 %v2095
        %v2391 = vunpack.c.l.b16 %v2096
        %v2392 = vunpack.c.l.b16 %v2097
        %v2393 = vunpack.c.l.b16 %v2098
        %v2394 = vunpack.c.l.b16 %v2099
        %v2395 = vunpack.c.l.b16 %v2100
        %v2396 = vunpack.c.l.b16 %v2101
        %v2397 = vunpack.c.l.b16 %v2102
        %v2398 = vunpack.c.l.b16 %v2103
        %v2399 = vunpack.c.l.b16 %v2104
        %v2400 = vunpack.c.l.b16 %v2105
        %v2401 = vunpack.c.l.b16 %v2106
        %v2402 = vunpack.c.l.b16 %v2107
        %v2403 = vunpack.c.l.b16 %v2108
        %v2404 = vunpack.c.l.b16 %v2109
        %v2405 = vunpack.c.l.b16 %v2110
        %v2406 = vunpack.c.l.b16 %v2111
        %v2407 = vunpack.c.l.b16 %v2112
        %v2408 = vunpack.c.l.b16 %v2113
        %v2409 = vunpack.c.l.b16 %v2114
        %v2410 = vunpack.c.l.b16 %v2115
        %v2411 = vunpack.c.l.b16 %v2116
        %v2412 = vunpack.c.l.b16 %v2117
        %v2413 = vunpack.c.l.b16 %v2118
        %v2414 = vunpack.c.l.b16 %v2119
        %v2415 = vunpack.c.l.b16 %v2120
        %v2416 = vunpack.c.l.b16 %v2121
        %v2417 = vunpack.c.l.b16 %v2122
        %v2418 = vunpack.c.l.b16 %v2123
        %v2419 = vunpack.c.l.b16 %v2124
        %v2420 = vunpack.c.l.b16 %v2125
        %v2421 = vunpack.c.l.b16 %v2126
        %v2422 = vunpack.c.l.b16 %v2127
        %v2423 = vunpack.c.l.b16 %v2128
        %v2424 = vunpack.c.l.b16 %v2129
        %v2425 = vunpack.c.l.b16 %v2130
        %v2426 = vunpack.c.l.b16 %v2131
        %v2427 = vunpack.c.l.b16 %v2132
        %v2428 = vunpack.c.l.b16 %v2133
        %v2429 = vunpack.c.l.b16 %v2134
        %v2430 = vunpack.c.l.b16 %v2135
        %v2431 = vunpack.c.l.b16 %v2136
        %v2432 = vunpack.c.l.b16 %v2137
        %v2433 = vpack.c.b16 %v2290, %v2289
        %v2434 = vpack.c.b16 %v2292, %v2291
        %v2435 = vpack.c.b16 %v2294, %v2293
        %v2436 = vpack.c.b16 %v2296, %v2295
        %v2437 = vpack.c.b16 %v2298, %v2297
        %v2438 = vpack.c.b16 %v2300, %v2299
        %v2439 = vpack.c.b16 %v2302, %v2301
        %v2440 = vpack.c.b16 %v2304, %v2303
        %v2441 = vpack.c.b16 %v2306, %v2305
        %v2442 = vpack.c.b16 %v2308, %v2307
        %v2443 = vpack.c.b16 %v2310, %v2309
        %v2444 = vpack.c.b16 %v2312, %v2311
        %v2445 = vpack.c.b16 %v2314, %v2313
        %v2446 = vpack.c.b16 %v2316, %v2315
        %v2447 = vpack.c.b16 %v2318, %v2317
        %v2448 = vpack.c.b16 %v2320, %v2319
        %v2449 = vpack.c.b16 %v2322, %v2321
        %v2450 = vpack.c.b16 %v2324, %v2323
        %v2451 = vpack.c.b16 %v2326, %v2325
        %v2452 = vpack.c.b16 %v2328, %v2327
        %v2453 = vpack.c.b16 %v2330, %v2329
        %v2454 = vpack.c.b16 %v2332, %v2331
        %v2455 = vpack.c.b16 %v2334, %v2333
        %v2456 = vpack.c.b16 %v2336, %v2335
        %v2457 = vpack.c.b16 %v2338, %v2337
        %v2458 = vpack.c.b16 %v2340, %v2339
        %v2459 = vpack.c.b16 %v2342, %v2341
        %v2460 = vpack.c.b16 %v2344, %v2343
        %v2461 = vpack.c.b16 %v2346, %v2345
        %v2462 = vpack.c.b16 %v2348, %v2347
        %v2463 = vpack.c.b16 %v2350, %v2349
        %v2464 = vpack.c.b16 %v2352, %v2351
        %v2465 = vpack.c.b16 %v2354, %v2353
        %v2466 = vpack.c.b16 %v2356, %v2355
        %v2467 = vpack.c.b16 %v2358, %v2357
        %v2468 = vpack.c.b16 %v2360, %v2359
        %v2469 = vpack.c.b16 %v2362, %v2361
        %v2470 = vpack.c.b16 %v2364, %v2363
        %v2471 = vpack.c.b16 %v2366, %v2365
        %v2472 = vpack.c.b16 %v2368, %v2367
        %v2473 = vpack.c.b16 %v2370, %v2369
        %v2474 = vpack.c.b16 %v2372, %v2371
        %v2475 = vpack.c.b16 %v2374, %v2373
        %v2476 = vpack.c.b16 %v2376, %v2375
        %v2477 = vpack.c.b16 %v2378, %v2377
        %v2478 = vpack.c.b16 %v2380, %v2379
        %v2479 = vpack.c.b16 %v2382, %v2381
        %v2480 = vpack.c.b16 %v2384, %v2383
        %v2481 = vpack.c.b16 %v2386, %v2385
        %v2482 = vpack.c.b16 %v2388, %v2387
        %v2483 = vpack.c.b16 %v2390, %v2389
        %v2484 = vpack.c.b16 %v2392, %v2391
        %v2485 = vpack.c.b16 %v2394, %v2393
        %v2486 = vpack.c.b16 %v2396, %v2395
        %v2487 = vpack.c.b16 %v2398, %v2397
        %v2488 = vpack.c.b16 %v2400, %v2399
        %v2489 = vpack.c.b16 %v2402, %v2401
        %v2490 = vpack.c.b16 %v2404, %v2403
        %v2491 = vpack.c.b16 %v2406, %v2405
        %v2492 = vpack.c.b16 %v2408, %v2407
        %v2493 = vpack.c.b16 %v2410, %v2409
        %v2494 = vpack.c.b16 %v2412, %v2411
        %v2495 = vpack.c.b16 %v2414, %v2413
        %v2496 = vpack.c.b16 %v2416, %v2415
        %v2497 = vpack.c.b16 %v2418, %v2417
        %v2498 = vpack.c.b16 %v2420, %v2419
        %v2499 = vpack.c.b16 %v2422, %v2421
        %v2500 = vpack.c.b16 %v2424, %v2423
        %v2501 = vpack.c.b16 %v2426, %v2425
        %v2502 = vpack.c.b16 %v2428, %v2427
        %v2503 = vpack.c.b16 %v2430, %v2429
        %v2504 = vpack.c.b16 %v2432, %v2431
        %2577 = vmatprep.subr.bf16.mxu0 0
        %2578 = vmatpush1.bf16.msra.mxu0 %v2440
        %2579 = vmatprep.subr.bf16.mxu0 0
        %2580 = vmatpush1.bf16.msra.mxu0 %v2439
        %2581 = vmatprep.subr.bf16.mxu0 0
        %2582 = vmatpush1.bf16.msra.mxu0 %v2438
        %2583 = vmatprep.subr.bf16.mxu0 0
        %2584 = vmatpush1.bf16.msra.mxu0 %v2437
        %2585 = vmatprep.subr.bf16.mxu0 0
        %2586 = vmatpush1.bf16.msra.mxu0 %v2436
        %2587 = vmatprep.subr.bf16.mxu0 0
        %2588 = vmatpush1.bf16.msra.mxu0 %v2435
        %2589 = vmatprep.subr.bf16.mxu0 0
        %2590 = vmatpush1.bf16.msra.mxu0 %v2434
        %2591 = vmatprep.subr.bf16.mxu0 0
        %2592 = vmatpush1.bf16.msra.mxu0 %v2433
        %2593 = vmatprep.subr.bf16.mxu0 0
        %2594 = vmatpush2.bf16.msra.mxu0 %v2448
        %2595 = vmatprep.subr.bf16.mxu0 0
        %2596 = vmatpush2.bf16.msra.mxu0 %v2447
        %2597 = vmatprep.subr.bf16.mxu0 0
        %2598 = vmatpush2.bf16.msra.mxu0 %v2446
        %2599 = vmatprep.subr.bf16.mxu0 0
        %2600 = vmatpush2.bf16.msra.mxu0 %v2445
        %2601 = vmatprep.subr.bf16.mxu0 0
        %2602 = vmatpush2.bf16.msra.mxu0 %v2444
        %2603 = vmatprep.subr.bf16.mxu0 0
        %2604 = vmatpush2.bf16.msra.mxu0 %v2443
        %2605 = vmatprep.subr.bf16.mxu0 0
        %2606 = vmatpush2.bf16.msra.mxu0 %v2442
        %2607 = vmatprep.subr.bf16.mxu0 0
        %2608 = vmatpush2.bf16.msra.mxu0 %v2441
        %2609 = vmatprep.mubr.bf16.mxu0 0
        %2610 = vmatmul.mubr.bf16.gmra.mxu0 %v1632
        %v2611 = vpop.f32.mrf.mxu0
        %v2612 = vadd.f32 %v2143, %v2611
        %v2613 = vpop.f32.mrf.mxu0
        %v2614 = vpop.f32.mrf.mxu0
        %v2615 = vadd.f32 %v2143, %v2614
        %v2616 = vpop.f32.mrf.mxu0
        %2617 = vmatprep.mubr.bf16.mxu0 %v736
        %2618 = vmatmul.mubr.bf16.gmra.mxu0 %v1633
        %v2619 = vpop.f32.mrf.mxu0
        %v2620 = vadd.f32 %v2143, %v2619
        %v2621 = vpop.f32.mrf.mxu0
        %v2622 = vpop.f32.mrf.mxu0
        %v2623 = vadd.f32 %v2143, %v2622
        %v2624 = vpop.f32.mrf.mxu0
        %2625 = vmatprep.mubr.bf16.mxu0 %v737
        %2626 = vmatmul.mubr.bf16.gmra.mxu0 %v1634
        %v2627 = vpop.f32.mrf.mxu0
        %v2628 = vadd.f32 %v2143, %v2627
        %v2629 = vpop.f32.mrf.mxu0
        %v2630 = vpop.f32.mrf.mxu0
        %v2631 = vadd.f32 %v2143, %v2630
        %v2632 = vpop.f32.mrf.mxu0
        %2633 = vmatprep.mubr.bf16.mxu0 %v738
        %2634 = vmatmul.mubr.bf16.gmra.mxu0 %v1635
        %v2635 = vpop.f32.mrf.mxu0
        %v2636 = vadd.f32 %v2143, %v2635
        %v2637 = vpop.f32.mrf.mxu0
        %v2638 = vpop.f32.mrf.mxu0
        %v2639 = vadd.f32 %v2143, %v2638
        %v2640 = vpop.f32.mrf.mxu0
        %2641 = vmatprep.mubr.bf16.mxu0 %v739
        %2642 = vmatmul.mubr.bf16.gmra.mxu0 %v1636
        %v2643 = vpop.f32.mrf.mxu0
        %v2644 = vadd.f32 %v2143, %v2643
        %v2645 = vpop.f32.mrf.mxu0
        %v2646 = vpop.f32.mrf.mxu0
        %v2647 = vadd.f32 %v2143, %v2646
        %v2648 = vpop.f32.mrf.mxu0
        %2649 = vmatprep.mubr.bf16.mxu0 %v740
        %2650 = vmatmul.mubr.bf16.gmra.mxu0 %v1637
        %v2651 = vpop.f32.mrf.mxu0
        %v2652 = vadd.f32 %v2143, %v2651
        %v2653 = vpop.f32.mrf.mxu0
        %v2654 = vpop.f32.mrf.mxu0
        %v2655 = vadd.f32 %v2143, %v2654
        %v2656 = vpop.f32.mrf.mxu0
        %2657 = vmatprep.mubr.bf16.mxu0 %v741
        %2658 = vmatmul.mubr.bf16.gmra.mxu0 %v1638
        %v2659 = vpop.f32.mrf.mxu0
        %v2660 = vadd.f32 %v2143, %v2659
        %v2661 = vpop.f32.mrf.mxu0
        %v2662 = vpop.f32.mrf.mxu0
        %v2663 = vadd.f32 %v2143, %v2662
        %v2664 = vpop.f32.mrf.mxu0
        %2665 = vmatprep.mubr.bf16.mxu0 %v742
        %2666 = vmatmul.mubr.bf16.gmra.mxu0 %v1639
        %v2667 = vpop.f32.mrf.mxu0
        %v2668 = vadd.f32 %v2143, %v2667
        %v2669 = vpop.f32.mrf.mxu0
        %v2670 = vpop.f32.mrf.mxu0
        %v2671 = vadd.f32 %v2143, %v2670
        %v2672 = vpop.f32.mrf.mxu0
        %2673 = vmatprep.mubr.bf16.mxu0 %v743
        %2674 = vmatmul.mubr.bf16.gmra.mxu0 %v1640
        %v2675 = vpop.f32.mrf.mxu0
        %v2676 = vadd.f32 %v2143, %v2675
        %v2677 = vpop.f32.mrf.mxu0
        %v2678 = vpop.f32.mrf.mxu0
        %v2679 = vadd.f32 %v2143, %v2678
        %v2680 = vpop.f32.mrf.mxu0
        %2681 = vmatprep.mubr.bf16.mxu0 %v744
        %2682 = vmatmul.mubr.bf16.gmra.mxu0 %v1641
        %v2683 = vpop.f32.mrf.mxu0
        %v2684 = vadd.f32 %v2143, %v2683
        %v2685 = vpop.f32.mrf.mxu0
        %v2686 = vpop.f32.mrf.mxu0
        %v2687 = vadd.f32 %v2143, %v2686
        %v2688 = vpop.f32.mrf.mxu0
        %2689 = vmatprep.mubr.bf16.mxu0 %v745
        %2690 = vmatmul.mubr.bf16.gmra.mxu0 %v1642
        %v2691 = vpop.f32.mrf.mxu0
        %v2692 = vadd.f32 %v2143, %v2691
        %v2693 = vpop.f32.mrf.mxu0
        %v2694 = vpop.f32.mrf.mxu0
        %v2695 = vadd.f32 %v2143, %v2694
        %v2696 = vpop.f32.mrf.mxu0
        %2697 = vmatprep.mubr.bf16.mxu0 %v746
        %2698 = vmatmul.mubr.bf16.gmra.mxu0 %v1643
        %v2699 = vpop.f32.mrf.mxu0
        %v2700 = vadd.f32 %v2143, %v2699
        %v2701 = vpop.f32.mrf.mxu0
        %v2702 = vpop.f32.mrf.mxu0
        %v2703 = vadd.f32 %v2143, %v2702
        %v2704 = vpop.f32.mrf.mxu0
        %2705 = vmatprep.mubr.bf16.mxu0 %v747
        %2706 = vmatmul.mubr.bf16.gmra.mxu0 %v1644
        %v2707 = vpop.f32.mrf.mxu0
        %v2708 = vadd.f32 %v2143, %v2707
        %v2709 = vpop.f32.mrf.mxu0
        %v2710 = vpop.f32.mrf.mxu0
        %v2711 = vadd.f32 %v2143, %v2710
        %v2712 = vpop.f32.mrf.mxu0
        %2713 = vmatprep.mubr.bf16.mxu0 %v748
        %2714 = vmatmul.mubr.bf16.gmra.mxu0 %v1645
        %v2715 = vpop.f32.mrf.mxu0
        %v2716 = vadd.f32 %v2143, %v2715
        %v2717 = vpop.f32.mrf.mxu0
        %v2718 = vpop.f32.mrf.mxu0
        %v2719 = vadd.f32 %v2143, %v2718
        %v2720 = vpop.f32.mrf.mxu0
        %2721 = vmatprep.mubr.bf16.mxu0 %v749
        %2722 = vmatmul.mubr.bf16.gmra.mxu0 %v1646
        %v2723 = vpop.f32.mrf.mxu0
        %v2724 = vadd.f32 %v2143, %v2723
        %v2725 = vpop.f32.mrf.mxu0
        %v2726 = vpop.f32.mrf.mxu0
        %v2727 = vadd.f32 %v2143, %v2726
        %v2728 = vpop.f32.mrf.mxu0
        %2729 = vmatprep.mubr.bf16.mxu0 %v750
        %2730 = vmatmul.mubr.bf16.gmra.mxu0 %v1647
        %v2731 = vpop.f32.mrf.mxu0
        %v2732 = vadd.f32 %v2143, %v2731
        %v2733 = vpop.f32.mrf.mxu0
        %v2734 = vpop.f32.mrf.mxu0
        %v2735 = vadd.f32 %v2143, %v2734
        %v2736 = vpop.f32.mrf.mxu0
        %2737 = vdwg.mxu0
        %2738 = vmatprep.subr.bf16.mxu0 0
        %2739 = vmatpush1.bf16.msra.mxu0 %v2456
        %2740 = vmatprep.subr.bf16.mxu0 0
        %2741 = vmatpush1.bf16.msra.mxu0 %v2455
        %2742 = vmatprep.subr.bf16.mxu0 0
        %2743 = vmatpush1.bf16.msra.mxu0 %v2454
        %2744 = vmatprep.subr.bf16.mxu0 0
        %2745 = vmatpush1.bf16.msra.mxu0 %v2453
        %2746 = vmatprep.subr.bf16.mxu0 0
        %2747 = vmatpush1.bf16.msra.mxu0 %v2452
        %2748 = vmatprep.subr.bf16.mxu0 0
        %2749 = vmatpush1.bf16.msra.mxu0 %v2451
        %2750 = vmatprep.subr.bf16.mxu0 0
        %2751 = vmatpush1.bf16.msra.mxu0 %v2450
        %2752 = vmatprep.subr.bf16.mxu0 0
        %2753 = vmatpush1.bf16.msra.mxu0 %v2449
        %2754 = vmatprep.subr.bf16.mxu0 0
        %2755 = vmatpush2.bf16.msra.mxu0 %v2464
        %2756 = vmatprep.subr.bf16.mxu0 0
        %2757 = vmatpush2.bf16.msra.mxu0 %v2463
        %2758 = vmatprep.subr.bf16.mxu0 0
        %2759 = vmatpush2.bf16.msra.mxu0 %v2462
        %2760 = vmatprep.subr.bf16.mxu0 0
        %2761 = vmatpush2.bf16.msra.mxu0 %v2461
        %2762 = vmatprep.subr.bf16.mxu0 0
        %2763 = vmatpush2.bf16.msra.mxu0 %v2460
        %2764 = vmatprep.subr.bf16.mxu0 0
        %2765 = vmatpush2.bf16.msra.mxu0 %v2459
        %2766 = vmatprep.subr.bf16.mxu0 0
        %2767 = vmatpush2.bf16.msra.mxu0 %v2458
        %2768 = vmatprep.subr.bf16.mxu0 0
        %2769 = vmatpush2.bf16.msra.mxu0 %v2457
        %2770 = vmatprep.mubr.bf16.mxu0 %v1633
        %2771 = vmatmul.mubr.bf16.gmra.mxu0 %v1976
        %v2772 = vpop.f32.mrf.mxu0
        %v2773 = vadd.f32 %v2612, %v2772
        %v2774 = vpop.f32.mrf.mxu0
        %v2775 = vpop.f32.mrf.mxu0
        %v2776 = vadd.f32 %v2615, %v2775
        %v2777 = vpop.f32.mrf.mxu0
        %2778 = vmatprep.mubr.bf16.mxu0 %v1634
        %2779 = vmatmul.mubr.bf16.gmra.mxu0 %v1977
        %v2780 = vpop.f32.mrf.mxu0
        %v2781 = vadd.f32 %v2620, %v2780
        %v2782 = vpop.f32.mrf.mxu0
        %v2783 = vpop.f32.mrf.mxu0
        %v2784 = vadd.f32 %v2623, %v2783
        %v2785 = vpop.f32.mrf.mxu0
        %2786 = vmatprep.mubr.bf16.mxu0 %v1635
        %2787 = vmatmul.mubr.bf16.gmra.mxu0 %v1978
        %v2788 = vpop.f32.mrf.mxu0
        %v2789 = vadd.f32 %v2628, %v2788
        %v2790 = vpop.f32.mrf.mxu0
        %v2791 = vpop.f32.mrf.mxu0
        %v2792 = vadd.f32 %v2631, %v2791
        %v2793 = vpop.f32.mrf.mxu0
        %2794 = vmatprep.mubr.bf16.mxu0 %v1636
        %2795 = vmatmul.mubr.bf16.gmra.mxu0 %v1979
        %v2796 = vpop.f32.mrf.mxu0
        %v2797 = vadd.f32 %v2636, %v2796
        %v2798 = vpop.f32.mrf.mxu0
        %v2799 = vpop.f32.mrf.mxu0
        %v2800 = vadd.f32 %v2639, %v2799
        %v2801 = vpop.f32.mrf.mxu0
        %2802 = vmatprep.mubr.bf16.mxu0 %v1637
        %2803 = vmatmul.mubr.bf16.gmra.mxu0 %v1980
        %v2804 = vpop.f32.mrf.mxu0
        %v2805 = vadd.f32 %v2644, %v2804
        %v2806 = vpop.f32.mrf.mxu0
        %v2807 = vpop.f32.mrf.mxu0
        %v2808 = vadd.f32 %v2647, %v2807
        %v2809 = vpop.f32.mrf.mxu0
        %2810 = vmatprep.mubr.bf16.mxu0 %v1638
        %2811 = vmatmul.mubr.bf16.gmra.mxu0 %v1981
        %v2812 = vpop.f32.mrf.mxu0
        %v2813 = vadd.f32 %v2652, %v2812
        %v2814 = vpop.f32.mrf.mxu0
        %v2815 = vpop.f32.mrf.mxu0
        %v2816 = vadd.f32 %v2655, %v2815
        %v2817 = vpop.f32.mrf.mxu0
        %2818 = vmatprep.mubr.bf16.mxu0 %v1639
        %2819 = vmatmul.mubr.bf16.gmra.mxu0 %v1982
        %v2820 = vpop.f32.mrf.mxu0
        %v2821 = vadd.f32 %v2660, %v2820
        %v2822 = vpop.f32.mrf.mxu0
        %v2823 = vpop.f32.mrf.mxu0
        %v2824 = vadd.f32 %v2663, %v2823
        %v2825 = vpop.f32.mrf.mxu0
        %2826 = vmatprep.mubr.bf16.mxu0 %v1640
        %2827 = vmatmul.mubr.bf16.gmra.mxu0 %v1983
        %v2828 = vpop.f32.mrf.mxu0
        %v2829 = vadd.f32 %v2668, %v2828
        %v2830 = vpop.f32.mrf.mxu0
        %v2831 = vpop.f32.mrf.mxu0
        %v2832 = vadd.f32 %v2671, %v2831
        %v2833 = vpop.f32.mrf.mxu0
        %2834 = vmatprep.mubr.bf16.mxu0 %v1641
        %2835 = vmatmul.mubr.bf16.gmra.mxu0 %v1984
        %v2836 = vpop.f32.mrf.mxu0
        %v2837 = vadd.f32 %v2676, %v2836
        %v2838 = vpop.f32.mrf.mxu0
        %v2839 = vpop.f32.mrf.mxu0
        %v2840 = vadd.f32 %v2679, %v2839
        %v2841 = vpop.f32.mrf.mxu0
        %2842 = vmatprep.mubr.bf16.mxu0 %v1642
        %2843 = vmatmul.mubr.bf16.gmra.mxu0 %v1985
        %v2844 = vpop.f32.mrf.mxu0
        %v2845 = vadd.f32 %v2684, %v2844
        %v2846 = vpop.f32.mrf.mxu0
        %v2847 = vpop.f32.mrf.mxu0
        %v2848 = vadd.f32 %v2687, %v2847
        %v2849 = vpop.f32.mrf.mxu0
        %2850 = vmatprep.mubr.bf16.mxu0 %v1643
        %2851 = vmatmul.mubr.bf16.gmra.mxu0 %v1986
        %v2852 = vpop.f32.mrf.mxu0
        %v2853 = vadd.f32 %v2692, %v2852
        %v2854 = vpop.f32.mrf.mxu0
        %v2855 = vpop.f32.mrf.mxu0
        %v2856 = vadd.f32 %v2695, %v2855
        %v2857 = vpop.f32.mrf.mxu0
        %2858 = vmatprep.mubr.bf16.mxu0 %v1644
        %2859 = vmatmul.mubr.bf16.gmra.mxu0 %v1987
        %v2860 = vpop.f32.mrf.mxu0
        %v2861 = vadd.f32 %v2700, %v2860
        %v2862 = vpop.f32.mrf.mxu0
        %v2863 = vpop.f32.mrf.mxu0
        %v2864 = vadd.f32 %v2703, %v2863
        %v2865 = vpop.f32.mrf.mxu0
        %2866 = vmatprep.mubr.bf16.mxu0 %v1645
        %2867 = vmatmul.mubr.bf16.gmra.mxu0 %v1988
        %v2868 = vpop.f32.mrf.mxu0
        %v2869 = vadd.f32 %v2708, %v2868
        %v2870 = vpop.f32.mrf.mxu0
        %v2871 = vpop.f32.mrf.mxu0
        %v2872 = vadd.f32 %v2711, %v2871
        %v2873 = vpop.f32.mrf.mxu0
        %2874 = vmatprep.mubr.bf16.mxu0 %v1646
        %2875 = vmatmul.mubr.bf16.gmra.mxu0 %v1989
        %v2876 = vpop.f32.mrf.mxu0
        %v2877 = vadd.f32 %v2716, %v2876
        %v2878 = vpop.f32.mrf.mxu0
        %v2879 = vpop.f32.mrf.mxu0
        %v2880 = vadd.f32 %v2719, %v2879
        %v2881 = vpop.f32.mrf.mxu0
        %2882 = vmatprep.mubr.bf16.mxu0 %v1647
        %2883 = vmatmul.mubr.bf16.gmra.mxu0 %v1990
        %v2884 = vpop.f32.mrf.mxu0
        %v2885 = vadd.f32 %v2724, %v2884
        %v2886 = vpop.f32.mrf.mxu0
        %v2887 = vpop.f32.mrf.mxu0
        %v2888 = vadd.f32 %v2727, %v2887
        %v2889 = vpop.f32.mrf.mxu0
        %2890 = vmatprep.mubr.bf16.mxu0 %v1648
        %2891 = vmatmul.mubr.bf16.gmra.mxu0 %v1991
        %v2892 = vpop.f32.mrf.mxu0
        %v2893 = vadd.f32 %v2732, %v2892
        %v2894 = vpop.f32.mrf.mxu0
        %v2895 = vpop.f32.mrf.mxu0
        %v2896 = vadd.f32 %v2735, %v2895
        %v2897 = vpop.f32.mrf.mxu0
        %2898 = vdwg.mxu0
        %2899 = vmatprep.subr.bf16.mxu0 0
        %2900 = vmatpush1.bf16.msra.mxu0 %v2472
        %2901 = vmatprep.subr.bf16.mxu0 0
        %2902 = vmatpush1.bf16.msra.mxu0 %v2471
        %2903 = vmatprep.subr.bf16.mxu0 0
        %2904 = vmatpush1.bf16.msra.mxu0 %v2470
        %2905 = vmatprep.subr.bf16.mxu0 0
        %2906 = vmatpush1.bf16.msra.mxu0 %v2469
        %2907 = vmatprep.subr.bf16.mxu0 0
        %2908 = vmatpush1.bf16.msra.mxu0 %v2468
        %2909 = vmatprep.subr.bf16.mxu0 0
        %2910 = vmatpush1.bf16.msra.mxu0 %v2467
        %2911 = vmatprep.subr.bf16.mxu0 0
        %2912 = vmatpush1.bf16.msra.mxu0 %v2466
        %2913 = vmatprep.subr.bf16.mxu0 0
        %2914 = vmatpush1.bf16.msra.mxu0 %v2465
        %2915 = vmatprep.subr.bf16.mxu0 0
        %2916 = vmatpush2.bf16.msra.mxu0 %v2480
        %2917 = vmatprep.subr.bf16.mxu0 0
        %2918 = vmatpush2.bf16.msra.mxu0 %v2479
        %2919 = vmatprep.subr.bf16.mxu0 0
        %2920 = vmatpush2.bf16.msra.mxu0 %v2478
        %2921 = vmatprep.subr.bf16.mxu0 0
        %2922 = vmatpush2.bf16.msra.mxu0 %v2477
        %2923 = vmatprep.subr.bf16.mxu0 0
        %2924 = vmatpush2.bf16.msra.mxu0 %v2476
        %2925 = vmatprep.subr.bf16.mxu0 0
        %2926 = vmatpush2.bf16.msra.mxu0 %v2475
        %2927 = vmatprep.subr.bf16.mxu0 0
        %2928 = vmatpush2.bf16.msra.mxu0 %v2474
        %2929 = vmatprep.subr.bf16.mxu0 0
        %2930 = vmatpush2.bf16.msra.mxu0 %v2473
        %2931 = vmatprep.mubr.bf16.mxu0 %v1977
        %2932 = vmatmul.mubr.bf16.gmra.mxu0 %v736
        %v2933 = vpop.f32.mrf.mxu0
        %v2934 = vadd.f32 %v2773, %v2933
        %v2935 = vpop.f32.mrf.mxu0
        %v2936 = vpop.f32.mrf.mxu0
        %v2937 = vadd.f32 %v2776, %v2936
        %v2938 = vpop.f32.mrf.mxu0
        %2939 = vmatprep.mubr.bf16.mxu0 %v1978
        %2940 = vmatmul.mubr.bf16.gmra.mxu0 %v737
        %v2941 = vpop.f32.mrf.mxu0
        %v2942 = vadd.f32 %v2781, %v2941
        %v2943 = vpop.f32.mrf.mxu0
        %v2944 = vpop.f32.mrf.mxu0
        %v2945 = vadd.f32 %v2784, %v2944
        %v2946 = vpop.f32.mrf.mxu0
        %2947 = vmatprep.mubr.bf16.mxu0 %v1979
        %2948 = vmatmul.mubr.bf16.gmra.mxu0 %v738
        %v2949 = vpop.f32.mrf.mxu0
        %v2950 = vadd.f32 %v2789, %v2949
        %v2951 = vpop.f32.mrf.mxu0
        %v2952 = vpop.f32.mrf.mxu0
        %v2953 = vadd.f32 %v2792, %v2952
        %v2954 = vpop.f32.mrf.mxu0
        %2955 = vmatprep.mubr.bf16.mxu0 %v1980
        %2956 = vmatmul.mubr.bf16.gmra.mxu0 %v739
        %v2957 = vpop.f32.mrf.mxu0
        %v2958 = vadd.f32 %v2797, %v2957
        %v2959 = vpop.f32.mrf.mxu0
        %v2960 = vpop.f32.mrf.mxu0
        %v2961 = vadd.f32 %v2800, %v2960
        %v2962 = vpop.f32.mrf.mxu0
        %2963 = vmatprep.mubr.bf16.mxu0 %v1981
        %2964 = vmatmul.mubr.bf16.gmra.mxu0 %v740
        %v2965 = vpop.f32.mrf.mxu0
        %v2966 = vadd.f32 %v2805, %v2965
        %v2967 = vpop.f32.mrf.mxu0
        %v2968 = vpop.f32.mrf.mxu0
        %v2969 = vadd.f32 %v2808, %v2968
        %v2970 = vpop.f32.mrf.mxu0
        %2971 = vmatprep.mubr.bf16.mxu0 %v1982
        %2972 = vmatmul.mubr.bf16.gmra.mxu0 %v741
        %v2973 = vpop.f32.mrf.mxu0
        %v2974 = vadd.f32 %v2813, %v2973
        %v2975 = vpop.f32.mrf.mxu0
        %v2976 = vpop.f32.mrf.mxu0
        %v2977 = vadd.f32 %v2816, %v2976
        %v2978 = vpop.f32.mrf.mxu0
        %2979 = vmatprep.mubr.bf16.mxu0 %v1983
        %2980 = vmatmul.mubr.bf16.gmra.mxu0 %v742
        %v2981 = vpop.f32.mrf.mxu0
        %v2982 = vadd.f32 %v2821, %v2981
        %v2983 = vpop.f32.mrf.mxu0
        %v2984 = vpop.f32.mrf.mxu0
        %v2985 = vadd.f32 %v2824, %v2984
        %v2986 = vpop.f32.mrf.mxu0
        %2987 = vmatprep.mubr.bf16.mxu0 %v1984
        %2988 = vmatmul.mubr.bf16.gmra.mxu0 %v743
        %v2989 = vpop.f32.mrf.mxu0
        %v2990 = vadd.f32 %v2829, %v2989
        %v2991 = vpop.f32.mrf.mxu0
        %v2992 = vpop.f32.mrf.mxu0
        %v2993 = vadd.f32 %v2832, %v2992
        %v2994 = vpop.f32.mrf.mxu0
        %2995 = vmatprep.mubr.bf16.mxu0 %v1985
        %2996 = vmatmul.mubr.bf16.gmra.mxu0 %v744
        %v2997 = vpop.f32.mrf.mxu0
        %v2998 = vadd.f32 %v2837, %v2997
        %v2999 = vpop.f32.mrf.mxu0
        %v3000 = vpop.f32.mrf.mxu0
        %v3001 = vadd.f32 %v2840, %v3000
        %v3002 = vpop.f32.mrf.mxu0
        %3003 = vmatprep.mubr.bf16.mxu0 %v1986
        %3004 = vmatmul.mubr.bf16.gmra.mxu0 %v745
        %v3005 = vpop.f32.mrf.mxu0
        %v3006 = vadd.f32 %v2845, %v3005
        %v3007 = vpop.f32.mrf.mxu0
        %v3008 = vpop.f32.mrf.mxu0
        %v3009 = vadd.f32 %v2848, %v3008
        %v3010 = vpop.f32.mrf.mxu0
        %3011 = vmatprep.mubr.bf16.mxu0 %v1987
        %3012 = vmatmul.mubr.bf16.gmra.mxu0 %v746
        %v3013 = vpop.f32.mrf.mxu0
        %v3014 = vadd.f32 %v2853, %v3013
        %v3015 = vpop.f32.mrf.mxu0
        %v3016 = vpop.f32.mrf.mxu0
        %v3017 = vadd.f32 %v2856, %v3016
        %v3018 = vpop.f32.mrf.mxu0
        %3019 = vmatprep.mubr.bf16.mxu0 %v1988
        %3020 = vmatmul.mubr.bf16.gmra.mxu0 %v747
        %v3021 = vpop.f32.mrf.mxu0
        %v3022 = vadd.f32 %v2861, %v3021
        %v3023 = vpop.f32.mrf.mxu0
        %v3024 = vpop.f32.mrf.mxu0
        %v3025 = vadd.f32 %v2864, %v3024
        %v3026 = vpop.f32.mrf.mxu0
        %3027 = vmatprep.mubr.bf16.mxu0 %v1989
        %3028 = vmatmul.mubr.bf16.gmra.mxu0 %v748
        %v3029 = vpop.f32.mrf.mxu0
        %v3030 = vadd.f32 %v2869, %v3029
        %v3031 = vpop.f32.mrf.mxu0
        %v3032 = vpop.f32.mrf.mxu0
        %v3033 = vadd.f32 %v2872, %v3032
        %v3034 = vpop.f32.mrf.mxu0
        %3035 = vmatprep.mubr.bf16.mxu0 %v1990
        %3036 = vmatmul.mubr.bf16.gmra.mxu0 %v749
        %v3037 = vpop.f32.mrf.mxu0
        %v3038 = vadd.f32 %v2877, %v3037
        %v3039 = vpop.f32.mrf.mxu0
        %v3040 = vpop.f32.mrf.mxu0
        %v3041 = vadd.f32 %v2880, %v3040
        %v3042 = vpop.f32.mrf.mxu0
        %3043 = vmatprep.mubr.bf16.mxu0 %v1991
        %3044 = vmatmul.mubr.bf16.gmra.mxu0 %v750
        %v3045 = vpop.f32.mrf.mxu0
        %v3046 = vadd.f32 %v2885, %v3045
        %v3047 = vpop.f32.mrf.mxu0
        %v3048 = vpop.f32.mrf.mxu0
        %v3049 = vadd.f32 %v2888, %v3048
        %v3050 = vpop.f32.mrf.mxu0
        %3051 = vmatprep.mubr.bf16.mxu0 %v1992
        %3052 = vmatmul.mubr.bf16.gmra.mxu0 %v751
        %v3053 = vpop.f32.mrf.mxu0
        %v3054 = vadd.f32 %v2893, %v3053
        %v3055 = vpop.f32.mrf.mxu0
        %v3056 = vpop.f32.mrf.mxu0
        %v3057 = vadd.f32 %v2896, %v3056
        %v3058 = vpop.f32.mrf.mxu0
        %3059 = vdwg.mxu0
        %3060 = vmatprep.subr.bf16.mxu0 0
        %3061 = vmatpush1.bf16.msra.mxu0 %v2488
        %3062 = vmatprep.subr.bf16.mxu0 0
        %3063 = vmatpush1.bf16.msra.mxu0 %v2487
        %3064 = vmatprep.subr.bf16.mxu0 0
        %3065 = vmatpush1.bf16.msra.mxu0 %v2486
        %3066 = vmatprep.subr.bf16.mxu0 0
        %3067 = vmatpush1.bf16.msra.mxu0 %v2485
        %3068 = vmatprep.subr.bf16.mxu0 0
        %3069 = vmatpush1.bf16.msra.mxu0 %v2484
        %3070 = vmatprep.subr.bf16.mxu0 0
        %3071 = vmatpush1.bf16.msra.mxu0 %v2483
        %3072 = vmatprep.subr.bf16.mxu0 0
        %3073 = vmatpush1.bf16.msra.mxu0 %v2482
        %3074 = vmatprep.subr.bf16.mxu0 0
        %3075 = vmatpush1.bf16.msra.mxu0 %v2481
        %3076 = vmatprep.subr.bf16.mxu0 0
        %3077 = vmatpush2.bf16.msra.mxu0 %v2496
        %3078 = vmatprep.subr.bf16.mxu0 0
        %3079 = vmatpush2.bf16.msra.mxu0 %v2495
        %3080 = vmatprep.subr.bf16.mxu0 0
        %3081 = vmatpush2.bf16.msra.mxu0 %v2494
        %3082 = vmatprep.subr.bf16.mxu0 0
        %3083 = vmatpush2.bf16.msra.mxu0 %v2493
        %3084 = vmatprep.subr.bf16.mxu0 0
        %3085 = vmatpush2.bf16.msra.mxu0 %v2492
        %3086 = vmatprep.subr.bf16.mxu0 0
        %3087 = vmatpush2.bf16.msra.mxu0 %v2491
        %3088 = vmatprep.subr.bf16.mxu0 0
        %3089 = vmatpush2.bf16.msra.mxu0 %v2490
        %3090 = vmatprep.subr.bf16.mxu0 0
        %3091 = vmatpush2.bf16.msra.mxu0 %v2489
        %3092 = vmatprep.mubr.bf16.mxu0 %v737
        %3093 = vmatmul.mubr.bf16.gmra.mxu0 %v1634
        %v3094 = vpop.f32.mrf.mxu0
        %v3095 = vadd.f32 %v2934, %v3094
        %v3096 = vpop.f32.mrf.mxu0
        %v3097 = vpop.f32.mrf.mxu0
        %v3098 = vadd.f32 %v2937, %v3097
        %v3099 = vpop.f32.mrf.mxu0
        %3100 = vmatprep.mubr.bf16.mxu0 %v738
        %3101 = vmatmul.mubr.bf16.gmra.mxu0 %v1635
        %v3102 = vpop.f32.mrf.mxu0
        %v3103 = vadd.f32 %v2942, %v3102
        %v3104 = vpop.f32.mrf.mxu0
        %v3105 = vpop.f32.mrf.mxu0
        %v3106 = vadd.f32 %v2945, %v3105
        %v3107 = vpop.f32.mrf.mxu0
        %3108 = vmatprep.mubr.bf16.mxu0 %v739
        %3109 = vmatmul.mubr.bf16.gmra.mxu0 %v1636
        %v3110 = vpop.f32.mrf.mxu0
        %v3111 = vadd.f32 %v2950, %v3110
        %v3112 = vpop.f32.mrf.mxu0
        %v3113 = vpop.f32.mrf.mxu0
        %v3114 = vadd.f32 %v2953, %v3113
        %v3115 = vpop.f32.mrf.mxu0
        %3116 = vmatprep.mubr.bf16.mxu0 %v740
        %3117 = vmatmul.mubr.bf16.gmra.mxu0 %v1637
        %v3118 = vpop.f32.mrf.mxu0
        %v3119 = vadd.f32 %v2958, %v3118
        %v3120 = vpop.f32.mrf.mxu0
        %v3121 = vpop.f32.mrf.mxu0
        %v3122 = vadd.f32 %v2961, %v3121
        %v3123 = vpop.f32.mrf.mxu0
        %3124 = vmatprep.mubr.bf16.mxu0 %v741
        %3125 = vmatmul.mubr.bf16.gmra.mxu0 %v1638
        %v3126 = vpop.f32.mrf.mxu0
        %v3127 = vadd.f32 %v2966, %v3126
        %v3128 = vpop.f32.mrf.mxu0
        %v3129 = vpop.f32.mrf.mxu0
        %v3130 = vadd.f32 %v2969, %v3129
        %v3131 = vpop.f32.mrf.mxu0
        %3132 = vmatprep.mubr.bf16.mxu0 %v742
        %3133 = vmatmul.mubr.bf16.gmra.mxu0 %v1639
        %v3134 = vpop.f32.mrf.mxu0
        %v3135 = vadd.f32 %v2974, %v3134
        %v3136 = vpop.f32.mrf.mxu0
        %v3137 = vpop.f32.mrf.mxu0
        %v3138 = vadd.f32 %v2977, %v3137
        %v3139 = vpop.f32.mrf.mxu0
        %3140 = vmatprep.mubr.bf16.mxu0 %v743
        %3141 = vmatmul.mubr.bf16.gmra.mxu0 %v1640
        %v3142 = vpop.f32.mrf.mxu0
        %v3143 = vadd.f32 %v2982, %v3142
        %v3144 = vpop.f32.mrf.mxu0
        %v3145 = vpop.f32.mrf.mxu0
        %v3146 = vadd.f32 %v2985, %v3145
        %v3147 = vpop.f32.mrf.mxu0
        %3148 = vmatprep.mubr.bf16.mxu0 %v744
        %3149 = vmatmul.mubr.bf16.gmra.mxu0 %v1641
        %v3150 = vpop.f32.mrf.mxu0
        %v3151 = vadd.f32 %v2990, %v3150
        %v3152 = vpop.f32.mrf.mxu0
        %v3153 = vpop.f32.mrf.mxu0
        %v3154 = vadd.f32 %v2993, %v3153
        %v3155 = vpop.f32.mrf.mxu0
        %3156 = vmatprep.mubr.bf16.mxu0 %v745
        %3157 = vmatmul.mubr.bf16.gmra.mxu0 %v1642
        %v3158 = vpop.f32.mrf.mxu0
        %v3159 = vadd.f32 %v2998, %v3158
        %v3160 = vpop.f32.mrf.mxu0
        %v3161 = vpop.f32.mrf.mxu0
        %v3162 = vadd.f32 %v3001, %v3161
        %v3163 = vpop.f32.mrf.mxu0
        %3164 = vmatprep.mubr.bf16.mxu0 %v746
        %3165 = vmatmul.mubr.bf16.gmra.mxu0 %v1643
        %v3166 = vpop.f32.mrf.mxu0
        %v3167 = vadd.f32 %v3006, %v3166
        %v3168 = vpop.f32.mrf.mxu0
        %v3169 = vpop.f32.mrf.mxu0
        %v3170 = vadd.f32 %v3009, %v3169
        %v3171 = vpop.f32.mrf.mxu0
        %3172 = vmatprep.mubr.bf16.mxu0 %v747
        %3173 = vmatmul.mubr.bf16.gmra.mxu0 %v1644
        %v3174 = vpop.f32.mrf.mxu0
        %v3175 = vadd.f32 %v3014, %v3174
        %v3176 = vpop.f32.mrf.mxu0
        %v3177 = vpop.f32.mrf.mxu0
        %v3178 = vadd.f32 %v3017, %v3177
        %v3179 = vpop.f32.mrf.mxu0
        %3180 = vmatprep.mubr.bf16.mxu0 %v748
        %3181 = vmatmul.mubr.bf16.gmra.mxu0 %v1645
        %v3182 = vpop.f32.mrf.mxu0
        %v3183 = vadd.f32 %v3022, %v3182
        %v3184 = vpop.f32.mrf.mxu0
        %v3185 = vpop.f32.mrf.mxu0
        %v3186 = vadd.f32 %v3025, %v3185
        %v3187 = vpop.f32.mrf.mxu0
        %3188 = vmatprep.mubr.bf16.mxu0 %v749
        %3189 = vmatmul.mubr.bf16.gmra.mxu0 %v1646
        %v3190 = vpop.f32.mrf.mxu0
        %v3191 = vadd.f32 %v3030, %v3190
        %v3192 = vpop.f32.mrf.mxu0
        %v3193 = vpop.f32.mrf.mxu0
        %v3194 = vadd.f32 %v3033, %v3193
        %v3195 = vpop.f32.mrf.mxu0
        %3196 = vmatprep.mubr.bf16.mxu0 %v750
        %3197 = vmatmul.mubr.bf16.gmra.mxu0 %v1647
        %v3198 = vpop.f32.mrf.mxu0
        %v3199 = vadd.f32 %v3038, %v3198
        %v3200 = vpop.f32.mrf.mxu0
        %v3201 = vpop.f32.mrf.mxu0
        %v3202 = vadd.f32 %v3041, %v3201
        %v3203 = vpop.f32.mrf.mxu0
        %3204 = vmatprep.mubr.bf16.mxu0 %v751
        %3205 = vmatmul.mubr.bf16.gmra.mxu0 %v1648
        %v3206 = vpop.f32.mrf.mxu0
        %v3207 = vadd.f32 %v3046, %v3206
        %v3208 = vpop.f32.mrf.mxu0
        %v3209 = vpop.f32.mrf.mxu0
        %v3210 = vadd.f32 %v3049, %v3209
        %v3211 = vpop.f32.mrf.mxu0
        %3212 = vmatprep.mubr.bf16.mxu0 0
        %3213 = vmatmul.mubr.bf16.gmra.mxu0 %v1649
        %v3214 = vpop.f32.mrf.mxu0
        %v3215 = vadd.f32 %v3054, %v3214
        %v3216 = vpop.f32.mrf.mxu0
        %v3217 = vpop.f32.mrf.mxu0
        %v3218 = vadd.f32 %v3057, %v3217
        %v3219 = vpop.f32.mrf.mxu0
        %3220 = vdwg.mxu0
        %3221 = vmatprep.subr.bf16.mxu0 0
        %3222 = vmatpush1.bf16.msra.mxu0 %v2504
        %3223 = vmatprep.subr.bf16.mxu0 0
        %3224 = vmatpush1.bf16.msra.mxu0 %v2503
        %3225 = vmatprep.subr.bf16.mxu0 0
        %3226 = vmatpush1.bf16.msra.mxu0 %v2502
        %3227 = vmatprep.subr.bf16.mxu0 0
        %3228 = vmatpush1.bf16.msra.mxu0 %v2501
        %3229 = vmatprep.subr.bf16.mxu0 0
        %3230 = vmatpush1.bf16.msra.mxu0 %v2500
        %3231 = vmatprep.subr.bf16.mxu0 0
        %3232 = vmatpush1.bf16.msra.mxu0 %v2499
        %3233 = vmatprep.subr.bf16.mxu0 0
        %3234 = vmatpush1.bf16.msra.mxu0 %v2498
        %3235 = vmatprep.subr.bf16.mxu0 0
        %3236 = vmatpush1.bf16.msra.mxu0 %v2497
        %3237 = vmatprep.subr.bf16.mxu0 0
        %3238 = vmatpush2.bf16.msra.mxu0 0
        %3239 = vmatprep.subr.bf16.mxu0 0
        %3240 = vmatpush2.bf16.msra.mxu0 0
        %3241 = vmatprep.subr.bf16.mxu0 0
        %3242 = vmatpush2.bf16.msra.mxu0 0
        %3243 = vmatprep.subr.bf16.mxu0 0
        %3244 = vmatpush2.bf16.msra.mxu0 0
        %3245 = vmatprep.subr.bf16.mxu0 0
        %3246 = vmatpush2.bf16.msra.mxu0 0
        %3247 = vmatprep.subr.bf16.mxu0 0
        %3248 = vmatpush2.bf16.msra.mxu0 0
        %3249 = vmatprep.subr.bf16.mxu0 0
        %3250 = vmatpush2.bf16.msra.mxu0 0
        %3251 = vmatprep.subr.bf16.mxu0 0
        %3252 = vmatpush2.bf16.msra.mxu0 0
        %3253 = vmatprep.mubr.bf16.mxu0 0
        %3254 = vmatmul.mubr.bf16.gmra.mxu0 %v1978
        %v3255 = vpop.f32.mrf.mxu0
        %v3256 = vadd.f32 %v3095, %v3255
        %v3257 = vpop.f32.mrf.mxu0
        %v3258 = vpop.f32.mrf.mxu0
        %v3259 = vadd.f32 %v3098, %v3258
        %v3260 = vpop.f32.mrf.mxu0
        %3261 = vmatprep.mubr.bf16.mxu0 0
        %3262 = vmatmul.mubr.bf16.gmra.mxu0 %v1979
        %v3263 = vpop.f32.mrf.mxu0
        %v3264 = vadd.f32 %v3103, %v3263
        %v3265 = vpop.f32.mrf.mxu0
        %v3266 = vpop.f32.mrf.mxu0
        %v3267 = vadd.f32 %v3106, %v3266
        %v3268 = vpop.f32.mrf.mxu0
        %3269 = vmatprep.mubr.bf16.mxu0 0
        %3270 = vmatmul.mubr.bf16.gmra.mxu0 %v1980
        %v3271 = vpop.f32.mrf.mxu0
        %v3272 = vadd.f32 %v3111, %v3271
        %v3273 = vpop.f32.mrf.mxu0
        %v3274 = vpop.f32.mrf.mxu0
        %v3275 = vadd.f32 %v3114, %v3274
        %v3276 = vpop.f32.mrf.mxu0
        %3277 = vmatprep.mubr.bf16.mxu0 0
        %3278 = vmatmul.mubr.bf16.gmra.mxu0 %v1981
        %v3279 = vpop.f32.mrf.mxu0
        %v3280 = vadd.f32 %v3119, %v3279
        %v3281 = vpop.f32.mrf.mxu0
        %v3282 = vpop.f32.mrf.mxu0
        %v3283 = vadd.f32 %v3122, %v3282
        %v3284 = vpop.f32.mrf.mxu0
        %3285 = vmatprep.mubr.bf16.mxu0 0
        %3286 = vmatmul.mubr.bf16.gmra.mxu0 %v1982
        %v3287 = vpop.f32.mrf.mxu0
        %v3288 = vadd.f32 %v3127, %v3287
        %v3289 = vpop.f32.mrf.mxu0
        %v3290 = vpop.f32.mrf.mxu0
        %v3291 = vadd.f32 %v3130, %v3290
        %v3292 = vpop.f32.mrf.mxu0
        %3293 = vmatprep.mubr.bf16.mxu0 0
        %3294 = vmatmul.mubr.bf16.gmra.mxu0 %v1983
        %v3295 = vpop.f32.mrf.mxu0
        %v3296 = vadd.f32 %v3135, %v3295
        %v3297 = vpop.f32.mrf.mxu0
        %v3298 = vpop.f32.mrf.mxu0
        %v3299 = vadd.f32 %v3138, %v3298
        %v3300 = vpop.f32.mrf.mxu0
        %3301 = vmatprep.mubr.bf16.mxu0 0
        %3302 = vmatmul.mubr.bf16.gmra.mxu0 %v1984
        %v3303 = vpop.f32.mrf.mxu0
        %v3304 = vadd.f32 %v3143, %v3303
        %v3305 = vpop.f32.mrf.mxu0
        %v3306 = vpop.f32.mrf.mxu0
        %v3307 = vadd.f32 %v3146, %v3306
        %v3308 = vpop.f32.mrf.mxu0
        %3309 = vmatprep.mubr.bf16.mxu0 0
        %3310 = vmatmul.mubr.bf16.gmra.mxu0 %v1985
        %v3311 = vpop.f32.mrf.mxu0
        %v3312 = vadd.f32 %v3151, %v3311
        %v3313 = vpop.f32.mrf.mxu0
        %v3314 = vpop.f32.mrf.mxu0
        %v3315 = vadd.f32 %v3154, %v3314
        %v3316 = vpop.f32.mrf.mxu0
        %3317 = vmatprep.mubr.bf16.mxu0 0
        %3318 = vmatmul.mubr.bf16.gmra.mxu0 %v1986
        %v3319 = vpop.f32.mrf.mxu0
        %v3320 = vadd.f32 %v3159, %v3319
        %v3321 = vpop.f32.mrf.mxu0
        %v3322 = vpop.f32.mrf.mxu0
        %v3323 = vadd.f32 %v3162, %v3322
        %v3324 = vpop.f32.mrf.mxu0
        %3325 = vmatprep.mubr.bf16.mxu0 0
        %3326 = vmatmul.mubr.bf16.gmra.mxu0 %v1987
        %v3327 = vpop.f32.mrf.mxu0
        %v3328 = vadd.f32 %v3167, %v3327
        %v3329 = vpop.f32.mrf.mxu0
        %v3330 = vpop.f32.mrf.mxu0
        %v3331 = vadd.f32 %v3170, %v3330
        %v3332 = vpop.f32.mrf.mxu0
        %3333 = vmatprep.mubr.bf16.mxu0 0
        %3334 = vmatmul.mubr.bf16.gmra.mxu0 %v1988
        %v3335 = vpop.f32.mrf.mxu0
        %v3336 = vadd.f32 %v3175, %v3335
        %v3337 = vpop.f32.mrf.mxu0
        %v3338 = vpop.f32.mrf.mxu0
        %v3339 = vadd.f32 %v3178, %v3338
        %v3340 = vpop.f32.mrf.mxu0
        %3341 = vmatprep.mubr.bf16.mxu0 0
        %3342 = vmatmul.mubr.bf16.gmra.mxu0 %v1989
        %v3343 = vpop.f32.mrf.mxu0
        %v3344 = vadd.f32 %v3183, %v3343
        %v3345 = vpop.f32.mrf.mxu0
        %v3346 = vpop.f32.mrf.mxu0
        %v3347 = vadd.f32 %v3186, %v3346
        %v3348 = vpop.f32.mrf.mxu0
        %3349 = vmatprep.mubr.bf16.mxu0 0
        %3350 = vmatmul.mubr.bf16.gmra.mxu0 %v1990
        %v3351 = vpop.f32.mrf.mxu0
        %v3352 = vadd.f32 %v3191, %v3351
        %v3353 = vpop.f32.mrf.mxu0
        %v3354 = vpop.f32.mrf.mxu0
        %v3355 = vadd.f32 %v3194, %v3354
        %v3356 = vpop.f32.mrf.mxu0
        %3357 = vmatprep.mubr.bf16.mxu0 0
        %3358 = vmatmul.mubr.bf16.gmra.mxu0 %v1991
        %v3359 = vpop.f32.mrf.mxu0
        %v3360 = vadd.f32 %v3199, %v3359
        %v3361 = vpop.f32.mrf.mxu0
        %v3362 = vpop.f32.mrf.mxu0
        %v3363 = vadd.f32 %v3202, %v3362
        %v3364 = vpop.f32.mrf.mxu0
        %3365 = vmatprep.mubr.bf16.mxu0 0
        %3366 = vmatmul.mubr.bf16.gmra.mxu0 %v1992
        %v3367 = vpop.f32.mrf.mxu0
        %v3368 = vadd.f32 %v3207, %v3367
        %v3369 = vpop.f32.mrf.mxu0
        %v3370 = vpop.f32.mrf.mxu0
        %v3371 = vadd.f32 %v3210, %v3370
        %v3372 = vpop.f32.mrf.mxu0
        %3373 = vmatprep.mubr.bf16.mxu0 0
        %3374 = vmatmul.mubr.bf16.gmra.mxu0 %v1993
        %v3375 = vpop.f32.mrf.mxu0
        %v3376 = vadd.f32 %v3215, %v3375
        %v3377 = vpop.f32.mrf.mxu0
        %v3378 = vpop.f32.mrf.mxu0
        %v3379 = vadd.f32 %v3218, %v3378
        %v3380 = vpop.f32.mrf.mxu0
        %3381 = vdwg.mxu0
        %v3382 = vmax.f32 %v3256, 0.0
        %v3383 = vmax.f32 %v3259, 0.0
        %v3384 = vmax.f32 %v3264, 0.0
        %v3385 = vmax.f32 %v3267, 0.0
        %v3386 = vmax.f32 %v3272, 0.0
        %v3387 = vmax.f32 %v3275, 0.0
        %v3388 = vmax.f32 %v3280, 0.0
        %v3389 = vmax.f32 %v3283, 0.0
        %v3390 = vmax.f32 %v3288, 0.0
        %v3391 = vmax.f32 %v3291, 0.0
        %v3392 = vmax.f32 %v3296, 0.0
        %v3393 = vmax.f32 %v3299, 0.0
        %v3394 = vmax.f32 %v3304, 0.0
        %v3395 = vmax.f32 %v3307, 0.0
        %v3396 = vmax.f32 %v3312, 0.0
        %v3397 = vmax.f32 %v3315, 0.0
        %v3398 = vmax.f32 %v3320, 0.0
        %v3399 = vmax.f32 %v3323, 0.0
        %v3400 = vmax.f32 %v3328, 0.0
        %v3401 = vmax.f32 %v3331, 0.0
        %v3402 = vmax.f32 %v3336, 0.0
        %v3403 = vmax.f32 %v3339, 0.0
        %v3404 = vmax.f32 %v3344, 0.0
        %v3405 = vmax.f32 %v3347, 0.0
        %v3406 = vmax.f32 %v3352, 0.0
        %v3407 = vmax.f32 %v3355, 0.0
        %v3408 = vmax.f32 %v3360, 0.0
        %v3409 = vmax.f32 %v3363, 0.0
        %v3410 = vmax.f32 %v3368, 0.0
        %v3411 = vmax.f32 %v3371, 0.0
        %v3412 = vmax.f32 %v3376, 0.0
        %v3413 = vmax.f32 %v3379, 0.0
        %v3414 = vpack.c.bf16 %v3383, %v3382
        %v3415 = vpack.c.bf16 %v3385, %v3384
        %v3416 = vpack.c.bf16 %v3387, %v3386
        %v3417 = vpack.c.bf16 %v3389, %v3388
        %v3418 = vpack.c.bf16 %v3391, %v3390
        %v3419 = vpack.c.bf16 %v3393, %v3392
        %v3420 = vpack.c.bf16 %v3395, %v3394
        %v3421 = vpack.c.bf16 %v3397, %v3396
        %v3422 = vpack.c.bf16 %v3399, %v3398
        %v3423 = vpack.c.bf16 %v3401, %v3400
        %v3424 = vpack.c.bf16 %v3403, %v3402
        %v3425 = vpack.c.bf16 %v3405, %v3404
        %v3426 = vpack.c.bf16 %v3407, %v3406
        %v3427 = vpack.c.bf16 %v3409, %v3408
        %v3428 = vpack.c.bf16 %v3411, %v3410
        %v3429 = vpack.c.bf16 %v3413, %v3412
        %v3430 = vld [vmem:[#allocation8] sm:$0xf]
        %v3431 = vld [vmem:[#allocation8 + $0x4] sm:$0xf]
        %v3432 = vld [vmem:[#allocation8 + $0x8] sm:$0xf]
        %v3433 = vld [vmem:[#allocation8 + $0xc] sm:$0xf]
        %v3434 = vld [vmem:[#allocation8 + $0x10] sm:$0xf]
        %v3435 = vld [vmem:[#allocation8 + $0x14] sm:$0xf]
        %v3436 = vld [vmem:[#allocation8 + $0x18] sm:$0xf]
        %v3437 = vld [vmem:[#allocation8 + $0x1c] sm:$0xf]
        %v3438 = vld [vmem:[#allocation8 + $0x20] sm:$0xf]
        %v3439 = vld [vmem:[#allocation8 + $0x24] sm:$0xf]
        %v3440 = vld [vmem:[#allocation8 + $0x28] sm:$0xf]
        %v3441 = vld [vmem:[#allocation8 + $0x2c] sm:$0xf]
        %v3442 = vld [vmem:[#allocation8 + $0x30] sm:$0xf]
        %v3443 = vld [vmem:[#allocation8 + $0x34] sm:$0xf]
        %v3444 = vld [vmem:[#allocation8 + $0x38] sm:$0xf]
        %v3445 = vld [vmem:[#allocation8 + $0x3c] sm:$0xf]
        %v3446 = vld [vmem:[%s6] sm:$0x1]
        %v3448 = vlaneseq
        %v3449 = vshrl.u32 %v3448, 7
        %v3450 = vsub.s32 0, %v3449
        %v3451 = vrot.slane %v3446, %v3450
        %v3469 = vunpack.c.l.b16 %v3430
        %v3470 = vunpack.c.l.b16 %v3431
        %v3471 = vunpack.c.l.b16 %v3432
        %v3472 = vunpack.c.l.b16 %v3433
        %v3473 = vunpack.c.l.b16 %v3434
        %v3474 = vunpack.c.l.b16 %v3435
        %v3475 = vunpack.c.l.b16 %v3436
        %v3476 = vunpack.c.l.b16 %v3437
        %v3477 = vunpack.c.l.b16 %v3438
        %v3478 = vunpack.c.l.b16 %v3439
        %v3479 = vunpack.c.l.b16 %v3440
        %v3480 = vunpack.c.l.b16 %v3441
        %v3481 = vunpack.c.l.b16 %v3442
        %v3482 = vunpack.c.l.b16 %v3443
        %v3483 = vunpack.c.l.b16 %v3444
        %v3484 = vunpack.c.l.b16 %v3445
        %v3485 = vpack.c.b16 %v3470, %v3469
        %v3486 = vpack.c.b16 %v3472, %v3471
        %v3487 = vpack.c.b16 %v3474, %v3473
        %v3488 = vpack.c.b16 %v3476, %v3475
        %v3489 = vpack.c.b16 %v3478, %v3477
        %v3490 = vpack.c.b16 %v3480, %v3479
        %v3491 = vpack.c.b16 %v3482, %v3481
        %v3492 = vpack.c.b16 %v3484, %v3483
        %3501 = vmatprep.subr.bf16.mxu0 0
        %3502 = vmatpush1.bf16.msra.mxu0 %v3492
        %3503 = vmatprep.subr.bf16.mxu0 0
        %3504 = vmatpush1.bf16.msra.mxu0 %v3491
        %3505 = vmatprep.subr.bf16.mxu0 0
        %3506 = vmatpush1.bf16.msra.mxu0 %v3490
        %3507 = vmatprep.subr.bf16.mxu0 0
        %3508 = vmatpush1.bf16.msra.mxu0 %v3489
        %3509 = vmatprep.subr.bf16.mxu0 0
        %3510 = vmatpush1.bf16.msra.mxu0 %v3488
        %3511 = vmatprep.subr.bf16.mxu0 0
        %3512 = vmatpush1.bf16.msra.mxu0 %v3487
        %3513 = vmatprep.subr.bf16.mxu0 0
        %3514 = vmatpush1.bf16.msra.mxu0 %v3486
        %3515 = vmatprep.subr.bf16.mxu0 0
        %3516 = vmatpush1.bf16.msra.mxu0 %v3485
        %3517 = vmatprep.subr.bf16.mxu0 0
        %3518 = vmatpush2.bf16.msra.mxu0 0
        %3519 = vmatprep.subr.bf16.mxu0 0
        %3520 = vmatpush2.bf16.msra.mxu0 0
        %3521 = vmatprep.subr.bf16.mxu0 0
        %3522 = vmatpush2.bf16.msra.mxu0 0
        %3523 = vmatprep.subr.bf16.mxu0 0
        %3524 = vmatpush2.bf16.msra.mxu0 0
        %3525 = vmatprep.subr.bf16.mxu0 0
        %3526 = vmatpush2.bf16.msra.mxu0 0
        %3527 = vmatprep.subr.bf16.mxu0 0
        %3528 = vmatpush2.bf16.msra.mxu0 0
        %3529 = vmatprep.subr.bf16.mxu0 0
        %3530 = vmatpush2.bf16.msra.mxu0 0
        %3531 = vmatprep.subr.bf16.mxu0 0
        %3532 = vmatpush2.bf16.msra.mxu0 0
        %3533 = vmatprep.mubr.bf16.mxu0 0
        %3534 = vmatmul.mubr.bf16.gmra.mxu0 %v3414
        %v3535 = vpop.f32.mrf.mxu0
        %v3536 = vadd.f32 %v3451, %v3535
        %v3537 = vpop.f32.mrf.mxu0
        %v3538 = vpop.f32.mrf.mxu0
        %v3539 = vadd.f32 %v3451, %v3538
        %v3540 = vpop.f32.mrf.mxu0
        %3541 = vmatprep.mubr.bf16.mxu0 0
        %3542 = vmatmul.mubr.bf16.gmra.mxu0 %v3415
        %v3543 = vpop.f32.mrf.mxu0
        %v3544 = vadd.f32 %v3451, %v3543
        %v3545 = vpop.f32.mrf.mxu0
        %v3546 = vpop.f32.mrf.mxu0
        %v3547 = vadd.f32 %v3451, %v3546
        %v3548 = vpop.f32.mrf.mxu0
        %3549 = vmatprep.mubr.bf16.mxu0 0
        %3550 = vmatmul.mubr.bf16.gmra.mxu0 %v3416
        %v3551 = vpop.f32.mrf.mxu0
        %v3552 = vadd.f32 %v3451, %v3551
        %v3553 = vpop.f32.mrf.mxu0
        %v3554 = vpop.f32.mrf.mxu0
        %v3555 = vadd.f32 %v3451, %v3554
        %v3556 = vpop.f32.mrf.mxu0
        %3557 = vmatprep.mubr.bf16.mxu0 0
        %3558 = vmatmul.mubr.bf16.gmra.mxu0 %v3417
        %v3559 = vpop.f32.mrf.mxu0
        %v3560 = vadd.f32 %v3451, %v3559
        %v3561 = vpop.f32.mrf.mxu0
        %v3562 = vpop.f32.mrf.mxu0
        %v3563 = vadd.f32 %v3451, %v3562
        %v3564 = vpop.f32.mrf.mxu0
        %3565 = vmatprep.mubr.bf16.mxu0 0
        %3566 = vmatmul.mubr.bf16.gmra.mxu0 %v3418
        %v3567 = vpop.f32.mrf.mxu0
        %v3568 = vadd.f32 %v3451, %v3567
        %v3569 = vpop.f32.mrf.mxu0
        %v3570 = vpop.f32.mrf.mxu0
        %v3571 = vadd.f32 %v3451, %v3570
        %v3572 = vpop.f32.mrf.mxu0
        %3573 = vmatprep.mubr.bf16.mxu0 0
        %3574 = vmatmul.mubr.bf16.gmra.mxu0 %v3419
        %v3575 = vpop.f32.mrf.mxu0
        %v3576 = vadd.f32 %v3451, %v3575
        %v3577 = vpop.f32.mrf.mxu0
        %v3578 = vpop.f32.mrf.mxu0
        %v3579 = vadd.f32 %v3451, %v3578
        %v3580 = vpop.f32.mrf.mxu0
        %3581 = vmatprep.mubr.bf16.mxu0 0
        %3582 = vmatmul.mubr.bf16.gmra.mxu0 %v3420
        %v3583 = vpop.f32.mrf.mxu0
        %v3584 = vadd.f32 %v3451, %v3583
        %v3585 = vpop.f32.mrf.mxu0
        %v3586 = vpop.f32.mrf.mxu0
        %v3587 = vadd.f32 %v3451, %v3586
        %v3588 = vpop.f32.mrf.mxu0
        %3589 = vmatprep.mubr.bf16.mxu0 0
        %3590 = vmatmul.mubr.bf16.gmra.mxu0 %v3421
        %v3591 = vpop.f32.mrf.mxu0
        %v3592 = vadd.f32 %v3451, %v3591
        %v3593 = vpop.f32.mrf.mxu0
        %v3594 = vpop.f32.mrf.mxu0
        %v3595 = vadd.f32 %v3451, %v3594
        %v3596 = vpop.f32.mrf.mxu0
        %3597 = vmatprep.mubr.bf16.mxu0 0
        %3598 = vmatmul.mubr.bf16.gmra.mxu0 %v3422
        %v3599 = vpop.f32.mrf.mxu0
        %v3600 = vadd.f32 %v3451, %v3599
        %v3601 = vpop.f32.mrf.mxu0
        %v3602 = vpop.f32.mrf.mxu0
        %v3603 = vadd.f32 %v3451, %v3602
        %v3604 = vpop.f32.mrf.mxu0
        %3605 = vmatprep.mubr.bf16.mxu0 0
        %3606 = vmatmul.mubr.bf16.gmra.mxu0 %v3423
        %v3607 = vpop.f32.mrf.mxu0
        %v3608 = vadd.f32 %v3451, %v3607
        %v3609 = vpop.f32.mrf.mxu0
        %v3610 = vpop.f32.mrf.mxu0
        %v3611 = vadd.f32 %v3451, %v3610
        %v3612 = vpop.f32.mrf.mxu0
        %3613 = vmatprep.mubr.bf16.mxu0 0
        %3614 = vmatmul.mubr.bf16.gmra.mxu0 %v3424
        %v3615 = vpop.f32.mrf.mxu0
        %v3616 = vadd.f32 %v3451, %v3615
        %v3617 = vpop.f32.mrf.mxu0
        %v3618 = vpop.f32.mrf.mxu0
        %v3619 = vadd.f32 %v3451, %v3618
        %v3620 = vpop.f32.mrf.mxu0
        %3621 = vmatprep.mubr.bf16.mxu0 0
        %3622 = vmatmul.mubr.bf16.gmra.mxu0 %v3425
        %v3623 = vpop.f32.mrf.mxu0
        %v3624 = vadd.f32 %v3451, %v3623
        %v3625 = vpop.f32.mrf.mxu0
        %v3626 = vpop.f32.mrf.mxu0
        %v3627 = vadd.f32 %v3451, %v3626
        %v3628 = vpop.f32.mrf.mxu0
        %3629 = vmatprep.mubr.bf16.mxu0 0
        %3630 = vmatmul.mubr.bf16.gmra.mxu0 %v3426
        %v3631 = vpop.f32.mrf.mxu0
        %v3632 = vadd.f32 %v3451, %v3631
        %v3633 = vpop.f32.mrf.mxu0
        %v3634 = vpop.f32.mrf.mxu0
        %v3635 = vadd.f32 %v3451, %v3634
        %v3636 = vpop.f32.mrf.mxu0
        %3637 = vmatprep.mubr.bf16.mxu0 0
        %3638 = vmatmul.mubr.bf16.gmra.mxu0 %v3427
        %v3639 = vpop.f32.mrf.mxu0
        %v3640 = vadd.f32 %v3451, %v3639
        %v3641 = vpop.f32.mrf.mxu0
        %v3642 = vpop.f32.mrf.mxu0
        %v3643 = vadd.f32 %v3451, %v3642
        %v3644 = vpop.f32.mrf.mxu0
        %3645 = vmatprep.mubr.bf16.mxu0 0
        %3646 = vmatmul.mubr.bf16.gmra.mxu0 %v3428
        %v3647 = vpop.f32.mrf.mxu0
        %v3648 = vadd.f32 %v3451, %v3647
        %v3649 = vpop.f32.mrf.mxu0
        %v3650 = vpop.f32.mrf.mxu0
        %v3651 = vadd.f32 %v3451, %v3650
        %v3652 = vpop.f32.mrf.mxu0
        %3653 = vmatprep.mubr.bf16.mxu0 0
        %3654 = vmatmul.mubr.bf16.gmra.mxu0 %v3429
        %v3655 = vpop.f32.mrf.mxu0
        %v3656 = vadd.f32 %v3451, %v3655
        %v3657 = vpop.f32.mrf.mxu0
        %v3658 = vpop.f32.mrf.mxu0
        %v3659 = vadd.f32 %v3451, %v3658
        %v3660 = vpop.f32.mrf.mxu0
        %3661 = vdwg.mxu0
        %v3662 = vunpack.c.l.bf16 %v344
        %v3663 = vunpack.c.l.bf16 %v345
        %v3664 = vunpack.c.l.bf16 %v346
        %v3665 = vunpack.c.l.bf16 %v347
        %v3666 = vunpack.c.l.bf16 %v348
        %v3667 = vunpack.c.l.bf16 %v349
        %v3668 = vunpack.c.l.bf16 %v350
        %v3669 = vunpack.c.l.bf16 %v351
        %v3670 = vunpack.c.l.bf16 %v352
        %v3671 = vunpack.c.l.bf16 %v353
        %v3672 = vunpack.c.l.bf16 %v354
        %v3673 = vunpack.c.l.bf16 %v355
        %v3674 = vunpack.c.l.bf16 %v356
        %v3675 = vunpack.c.l.bf16 %v357
        %v3676 = vunpack.c.l.bf16 %v358
        %v3677 = vunpack.c.l.bf16 %v359
        %v3678 = vunpack.c.l.bf16 %v360
        %v3679 = vunpack.c.l.bf16 %v361
        %v3680 = vunpack.c.l.bf16 %v362
        %v3681 = vunpack.c.l.bf16 %v363
        %v3682 = vunpack.c.l.bf16 %v364
        %v3683 = vunpack.c.l.bf16 %v365
        %v3684 = vunpack.c.l.bf16 %v366
        %v3685 = vunpack.c.l.bf16 %v367
        %v3686 = vunpack.c.l.bf16 %v368
        %v3687 = vunpack.c.l.bf16 %v369
        %v3688 = vunpack.c.l.bf16 %v370
        %v3689 = vunpack.c.l.bf16 %v371
        %v3690 = vunpack.c.l.bf16 %v372
        %v3691 = vunpack.c.l.bf16 %v373
        %v3692 = vunpack.c.l.bf16 %v374
        %v3693 = vunpack.c.l.bf16 %v375
        %v3694 = vadd.f32 %v3536, %v3662
        %v3695 = vadd.f32 %v3539, %v3663
        %v3696 = vadd.f32 %v3544, %v3664
        %v3697 = vadd.f32 %v3547, %v3665
        %v3698 = vadd.f32 %v3552, %v3666
        %v3699 = vadd.f32 %v3555, %v3667
        %v3700 = vadd.f32 %v3560, %v3668
        %v3701 = vadd.f32 %v3563, %v3669
        %v3702 = vadd.f32 %v3568, %v3670
        %v3703 = vadd.f32 %v3571, %v3671
        %v3704 = vadd.f32 %v3576, %v3672
        %v3705 = vadd.f32 %v3579, %v3673
        %v3706 = vadd.f32 %v3584, %v3674
        %v3707 = vadd.f32 %v3587, %v3675
        %v3708 = vadd.f32 %v3592, %v3676
        %v3709 = vadd.f32 %v3595, %v3677
        %v3710 = vadd.f32 %v3600, %v3678
        %v3711 = vadd.f32 %v3603, %v3679
        %v3712 = vadd.f32 %v3608, %v3680
        %v3713 = vadd.f32 %v3611, %v3681
        %v3714 = vadd.f32 %v3616, %v3682
        %v3715 = vadd.f32 %v3619, %v3683
        %v3716 = vadd.f32 %v3624, %v3684
        %v3717 = vadd.f32 %v3627, %v3685
        %v3718 = vadd.f32 %v3632, %v3686
        %v3719 = vadd.f32 %v3635, %v3687
        %v3720 = vadd.f32 %v3640, %v3688
        %v3721 = vadd.f32 %v3643, %v3689
        %v3722 = vadd.f32 %v3648, %v3690
        %v3723 = vadd.f32 %v3651, %v3691
        %v3724 = vadd.f32 %v3656, %v3692
        %v3725 = vadd.f32 %v3659, %v3693
        %v3726 = vmax.f32 %v3694, 0.0
        %v3727 = vmax.f32 %v3695, 0.0
        %v3728 = vmax.f32 %v3696, 0.0
        %v3729 = vmax.f32 %v3697, 0.0
        %v3730 = vmax.f32 %v3698, 0.0
        %v3731 = vmax.f32 %v3699, 0.0
        %v3732 = vmax.f32 %v3700, 0.0
        %v3733 = vmax.f32 %v3701, 0.0
        %v3734 = vmax.f32 %v3702, 0.0
        %v3735 = vmax.f32 %v3703, 0.0
        %v3736 = vmax.f32 %v3704, 0.0
        %v3737 = vmax.f32 %v3705, 0.0
        %v3738 = vmax.f32 %v3706, 0.0
        %v3739 = vmax.f32 %v3707, 0.0
        %v3740 = vmax.f32 %v3708, 0.0
        %v3741 = vmax.f32 %v3709, 0.0
        %v3742 = vmax.f32 %v3710, 0.0
        %v3743 = vmax.f32 %v3711, 0.0
        %v3744 = vmax.f32 %v3712, 0.0
        %v3745 = vmax.f32 %v3713, 0.0
        %v3746 = vmax.f32 %v3714, 0.0
        %v3747 = vmax.f32 %v3715, 0.0
        %v3748 = vmax.f32 %v3716, 0.0
        %v3749 = vmax.f32 %v3717, 0.0
        %v3750 = vmax.f32 %v3718, 0.0
        %v3751 = vmax.f32 %v3719, 0.0
        %v3752 = vmax.f32 %v3720, 0.0
        %v3753 = vmax.f32 %v3721, 0.0
        %v3754 = vmax.f32 %v3722, 0.0
        %v3755 = vmax.f32 %v3723, 0.0
        %v3756 = vmax.f32 %v3724, 0.0
        %v3757 = vmax.f32 %v3725, 0.0
        %v3758 = vpack.c.bf16 %v3727, %v3726
        %v3759 = vpack.c.bf16 %v3729, %v3728
        %v3760 = vpack.c.bf16 %v3731, %v3730
        %v3761 = vpack.c.bf16 %v3733, %v3732
        %v3762 = vpack.c.bf16 %v3735, %v3734
        %v3763 = vpack.c.bf16 %v3737, %v3736
        %v3764 = vpack.c.bf16 %v3739, %v3738
        %v3765 = vpack.c.bf16 %v3741, %v3740
        %v3766 = vpack.c.bf16 %v3743, %v3742
        %v3767 = vpack.c.bf16 %v3745, %v3744
        %v3768 = vpack.c.bf16 %v3747, %v3746
        %v3769 = vpack.c.bf16 %v3749, %v3748
        %v3770 = vpack.c.bf16 %v3751, %v3750
        %v3771 = vpack.c.bf16 %v3753, %v3752
        %v3772 = vpack.c.bf16 %v3755, %v3754
        %v3773 = vpack.c.bf16 %v3757, %v3756
        %v3790 = vunpack.c.l.b16 %v3758
        %v3791 = vunpack.c.h.b16 %v3758
        %v3792 = vunpack.c.l.b16 %v3759
        %v3793 = vunpack.c.h.b16 %v3759
        %v3794 = vunpack.c.l.b16 %v3760
        %v3795 = vunpack.c.h.b16 %v3760
        %v3796 = vunpack.c.l.b16 %v3761
        %v3797 = vunpack.c.h.b16 %v3761
        %v3798 = vunpack.c.l.b16 %v3762
        %v3799 = vunpack.c.h.b16 %v3762
        %v3800 = vunpack.c.l.b16 %v3763
        %v3801 = vunpack.c.h.b16 %v3763
        %v3802 = vunpack.c.l.b16 %v3764
        %v3803 = vunpack.c.h.b16 %v3764
        %v3804 = vunpack.c.l.b16 %v3765
        %v3805 = vunpack.c.h.b16 %v3765
        %v3806 = vunpack.c.l.b16 %v3766
        %v3807 = vunpack.c.h.b16 %v3766
        %v3808 = vunpack.c.l.b16 %v3767
        %v3809 = vunpack.c.h.b16 %v3767
        %v3810 = vunpack.c.l.b16 %v3768
        %v3811 = vunpack.c.h.b16 %v3768
        %v3812 = vunpack.c.l.b16 %v3769
        %v3813 = vunpack.c.h.b16 %v3769
        %v3814 = vunpack.c.l.b16 %v3770
        %v3815 = vunpack.c.h.b16 %v3770
        %v3816 = vunpack.c.l.b16 %v3771
        %v3817 = vunpack.c.h.b16 %v3771
        %v3818 = vunpack.c.l.b16 %v3772
        %v3819 = vunpack.c.h.b16 %v3772
        %v3820 = vunpack.c.l.b16 %v3773
        %v3821 = vunpack.c.h.b16 %v3773
        %v3822 = vpack.c.b16 %v3790, %v3790
        %v3823 = vpack.c.b16 %v3791, %v3791
        %v3824 = vpack.c.b16 %v3792, %v3792
        %v3825 = vpack.c.b16 %v3793, %v3793
        %v3826 = vpack.c.b16 %v3794, %v3794
        %v3827 = vpack.c.b16 %v3795, %v3795
        %v3828 = vpack.c.b16 %v3796, %v3796
        %v3829 = vpack.c.b16 %v3797, %v3797
        %v3830 = vpack.c.b16 %v3798, %v3798
        %v3831 = vpack.c.b16 %v3799, %v3799
        %v3832 = vpack.c.b16 %v3800, %v3800
        %v3833 = vpack.c.b16 %v3801, %v3801
        %v3834 = vpack.c.b16 %v3802, %v3802
        %v3835 = vpack.c.b16 %v3803, %v3803
        %v3836 = vpack.c.b16 %v3804, %v3804
        %v3837 = vpack.c.b16 %v3805, %v3805
        %v3838 = vpack.c.b16 %v3806, %v3806
        %v3839 = vpack.c.b16 %v3807, %v3807
        %v3840 = vpack.c.b16 %v3808, %v3808
        %v3841 = vpack.c.b16 %v3809, %v3809
        %v3842 = vpack.c.b16 %v3810, %v3810
        %v3843 = vpack.c.b16 %v3811, %v3811
        %v3844 = vpack.c.b16 %v3812, %v3812
        %v3845 = vpack.c.b16 %v3813, %v3813
        %v3846 = vpack.c.b16 %v3814, %v3814
        %v3847 = vpack.c.b16 %v3815, %v3815
        %v3848 = vpack.c.b16 %v3816, %v3816
        %v3849 = vpack.c.b16 %v3817, %v3817
        %v3850 = vpack.c.b16 %v3818, %v3818
        %v3851 = vpack.c.b16 %v3819, %v3819
        %v3852 = vpack.c.b16 %v3820, %v3820
        %v3853 = vpack.c.b16 %v3821, %v3821
        %3886 = vst [vmem:[%s340] sm:$0xf] %v3822
        %3887 = vst [vmem:[%s340 + $0x4] sm:$0xf] %v3823
        %3888 = vst [vmem:[%s340 + $0x8] sm:$0xf] %v3824
        %3889 = vst [vmem:[%s340 + $0xc] sm:$0xf] %v3825
        %3890 = vst [vmem:[%s340 + $0x10] sm:$0xf] %v3826
        %3891 = vst [vmem:[%s340 + $0x14] sm:$0xf] %v3827
        %3892 = vst [vmem:[%s340 + $0x18] sm:$0xf] %v3828
        %3893 = vst [vmem:[%s340 + $0x1c] sm:$0xf] %v3829
        %3894 = vst [vmem:[%s340 + $0x20] sm:$0xf] %v3830
        %3895 = vst [vmem:[%s340 + $0x24] sm:$0xf] %v3831
        %3896 = vst [vmem:[%s340 + $0x28] sm:$0xf] %v3832
        %3897 = vst [vmem:[%s340 + $0x2c] sm:$0xf] %v3833
        %3898 = vst [vmem:[%s340 + $0x30] sm:$0xf] %v3834
        %3899 = vst [vmem:[%s340 + $0x34] sm:$0xf] %v3835
        %3900 = vst [vmem:[%s340 + $0x38] sm:$0xf] %v3836
        %3901 = vst [vmem:[%s340 + $0x3c] sm:$0xf] %v3837
        %3902 = vst [vmem:[%s340 + $0x40] sm:$0xf] %v3838
        %3903 = vst [vmem:[%s340 + $0x44] sm:$0xf] %v3839
        %3904 = vst [vmem:[%s340 + $0x48] sm:$0xf] %v3840
        %3905 = vst [vmem:[%s340 + $0x4c] sm:$0xf] %v3841
        %3906 = vst [vmem:[%s340 + $0x50] sm:$0xf] %v3842
        %3907 = vst [vmem:[%s340 + $0x54] sm:$0xf] %v3843
        %3908 = vst [vmem:[%s340 + $0x58] sm:$0xf] %v3844
        %3909 = vst [vmem:[%s340 + $0x5c] sm:$0xf] %v3845
        %3910 = vst [vmem:[%s340 + $0x60] sm:$0xf] %v3846
        %3911 = vst [vmem:[%s340 + $0x64] sm:$0xf] %v3847
        %3912 = vst [vmem:[%s340 + $0x68] sm:$0xf] %v3848
        %3913 = vst [vmem:[%s340 + $0x6c] sm:$0xf] %v3849
        %3914 = vst [vmem:[%s340 + $0x70] sm:$0xf] %v3850
        %3915 = vst [vmem:[%s340 + $0x74] sm:$0xf] %v3851
        %3916 = vst [vmem:[%s340 + $0x78] sm:$0xf] %v3852
        %3917 = vst [vmem:[%s340 + $0x7c] sm:$0xf] %v3853
        %s3918 = sand.u32 %s186, 1
        %s3919 = scalar_lea.sflag [#allocation4], %s3918
        %s3920 = sand.u32 %s186, 1
        %s3921 = smul.addr %s3920, 128
        %s3922 = scalar_lea.vmem [#allocation10], %s3921
        // Predicated region
        $region65: #{tpu_custom_call.1} parent=47 // pred_check
          %p3923 = pneg %p196
        $region66: #{tpu_custom_call.1} parent=47 // pred_check_branch
          %3925 = sbr.rel (%p3923) target = $region68
        $region67: #{tpu_custom_call.1} parent=47 // pred_region
          %s3927 = ssub.s32 2048, 2048
          %3928 = vsyncadd %s3919, %s3927
          %s3929 = smul.addr %s26, 32
          %s3930 = smul.addr %s3929, 64
          %s3931 = scalar_lea.hbm %s7, %s3930
          %s3932 = sshll.u32 %s3922, 4
          %s3933 = int_to_ptr.vmem [resolvable:$true] %s3932
          %3938 = dma.vmem_to_hbm [thread:$0]  %s3933, 2048, %s3931, %s3919, 64, 64, 4
        $region68: #{tpu_custom_call.1} parent=47 // pred_fallthru
          _
      $region48: #{tpu_custom_call.1} parent=5 // pred_fallthru
        _
      %p3939 = scmp.le.s32.totalorder 2, %s21
      // Predicated region
      $region69: #{tpu_custom_call.1} parent=5 // pred_check
        %p3940 = pneg %p3939
      $region70: #{tpu_custom_call.1} parent=5 // pred_check_branch
        %3942 = sbr.rel (%p3940) target = $region72
      $region71: #{tpu_custom_call.1} parent=5 // pred_region
        %s3943 = ssub.s32 %s21, 2
        // Predicated region
        $region73: #{tpu_custom_call.1} parent=71 // pred_check
          %p3944 = pneg %p202
        $region74: #{tpu_custom_call.1} parent=71 // pred_check_branch
          %3946 = sbr.rel (%p3944) target = $region76
        $region75: #{tpu_custom_call.1} parent=71 // pred_region
          %s3947 = sand.u32 %s187, 1
          %s3948 = scalar_lea.sflag [#allocation4], %s3947
          %s3949 = sand.u32 %s187, 1
          %s3950 = smul.addr %s3949, 128
          %s3951 = scalar_lea.vmem [#allocation10], %s3950
          %3952 = dma.done %s3948, 2048
        $region76: #{tpu_custom_call.1} parent=71 // pred_fallthru
          _
      $region72: #{tpu_custom_call.1} parent=5 // pred_fallthru
        _
    $region6: #{tpu_custom_call.1} parent=1 // loop_footer
      %s25 = sadd.s32 1, %s21
    $region7: #{tpu_custom_call.1} parent=1 // loop_footer_branch
      %20 = sbr.rel target = $region3
    $region8: #{tpu_custom_call.1} parent=1 // loop_exit
      _
    %3953 = vsyncpa [#allocation3], 1
    %s3954 = scalar_lea.sflag [#allocation3], 1
    %3955 = vsyncpa %s3954, 1
    %3956 = vsyncpa [#allocation6], 1
    %3957 = vsyncpa [#allocation9], 1
    %3958 = vsyncpa [#allocation4], 1
    %s3959 = scalar_lea.sflag [#allocation4], 1
    %3960 = vsyncpa %s3959, 1

</llo_original>
